<compile_context>
chip_gen: v6e
topology: v6e:2x2x1
jax: 0.10.0
libtpu: 0.0.40
codegen_flags: <defaults>
</compile_context>

<pallas_src>
import functools

import jax
import jax.numpy as jnp
from jax.experimental import pallas as pl
from jax.experimental.pallas import tpu as pltpu

EPS = 1e-5                 # GroupNorm eps (PyTorch default)
MXU_DTYPE = jnp.bfloat16   # MXU operand dtype (accumulation stays f32)
KV_BLOCK = 128             # flash-attention KV tile (rows of K/V per online-softmax step)

_CONST_SPEC_KW = None


def _const_spec_kwargs():
    """Probe whether this JAX/Mosaic supports single-buffering grid-invariant operands
    via BlockSpec(pipeline_mode=pl.Buffered(1)); fall back to default double-buffering
    so the kernel always runs."""
    global _CONST_SPEC_KW
    if _CONST_SPEC_KW is not None:
        return _CONST_SPEC_KW
    try:
        kw = {"pipeline_mode": pl.Buffered(1)}

        def _probe(a_ref, w_ref, o_ref):
            o_ref[...] = a_ref[...] + w_ref[...]

        r = pl.pallas_call(
            _probe,
            out_shape=jax.ShapeDtypeStruct((8, 128), jnp.float32),
            grid=(1,),
            in_specs=[pl.BlockSpec((8, 128), lambda b: (0, 0)),
                      pl.BlockSpec((8, 128), lambda b: (0, 0), **kw)],
            out_specs=pl.BlockSpec((8, 128), lambda b: (0, 0)),
        )(jnp.ones((8, 128), jnp.float32), jnp.ones((8, 128), jnp.float32))
        jax.block_until_ready(r)
        _CONST_SPEC_KW = kw
    except Exception:
        _CONST_SPEC_KW = {}
    return _CONST_SPEC_KW


def _cspec(shape):
    """BlockSpec for operands whose block index never changes across the grid
    (weights / biases / GN params): fetched once, single-buffered when supported."""
    zeros = (0,) * len(shape)

    def index_map(b):
        return zeros

    return pl.BlockSpec(shape, index_map, **_const_spec_kwargs())


def _vmem_limit_bytes():
    """Per-generation VMEM budget: ~85% of physical (v5e/v6e 128 MiB -> ~110 MiB,
    v7x 64 MiB -> ~54 MiB), with a conservative fallback if the query fails."""
    try:
        cap = int(pltpu.get_tpu_info().vmem_capacity_bytes)
        return min(int(cap * 0.85), 110 * 1024 * 1024)
    except Exception:
        return 48 * 1024 * 1024   # safe under v7x's 64 MiB physical VMEM


# ----------------------------------------------------------------------------
# In-kernel helpers (operate on values / scratch refs)
# ----------------------------------------------------------------------------
def _group_norm(x, gamma, beta, m, cpg):
    """GroupNorm over (rows, channels-in-group). x: (N, C) f32, m: (C, G) one-hot.
    Stats stacked into one (2, C) operand -> 2 MXU pushes instead of 4."""
    inv_n = 1.0 / float(x.shape[0] * cpg)
    stats = jnp.concatenate([jnp.sum(x, axis=0, keepdims=True),
                             jnp.sum(x * x, axis=0, keepdims=True)], axis=0)   # (2, C)
    sg = jnp.dot(stats, m, preferred_element_type=jnp.float32) * inv_n         # (2, G)
    mean_g = sg[0:1, :]
    var_g = jnp.maximum(sg[1:2, :] - mean_g * mean_g, 0.0)    # guard cancellation
    inv_g = jax.lax.rsqrt(var_g + EPS)
    mv = jnp.dot(jnp.concatenate([mean_g, inv_g], axis=0), m.T,
                 preferred_element_type=jnp.float32)                           # (2, C)
    return (x - mv[0:1, :]) * mv[1:2, :] * gamma + beta


def _conv3x3_acc(h, w_ref, xp_ref, x3_ref, H, W):
    """3x3 / pad-1 conv of h (HW, Cin) with w_ref (3, 3*Cin, Cout): 3 dots, K=3*Cin.

    xp_ref: (H+2, W+2, Cin) zero-padded activation scratch (bf16, MXU input).
    x3_ref: (H+2, W, 3*Cin) scratch with the 3 horizontal taps folded into lanes.
    Only the 1-wide border strips of xp_ref are zeroed each step (interior is fully
    rewritten), so the kernel is correct under any grid order / core sharding.

    # TODO(synk): per-generation tap strategy — on v5e with Cin>=128 drop the x3
    # fold (9 dots with K=Cin straight off xp_ref; saves 3x re-store through the
    # single vst slot); on large-VMEM chips fold all 9 taps into one K=9*Cin dot.
    """
    HW = H * W
    Cin = xp_ref.shape[-1]
    Cout = w_ref.shape[-1]
    zrow = jnp.zeros((1, W + 2, Cin), xp_ref.dtype)
    zcol = jnp.zeros((H + 2, 1, Cin), xp_ref.dtype)
    xp_ref[0:1, :, :] = zrow
    xp_ref[H + 1:H + 2, :, :] = zrow
    xp_ref[:, 0:1, :] = zcol
    xp_ref[:, W + 1:W + 2, :] = zcol
    xp_ref[1:H + 1, 1:W + 1, :] = h.reshape(H, W, Cin).astype(xp_ref.dtype)
    for dx in range(3):                                   # fold dx taps into lanes
        x3_ref[:, :, dx * Cin:(dx + 1) * Cin] = xp_ref[:, dx:dx + W, :]
    acc = jnp.zeros((HW, Cout), jnp.float32)
    for dy in range(3):                                   # 3 dots, K = 3*Cin
        win = x3_ref[dy:dy + H, :, :].reshape(HW, 3 * Cin)
        acc += jnp.dot(win, w_ref[dy], preferred_element_type=jnp.float32)
    return acc


# ----------------------------------------------------------------------------
# Kernels
# ----------------------------------------------------------------------------
def _resnet_first_kernel(x_ref, t_ref, g1_ref, b1_ref, m_ref, w1_ref, cb1_ref,
                         tw_ref, tb_ref, o_ref, xp_ref, x3_ref, *, H, W, cpg):
    """GN -> SiLU -> conv3x3 (+bias) + SiLU(t_emb)@W+b broadcast, one sample."""
    x = x_ref[0].astype(jnp.float32)                      # (HW, Cin)
    xn = _group_norm(x, g1_ref[...], b1_ref[...], m_ref[...], cpg)
    h = xn * jax.nn.sigmoid(xn)                           # SiLU
    acc = _conv3x3_acc(h, w1_ref, xp_ref, x3_ref, H, W)   # (HW, Cout) f32
    t = t_ref[0].astype(jnp.float32)                      # (1, T)
    ts = t * jax.nn.sigmoid(t)
    temb = jnp.dot(ts.astype(tw_ref.dtype), tw_ref[...],
                   preferred_element_type=jnp.float32) + tb_ref[...]
    o_ref[0] = (acc + cb1_ref[...] + temb).astype(o_ref.dtype)   # bf16 intermediate


def _resnet_attn_down_kernel(h_ref, x_ref, g2_ref, b2_ref, m_ref, w2_ref, cb2_ref,
                             rw_ref, rb_ref, ga_ref, ba_ref,
                             wqkv_ref, bqkv_ref, wo_ref, bo_ref,
                             dsw_ref, dsb_ref,
                             o_ref,
                             xp_ref, x3_ref, pp0, pp1, pp2, pp3,
                             *, H, W, cpg, num_heads, kv_blk):
    """GN2 -> SiLU -> conv3x3 + 1x1 residual, then GN -> flash MHA -> residual add,
    then fused 4x4 / stride-2 / pad-1 downsample conv.  One sample per grid step."""
    HW = H * W
    Ho, Wo = H // 2, W // 2
    C = wo_ref.shape[0]
    dh = C // num_heads
    mxu = wqkv_ref.dtype

    # --- second resnet conv ---
    h1 = h_ref[0].astype(jnp.float32)                     # bf16 intermediate -> f32 stats
    hn = _group_norm(h1, g2_ref[...], b2_ref[...], m_ref[...], cpg)
    a = hn * jax.nn.sigmoid(hn)
    acc = _conv3x3_acc(a, w2_ref, xp_ref, x3_ref, H, W)
    # fused 1x1 residual conv on the block input (x already bf16)
    res = jnp.dot(x_ref[0], rw_ref[...], preferred_element_type=jnp.float32) + rb_ref[...]
    out = acc + cb2_ref[...] + res                        # (HW, C) f32, pre-attention

    # --- attention: GN -> fused lane-dense QKV projection -> flash MHA ---
    on = _group_norm(out, ga_ref[...], ba_ref[...], m_ref[...], cpg)
    qkv = jnp.dot(on.astype(mxu), wqkv_ref[...],
                  preferred_element_type=jnp.float32) + bqkv_ref[...]          # (HW, 3C)
    # TODO(synk): on v6e/v7x the exp/probabilities could run in bf16 (keep m/l in f32);
    # kept f32 here so the same code is optimal on v5e (no bf16 VPU/EUP).
    heads = []
    for hd in range(num_heads):
        q = qkv[:, hd * dh:(hd + 1) * dh].astype(mxu)     # 1/sqrt(dh) folded into Wq/bq
        m_i = jnp.full((HW, 1), -jnp.inf, jnp.float32)
        l_i = jnp.zeros((HW, 1), jnp.float32)
        o_acc = jnp.zeros((HW, dh), jnp.float32)
        for s0 in range(0, HW, kv_blk):                   # KV-tiled online softmax
            sz = min(kv_blk, HW - s0)
            kc = qkv[s0:s0 + sz, C + hd * dh:C + (hd + 1) * dh].astype(mxu)
            vc = qkv[s0:s0 + sz, 2 * C + hd * dh:2 * C + (hd + 1) * dh].astype(mxu)
            s = jax.lax.dot_general(q, kc, (((1,), (1,)), ((), ())),
                                    preferred_element_type=jnp.float32)        # (HW, sz)
            m_new = jnp.maximum(m_i, jnp.max(s, axis=-1, keepdims=True))
            alpha = jnp.exp(m_i - m_new)
            p = jnp.exp(s - m_new)
            l_i = alpha * l_i + jnp.sum(p, axis=-1, keepdims=True)
            o_acc = alpha * o_acc + jnp.dot(p.astype(mxu), vc,
                                            preferred_element_type=jnp.float32)
            m_i = m_new
        heads.append(o_acc * pl.reciprocal(l_i, approx=True))
    oh = jnp.concatenate(heads, axis=-1).astype(mxu)      # (HW, C), head-major lanes
    attn = jnp.dot(oh, wo_ref[...], preferred_element_type=jnp.float32) + bo_ref[...]
    final = out + attn                                    # (HW, C) f32

    # --- fused 4x4 / stride-2 / pad-1 downsample conv on the resident activation ---
    f5 = final.reshape(Ho, 2, Wo, 2, C)                   # lane dim (C) preserved
    planes = (f5[:, 0, :, 0, :], f5[:, 0, :, 1, :],       # (even row, even/odd col)
              f5[:, 1, :, 0, :], f5[:, 1, :, 1, :])       # (odd  row, even/odd col)
    pps = (pp0, pp1, pp2, pp3)
    zrow = jnp.zeros((1, Wo + 2, C), pp0.dtype)
    zcol = jnp.zeros((Ho + 2, 1, C), pp0.dtype)
    for pref, plane in zip(pps, planes):                  # zero only the 1-wide border
        pref[0:1, :, :] = zrow
        pref[Ho + 1:Ho + 2, :, :] = zrow
        pref[:, 0:1, :] = zcol
        pref[:, Wo + 1:Wo + 2, :] = zcol
        pref[1:Ho + 1, 1:Wo + 1, :] = plane.astype(pref.dtype)
    dacc = jnp.zeros((Ho * Wo, dsw_ref.shape[-1]), jnp.float32)
    for ky in range(4):
        py, sy = (ky + 1) % 2, (ky - 1) // 2              # input-row parity / block shift
        for kx in range(4):
            px, sx = (kx + 1) % 2, (kx - 1) // 2
            win = pps[2 * py + px][1 + sy:1 + sy + Ho, 1 + sx:1 + sx + Wo, :]
            dacc += jnp.dot(win.reshape(Ho * Wo, C), dsw_ref[ky * 4 + kx],
                            preferred_element_type=jnp.float32)
    o_ref[0] = (dacc + dsb_ref[...]).astype(o_ref.dtype)


# ----------------------------------------------------------------------------
# Forward pass (2 pallas_calls)
# ----------------------------------------------------------------------------
def down_block_forward(x_nchw, t_emb, params, num_heads=4):
    B, Cin, H, W = x_nchw.shape
    assert H % 2 == 0 and W % 2 == 0, "downsample conv needs even H and W"
    HW = H * W
    Ho, Wo = H // 2, W // 2
    Cout = params["conv1_b"].shape[0]
    G = params["m_in"].shape[1]
    assert Cin % G == 0 and Cout % G == 0 and Cout % num_heads == 0
    cpg_in, cpg_out = Cin // G, Cout // G
    T = t_emb.shape[-1]
    dh = Cout // num_heads
    bf = MXU_DTYPE
    r2 = lambda a: a.reshape(1, -1)

    # NOTE: v7x has 2 TensorCores per chip; B >= 2 keeps both busy via the
    # "parallel" batch grid.  With B == 1 add a second parallel grid axis.
    x = jnp.transpose(x_nchw, (0, 2, 3, 1)).reshape(B, HW, Cin)
    x_bf = x.astype(bf)                                   # K2 only uses x as an MXU operand
    t3 = t_emb.reshape(B, 1, T)

    # MXU operands prepared on the host (bf16 + layouts the kernels consume directly).
    # NOTE: all weights are in right-multiply (x @ W) form; when loading real PyTorch
    # weights (Conv2d (Co,Ci,kh,kw), Linear/MHA (out,in)) they must be transposed.
    # TODO(synk): pad Cin/Cout/dh to 128 (256 on v6e/v7x) lane multiples for real
    # model sizes; left unpadded here to keep exact module semantics.
    w1 = params["conv1_w"].reshape(3, 3 * Cin, Cout).astype(bf)   # [dy, dx*Cin+ci, co]
    w2 = params["conv2_w"].reshape(3, 3 * Cout, Cout).astype(bf)
    tw = params["t_w"].astype(bf)
    rw = params["res_w"].astype(bf)
    scale = 1.0 / float(dh) ** 0.5                        # fold 1/sqrt(dh) into Wq, bq
    wqkv = jnp.concatenate([params["wq"] * scale, params["wk"], params["wv"]],
                           axis=1).astype(bf)                                  # (C, 3C)
    bqkv = jnp.concatenate([params["bq"] * scale, params["bk"], params["bv"]]
                           ).reshape(1, 3 * Cout)
    wo = params["wo"].astype(bf)                                               # (C, C)
    dsw = params["ds_w"].reshape(16, Cout, Cout).astype(bf)                    # [ky*4+kx, ci, co]

    kv_blk = min(KV_BLOCK, HW)
    cparams = pltpu.CompilerParams(dimension_semantics=("parallel",),
                                   vmem_limit_bytes=_vmem_limit_bytes())

    # ---- kernel 1: t-emb projection + GN1 + SiLU + conv3x3 + broadcast add ----
    k1 = functools.partial(_resnet_first_kernel, H=H, W=W, cpg=cpg_in)
    h1 = pl.pallas_call(
        k1,
        out_shape=jax.ShapeDtypeStruct((B, HW, Cout), bf),     # bf16 inter-kernel tensor
        grid=(B,),
        in_specs=[
            pl.BlockSpec((1, HW, Cin), lambda b: (b, 0, 0)),   # x
            pl.BlockSpec((1, 1, T), lambda b: (b, 0, 0)),      # t_emb
            _cspec((1, Cin)),                                  # gn1 gamma
            _cspec((1, Cin)),                                  # gn1 beta
            _cspec((Cin, G)),                                  # group one-hot
            _cspec((3, 3 * Cin, Cout)),                        # conv1 w (bf16)
            _cspec((1, Cout)),                                 # conv1 b
            _cspec((T, Cout)),                                 # t_w (bf16)
            _cspec((1, Cout)),                                 # t_b
        ],
        out_specs=pl.BlockSpec((1, HW, Cout), lambda b: (b, 0, 0)),
        scratch_shapes=[pltpu.VMEM((H + 2, W + 2, Cin), bf),
                        pltpu.VMEM((H + 2, W, 3 * Cin), bf)],
        compiler_params=cparams,
    )(x, t3, r2(params["gn1_g"]), r2(params["gn1_b"]), params["m_in"],
      w1, r2(params["conv1_b"]), tw, r2(params["t_b"]))

    # ---- kernel 2: GN2+SiLU+conv3x3 + 1x1 residual + GN + flash MHA + downsample ----
    k2 = functools.partial(_resnet_attn_down_kernel, H=H, W=W, cpg=cpg_out,
                           num_heads=num_heads, kv_blk=kv_blk)
    y = pl.pallas_call(
        k2,
        out_shape=jax.ShapeDtypeStruct((B, Ho * Wo, Cout), jnp.float32),
        grid=(B,),
        in_specs=[
            pl.BlockSpec((1, HW, Cout), lambda b: (b, 0, 0)),  # h1 (bf16)
            pl.BlockSpec((1, HW, Cin), lambda b: (b, 0, 0)),   # x (bf16, residual input)
            _cspec((1, Cout)),                                 # gn2 gamma
            _cspec((1, Cout)),                                 # gn2 beta
            _cspec((Cout, G)),                                 # group one-hot
            _cspec((3, 3 * Cout, Cout)),                       # conv2 w
            _cspec((1, Cout)),                                 # conv2 b
            _cspec((Cin, Cout)),                               # res_w (1x1 conv)
            _cspec((1, Cout)),                                 # res_b
            _cspec((1, Cout)),                                 # attn gn gamma
            _cspec((1, Cout)),                                 # attn gn beta
            _cspec((Cout, 3 * Cout)),                          # fused Wqkv (bf16)
            _cspec((1, 3 * Cout)),                             # fused bqkv
            _cspec((Cout, Cout)),                              # wo (bf16)
            _cspec((1, Cout)),                                 # bo
            _cspec((16, Cout, Cout)),                          # downsample w (bf16)
            _cspec((1, Cout)),                                 # downsample b
        ],
        out_specs=pl.BlockSpec((1, Ho * Wo, Cout), lambda b: (b, 0, 0)),
        scratch_shapes=[pltpu.VMEM((H + 2, W + 2, Cout), bf),
                        pltpu.VMEM((H + 2, W, 3 * Cout), bf)]
                     + [pltpu.VMEM((Ho + 2, Wo + 2, Cout), bf)] * 4,
        compiler_params=cparams,
    )(h1, x_bf, r2(params["gn2_g"]), r2(params["gn2_b"]), params["m_out"],
      w2, r2(params["conv2_b"]), rw, r2(params["res_b"]),
      r2(params["attn_gn_g"]), r2(params["attn_gn_b"]),
      wqkv, bqkv, wo, r2(params["bo"]), dsw, r2(params["ds_b"]))

    return jnp.transpose(y.reshape(B, Ho, Wo, Cout), (0, 3, 1, 2))   # back to NCHW


# ----------------------------------------------------------------------------
# Deterministic synthetic parameters (shapes follow the nn.Module __init__)
# ----------------------------------------------------------------------------
def make_group_onehot(C, G):
    cpg = C // G
    return (jnp.arange(C)[:, None] // cpg == jnp.arange(G)[None, :]).astype(jnp.float32)


def init_params(key, Cin, Cout, T, G):
    ks = jax.random.split(key, 24)

    def n(k, shape, scale=0.05):
        return jax.random.normal(k, shape, jnp.float32) * scale

    params = dict(
        gn1_g=1.0 + n(ks[0], (Cin,)), gn1_b=n(ks[1], (Cin,)),
        conv1_w=n(ks[2], (3, 3, Cin, Cout)), conv1_b=n(ks[3], (Cout,)),
        t_w=n(ks[4], (T, Cout)), t_b=n(ks[5], (Cout,)),
        gn2_g=1.0 + n(ks[6], (Cout,)), gn2_b=n(ks[7], (Cout,)),
        conv2_w=n(ks[8], (3, 3, Cout, Cout)), conv2_b=n(ks[9], (Cout,)),
        res_w=n(ks[10], (Cin, Cout)), res_b=n(ks[11], (Cout,)),
        attn_gn_g=1.0 + n(ks[12], (Cout,)), attn_gn_b=n(ks[13], (Cout,)),
        wq=n(ks[14], (Cout, Cout)), wk=n(ks[15], (Cout, Cout)),
        wv=n(ks[16], (Cout, Cout)), wo=n(ks[17], (Cout, Cout)),
        bq=n(ks[18], (Cout,)), bk=n(ks[19], (Cout,)),
        bv=n(ks[20], (Cout,)), bo=n(ks[21], (Cout,)),
        ds_w=n(ks[22], (4, 4, Cout, Cout)), ds_b=n(ks[23], (Cout,)),
    )
    params["m_in"] = make_group_onehot(Cin, G)
    params["m_out"] = make_group_onehot(Cout, G)
    return params


if __name__ == "__main__":
    key = jax.random.PRNGKey(0)
    kx, kt, kp = jax.random.split(key, 3)

    # in/out channels divisible by 8 (GroupNorm(8, .)); out channels divisible by heads
    # B=2 so both v7x TensorCores get a "parallel" grid step.
    B, Cin, H, W = 2, 8, 16, 16
    Cout, T_EMB, G, HEADS = 16, 32, 8, 4

    x = jax.random.normal(kx, (B, Cin, H, W), jnp.float32)     # NCHW like PyTorch
    t_emb = jax.random.normal(kt, (B, T_EMB), jnp.float32)
    params = init_params(kp, Cin, Cout, T_EMB, G)

    y = down_block_forward(x, t_emb, params, num_heads=HEADS)
    y = jax.block_until_ready(y)

    assert y.shape == (B, Cout, H // 2, W // 2), y.shape
    assert bool(jnp.all(jnp.isfinite(y)))
    print("KERNEL_OK")
</pallas_src>

<mosaic_0001>
module attributes {stable_mosaic.version = 11 : i64} {
  func.func @_probe(%arg0: i32, %arg1: memref<8x128xf32, #tpu.memory_space<vmem>>, %arg2: memref<8x128xf32, #tpu.memory_space<vmem>>, %arg3: memref<8x128xf32, #tpu.memory_space<vmem>>) attributes {dimension_semantics = [#tpu.dimension_semantics<arbitrary>], iteration_bounds = array<i64: 1>, scalar_prefetch = 0 : i64, scratch_operands = 0 : i64, tpu.core_type = #tpu.core_type<tc>, window_params = [{pipeline_mode = #tpu.pipeline_mode<synchronous>, transform_indices = @transform_0, window_bounds = array<i64: 8, 128>}, {pipeline_mode = #tpu.pipeline_mode<synchronous>, transform_indices = @transform_1, window_bounds = array<i64: 8, 128>}, {pipeline_mode = #tpu.pipeline_mode<synchronous>, transform_indices = @transform_2, window_bounds = array<i64: 8, 128>}]} {
    %c0 = arith.constant 0 : index
    %c0_0 = arith.constant 0 : index
    %0 = vector.load %arg1[%c0, %c0_0] : memref<8x128xf32, #tpu.memory_space<vmem>>, vector<8x128xf32>
    %c0_1 = arith.constant 0 : index
    %c0_2 = arith.constant 0 : index
    %1 = vector.load %arg2[%c0_1, %c0_2] : memref<8x128xf32, #tpu.memory_space<vmem>>, vector<8x128xf32>
    %2 = arith.addf %0, %1 : vector<8x128xf32>
    %c0_3 = arith.constant 0 : index
    %c0_4 = arith.constant 0 : index
    %3 = vector.load %arg3[%c0_3, %c0_4] : memref<8x128xf32, #tpu.memory_space<vmem>>, vector<8x128xf32>
    tpu.vector_store %arg3[%c0_3, %c0_4], %2 {strides = array<i32>} : memref<8x128xf32, #tpu.memory_space<vmem>>, vector<8x128xf32>,
    return
  }
  func.func @transform_0(%arg0: i32) -> (i32, i32) {
    %c0_i32 = arith.constant 0 : i32
    %c0_i32_0 = arith.constant 0 : i32
    %c0_i32_1 = arith.constant 0 : i32
    return %c0_i32, %c0_i32_0 : i32, i32
  }
  func.func @transform_1(%arg0: i32) -> (i32, i32) {
    %c0_i32 = arith.constant 0 : i32
    %c0_i32_0 = arith.constant 0 : i32
    %c0_i32_1 = arith.constant 0 : i32
    return %c0_i32, %c0_i32_0 : i32, i32
  }
  func.func @transform_2(%arg0: i32) -> (i32, i32) {
    %c0_i32 = arith.constant 0 : i32
    %c0_i32_0 = arith.constant 0 : i32
    %c0_i32_1 = arith.constant 0 : i32
    return %c0_i32, %c0_i32_0 : i32, i32
  }
}

module attributes {stable_mosaic.version = 11 : i64} {
  func.func @_resnet_first_kernel(%arg0: i32, %arg1: memref<1x256x8xf32, #tpu.memory_space<vmem>>, %arg2: memref<1x1x32xf32, #tpu.memory_space<vmem>>, %arg3: memref<1x8xf32, #tpu.memory_space<vmem>>, %arg4: memref<1x8xf32, #tpu.memory_space<vmem>>, %arg5: memref<8x8xf32, #tpu.memory_space<vmem>>, %arg6: memref<3x24x16xbf16, #tpu.memory_space<vmem>>, %arg7: memref<1x16xf32, #tpu.memory_space<vmem>>, %arg8: memref<32x16xbf16, #tpu.memory_space<vmem>>, %arg9: memref<1x16xf32, #tpu.memory_space<vmem>>, %arg10: memref<1x256x16xbf16, #tpu.memory_space<vmem>>, %arg11: memref<18x18x8xbf16, #tpu.memory_space<vmem>>, %arg12: memref<18x16x24xbf16, #tpu.memory_space<vmem>>) attributes {dimension_semantics = [#tpu.dimension_semantics<parallel>], iteration_bounds = array<i64: 2>, scalar_prefetch = 0 : i64, scratch_operands = 2 : i64, tpu.core_type = #tpu.core_type<tc>, window_params = [{transform_indices = @transform_0, window_bounds = array<i64: 1, 256, 8>}, {transform_indices = @transform_1, window_bounds = array<i64: 1, 1, 32>}, {pipeline_mode = #tpu.pipeline_mode<synchronous>, transform_indices = @transform_2, window_bounds = array<i64: 1, 8>}, {pipeline_mode = #tpu.pipeline_mode<synchronous>, transform_indices = @transform_3, window_bounds = array<i64: 1, 8>}, {pipeline_mode = #tpu.pipeline_mode<synchronous>, transform_indices = @transform_4, window_bounds = array<i64: 8, 8>}, {pipeline_mode = #tpu.pipeline_mode<synchronous>, transform_indices = @transform_5, window_bounds = array<i64: 3, 24, 16>}, {pipeline_mode = #tpu.pipeline_mode<synchronous>, transform_indices = @transform_6, window_bounds = array<i64: 1, 16>}, {pipeline_mode = #tpu.pipeline_mode<synchronous>, transform_indices = @transform_7, window_bounds = array<i64: 32, 16>}, {pipeline_mode = #tpu.pipeline_mode<synchronous>, transform_indices = @transform_8, window_bounds = array<i64: 1, 16>}, {transform_indices = @transform_9, window_bounds = array<i64: 1, 256, 16>}]} {
    %c0 = arith.constant 0 : index
    %c0_0 = arith.constant 0 : index
    %c0_1 = arith.constant 0 : index
    %0 = vector.load %arg1[%c0, %c0_0, %c0_1] : memref<1x256x8xf32, #tpu.memory_space<vmem>>, vector<1x256x8xf32>
    %1 = vector.shape_cast %0 : vector<1x256x8xf32> to vector<256x8xf32>
    %c0_2 = arith.constant 0 : index
    %c0_3 = arith.constant 0 : index
    %2 = vector.load %arg3[%c0_2, %c0_3] : memref<1x8xf32, #tpu.memory_space<vmem>>, vector<1x8xf32>
    %c0_4 = arith.constant 0 : index
    %c0_5 = arith.constant 0 : index
    %3 = vector.load %arg4[%c0_4, %c0_5] : memref<1x8xf32, #tpu.memory_space<vmem>>, vector<1x8xf32>
    %c0_6 = arith.constant 0 : index
    %c0_7 = arith.constant 0 : index
    %4 = vector.load %arg5[%c0_6, %c0_7] : memref<8x8xf32, #tpu.memory_space<vmem>>, vector<8x8xf32>
    %cst = arith.constant dense<0.000000e+00> : vector<8xf32>
    %5 = vector.multi_reduction <add>, %1, %cst [0] : vector<256x8xf32> to vector<8xf32>
    %6 = vector.shape_cast %5 : vector<8xf32> to vector<1x8xf32>
    %7 = arith.mulf %1, %1 : vector<256x8xf32>
    %cst_8 = arith.constant dense<0.000000e+00> : vector<8xf32>
    %8 = vector.multi_reduction <add>, %7, %cst_8 [0] : vector<256x8xf32> to vector<8xf32>
    %9 = vector.shape_cast %8 : vector<8xf32> to vector<1x8xf32>
    %10 = tpu.concatenate %6, %9 in 0 : vector<1x8xf32>, vector<1x8xf32> -> vector<2x8xf32>
    %cst_9 = arith.constant dense<0.000000e+00> : vector<2x8xf32>
    %11 = tpu.matmul %10, %4, %cst_9 {dimension_numbers = #tpu.dot_dimension_numbers<[1], [0], [0], [1], [0, 0, 1, 1], [], []>} : vector<2x8xf32>, vector<8x8xf32>, vector<2x8xf32> -> vector<2x8xf32>
    %cst_10 = arith.constant 3.906250e-03 : f32
    %12 = vector.broadcast %cst_10 : f32 to vector<2x8xf32>
    %13 = arith.mulf %11, %12 : vector<2x8xf32>
    %14 = vector.extract_strided_slice %13 {offsets = [0, 0], sizes = [1, 8], strides = [1, 1]} : vector<2x8xf32> to vector<1x8xf32>
    %15 = vector.extract_strided_slice %13 {offsets = [1, 0], sizes = [1, 8], strides = [1, 1]} : vector<2x8xf32> to vector<1x8xf32>
    %16 = arith.mulf %14, %14 : vector<1x8xf32>
    %17 = arith.subf %15, %16 : vector<1x8xf32>
    %cst_11 = arith.constant 0.000000e+00 : f32
    %18 = vector.broadcast %cst_11 : f32 to vector<1x8xf32>
    %19 = arith.maximumf %17, %18 : vector<1x8xf32>
    %cst_12 = arith.constant 9.99999974E-6 : f32
    %20 = vector.broadcast %cst_12 : f32 to vector<1x8xf32>
    %21 = arith.addf %19, %20 : vector<1x8xf32>
    %22 = math.rsqrt %21 : vector<1x8xf32>
    %23 = tpu.concatenate %14, %22 in 0 : vector<1x8xf32>, vector<1x8xf32> -> vector<2x8xf32>
    %24 = tpu.transpose %4, [1, 0] : vector<8x8xf32> -> vector<8x8xf32>
    %cst_13 = arith.constant dense<0.000000e+00> : vector<2x8xf32>
    %25 = tpu.matmul %23, %24, %cst_13 {dimension_numbers = #tpu.dot_dimension_numbers<[1], [0], [0], [1], [0, 0, 1, 1], [], []>} : vector<2x8xf32>, vector<8x8xf32>, vector<2x8xf32> -> vector<2x8xf32>
    %26 = vector.extract_strided_slice %25 {offsets = [0, 0], sizes = [1, 8], strides = [1, 1]} : vector<2x8xf32> to vector<1x8xf32>
    %27 = vector.broadcast %26 : vector<1x8xf32> to vector<256x8xf32>
    %28 = arith.subf %1, %27 : vector<256x8xf32>
    %29 = vector.extract_strided_slice %25 {offsets = [1, 0], sizes = [1, 8], strides = [1, 1]} : vector<2x8xf32> to vector<1x8xf32>
    %30 = vector.broadcast %29 : vector<1x8xf32> to vector<256x8xf32>
    %31 = arith.mulf %28, %30 : vector<256x8xf32>
    %32 = vector.broadcast %2 : vector<1x8xf32> to vector<256x8xf32>
    %33 = arith.mulf %31, %32 : vector<256x8xf32>
    %34 = vector.broadcast %3 : vector<1x8xf32> to vector<256x8xf32>
    %35 = arith.addf %33, %34 : vector<256x8xf32>
    %36 = arith.negf %35 : vector<256x8xf32>
    %37 = math.exp %36 : vector<256x8xf32>
    %cst_14 = arith.constant 1.000000e+00 : f32
    %38 = vector.broadcast %cst_14 : f32 to vector<256x8xf32>
    %39 = arith.addf %38, %37 : vector<256x8xf32>
    %40 = arith.divf %38, %39 : vector<256x8xf32>
    %41 = arith.mulf %35, %40 : vector<256x8xf32>
    %cst_15 = arith.constant 0.000000e+00 : bf16
    %42 = vector.broadcast %cst_15 : bf16 to vector<1x18x8xbf16>
    %cst_16 = arith.constant 0.000000e+00 : bf16
    %43 = vector.broadcast %cst_16 : bf16 to vector<18x1x8xbf16>
    %c0_17 = arith.constant 0 : index
    %c0_18 = arith.constant 0 : index
    %c0_19 = arith.constant 0 : index
    %44 = vector.load %arg11[%c0_17, %c0_18, %c0_19] : memref<18x18x8xbf16, #tpu.memory_space<vmem>>, vector<1x18x8xbf16>
    tpu.vector_store %arg11[%c0_17, %c0_18, %c0_19], %42 {strides = array<i32>} : memref<18x18x8xbf16, #tpu.memory_space<vmem>>, vector<1x18x8xbf16>,
    %c17 = arith.constant 17 : index
    %c0_20 = arith.constant 0 : index
    %c0_21 = arith.constant 0 : index
    %45 = vector.load %arg11[%c17, %c0_20, %c0_21] : memref<18x18x8xbf16, #tpu.memory_space<vmem>>, vector<1x18x8xbf16>
    tpu.vector_store %arg11[%c17, %c0_20, %c0_21], %42 {strides = array<i32>} : memref<18x18x8xbf16, #tpu.memory_space<vmem>>, vector<1x18x8xbf16>,
    %c0_22 = arith.constant 0 : index
    %c0_23 = arith.constant 0 : index
    %c0_24 = arith.constant 0 : index
    %46 = vector.load %arg11[%c0_22, %c0_23, %c0_24] : memref<18x18x8xbf16, #tpu.memory_space<vmem>>, vector<18x1x8xbf16>
    tpu.vector_store %arg11[%c0_22, %c0_23, %c0_24], %43 {strides = array<i32>} : memref<18x18x8xbf16, #tpu.memory_space<vmem>>, vector<18x1x8xbf16>,
    %c0_25 = arith.constant 0 : index
    %c17_26 = arith.constant 17 : index
    %c0_27 = arith.constant 0 : index
    %47 = vector.load %arg11[%c0_25, %c17_26, %c0_27] : memref<18x18x8xbf16, #tpu.memory_space<vmem>>, vector<18x1x8xbf16>
    tpu.vector_store %arg11[%c0_25, %c17_26, %c0_27], %43 {strides = array<i32>} : memref<18x18x8xbf16, #tpu.memory_space<vmem>>, vector<18x1x8xbf16>,
    %48 = vector.shape_cast %41 : vector<256x8xf32> to vector<16x16x8xf32>
    %49 = arith.truncf %48 : vector<16x16x8xf32> to vector<16x16x8xbf16>
    %c1 = arith.constant 1 : index
    %c1_28 = arith.constant 1 : index
    %c0_29 = arith.constant 0 : index
    %50 = vector.load %arg11[%c1, %c1_28, %c0_29] : memref<18x18x8xbf16, #tpu.memory_space<vmem>>, vector<16x16x8xbf16>
    tpu.vector_store %arg11[%c1, %c1_28, %c0_29], %49 {strides = array<i32>} : memref<18x18x8xbf16, #tpu.memory_space<vmem>>, vector<16x16x8xbf16>,
    %c0_30 = arith.constant 0 : index
    %c0_31 = arith.constant 0 : index
    %c0_32 = arith.constant 0 : index
    %51 = vector.load %arg11[%c0_30, %c0_31, %c0_32] : memref<18x18x8xbf16, #tpu.memory_space<vmem>>, vector<18x16x8xbf16>
    %c0_33 = arith.constant 0 : index
    %c0_34 = arith.constant 0 : index
    %c0_35 = arith.constant 0 : index
    %52 = vector.load %arg12[%c0_33, %c0_34, %c0_35] : memref<18x16x24xbf16, #tpu.memory_space<vmem>>, vector<18x16x8xbf16>
    tpu.vector_store %arg12[%c0_33, %c0_34, %c0_35], %51 {strides = array<i32>} : memref<18x16x24xbf16, #tpu.memory_space<vmem>>, vector<18x16x8xbf16>,
    %c0_36 = arith.constant 0 : index
    %c1_37 = arith.constant 1 : index
    %c0_38 = arith.constant 0 : index
    %53 = vector.load %arg11[%c0_36, %c1_37, %c0_38] : memref<18x18x8xbf16, #tpu.memory_space<vmem>>, vector<18x16x8xbf16>
    %c0_39 = arith.constant 0 : index
    %c0_40 = arith.constant 0 : index
    %c8 = arith.constant 8 : index
    %54 = vector.load %arg12[%c0_39, %c0_40, %c8] : memref<18x16x24xbf16, #tpu.memory_space<vmem>>, vector<18x16x8xbf16>
    tpu.vector_store %arg12[%c0_39, %c0_40, %c8], %53 {strides = array<i32>} : memref<18x16x24xbf16, #tpu.memory_space<vmem>>, vector<18x16x8xbf16>,
    %c0_41 = arith.constant 0 : index
    %c2 = arith.constant 2 : index
    %c0_42 = arith.constant 0 : index
    %55 = vector.load %arg11[%c0_41, %c2, %c0_42] : memref<18x18x8xbf16, #tpu.memory_space<vmem>>, vector<18x16x8xbf16>
    %c0_43 = arith.constant 0 : index
    %c0_44 = arith.constant 0 : index
    %c16 = arith.constant 16 : index
    %56 = vector.load %arg12[%c0_43, %c0_44, %c16] : memref<18x16x24xbf16, #tpu.memory_space<vmem>>, vector<18x16x8xbf16>
    tpu.vector_store %arg12[%c0_43, %c0_44, %c16], %55 {strides = array<i32>} : memref<18x16x24xbf16, #tpu.memory_space<vmem>>, vector<18x16x8xbf16>,
    %cst_45 = arith.constant 0.000000e+00 : f32
    %57 = vector.broadcast %cst_45 : f32 to vector<256x16xf32>
    %c0_46 = arith.constant 0 : index
    %c0_47 = arith.constant 0 : index
    %c0_48 = arith.constant 0 : index
    %58 = vector.load %arg12[%c0_46, %c0_47, %c0_48] : memref<18x16x24xbf16, #tpu.memory_space<vmem>>, vector<16x16x24xbf16>
    %59 = vector.shape_cast %58 : vector<16x16x24xbf16> to vector<256x24xbf16>
    %c0_49 = arith.constant 0 : index
    %c0_50 = arith.constant 0 : index
    %c0_51 = arith.constant 0 : index
    %60 = vector.load %arg6[%c0_49, %c0_50, %c0_51] : memref<3x24x16xbf16, #tpu.memory_space<vmem>>, vector<1x24x16xbf16>
    %61 = vector.shape_cast %60 : vector<1x24x16xbf16> to vector<24x16xbf16>
    %cst_52 = arith.constant dense<0.000000e+00> : vector<256x16xf32>
    %62 = tpu.matmul %59, %61, %cst_52 {dimension_numbers = #tpu.dot_dimension_numbers<[1], [0], [0], [1], [0, 0, 1, 1], [], []>} : vector<256x24xbf16>, vector<24x16xbf16>, vector<256x16xf32> -> vector<256x16xf32>
    %63 = arith.addf %57, %62 : vector<256x16xf32>
    %c1_53 = arith.constant 1 : index
    %c0_54 = arith.constant 0 : index
    %c0_55 = arith.constant 0 : index
    %64 = vector.load %arg12[%c1_53, %c0_54, %c0_55] : memref<18x16x24xbf16, #tpu.memory_space<vmem>>, vector<16x16x24xbf16>
    %65 = vector.shape_cast %64 : vector<16x16x24xbf16> to vector<256x24xbf16>
    %c1_56 = arith.constant 1 : index
    %c0_57 = arith.constant 0 : index
    %c0_58 = arith.constant 0 : index
    %66 = vector.load %arg6[%c1_56, %c0_57, %c0_58] : memref<3x24x16xbf16, #tpu.memory_space<vmem>>, vector<1x24x16xbf16>
    %67 = vector.shape_cast %66 : vector<1x24x16xbf16> to vector<24x16xbf16>
    %cst_59 = arith.constant dense<0.000000e+00> : vector<256x16xf32>
    %68 = tpu.matmul %65, %67, %cst_59 {dimension_numbers = #tpu.dot_dimension_numbers<[1], [0], [0], [1], [0, 0, 1, 1], [], []>} : vector<256x24xbf16>, vector<24x16xbf16>, vector<256x16xf32> -> vector<256x16xf32>
    %69 = arith.addf %63, %68 : vector<256x16xf32>
    %c2_60 = arith.constant 2 : index
    %c0_61 = arith.constant 0 : index
    %c0_62 = arith.constant 0 : index
    %70 = vector.load %arg12[%c2_60, %c0_61, %c0_62] : memref<18x16x24xbf16, #tpu.memory_space<vmem>>, vector<16x16x24xbf16>
    %71 = vector.shape_cast %70 : vector<16x16x24xbf16> to vector<256x24xbf16>
    %c2_63 = arith.constant 2 : index
    %c0_64 = arith.constant 0 : index
    %c0_65 = arith.constant 0 : index
    %72 = vector.load %arg6[%c2_63, %c0_64, %c0_65] : memref<3x24x16xbf16, #tpu.memory_space<vmem>>, vector<1x24x16xbf16>
    %73 = vector.shape_cast %72 : vector<1x24x16xbf16> to vector<24x16xbf16>
    %cst_66 = arith.constant dense<0.000000e+00> : vector<256x16xf32>
    %74 = tpu.matmul %71, %73, %cst_66 {dimension_numbers = #tpu.dot_dimension_numbers<[1], [0], [0], [1], [0, 0, 1, 1], [], []>} : vector<256x24xbf16>, vector<24x16xbf16>, vector<256x16xf32> -> vector<256x16xf32>
    %75 = arith.addf %69, %74 : vector<256x16xf32>
    %c0_67 = arith.constant 0 : index
    %c0_68 = arith.constant 0 : index
    %c0_69 = arith.constant 0 : index
    %76 = vector.load %arg2[%c0_67, %c0_68, %c0_69] : memref<1x1x32xf32, #tpu.memory_space<vmem>>, vector<1x1x32xf32>
    %77 = vector.shape_cast %76 : vector<1x1x32xf32> to vector<1x32xf32>
    %78 = arith.negf %77 : vector<1x32xf32>
    %79 = math.exp %78 : vector<1x32xf32>
    %cst_70 = arith.constant 1.000000e+00 : f32
    %80 = vector.broadcast %cst_70 : f32 to vector<1x32xf32>
    %81 = arith.addf %80, %79 : vector<1x32xf32>
    %82 = arith.divf %80, %81 : vector<1x32xf32>
    %83 = arith.mulf %77, %82 : vector<1x32xf32>
    %84 = arith.truncf %83 : vector<1x32xf32> to vector<1x32xbf16>
    %c0_71 = arith.constant 0 : index
    %c0_72 = arith.constant 0 : index
    %85 = vector.load %arg8[%c0_71, %c0_72] : memref<32x16xbf16, #tpu.memory_space<vmem>>, vector<32x16xbf16>
    %cst_73 = arith.constant dense<0.000000e+00> : vector<1x16xf32>
    %86 = tpu.matmul %84, %85, %cst_73 {dimension_numbers = #tpu.dot_dimension_numbers<[1], [0], [0], [1], [0, 0, 1, 1], [], []>} : vector<1x32xbf16>, vector<32x16xbf16>, vector<1x16xf32> -> vector<1x16xf32>
    %c0_74 = arith.constant 0 : index
    %c0_75 = arith.constant 0 : index
    %87 = vector.load %arg9[%c0_74, %c0_75] : memref<1x16xf32, #tpu.memory_space<vmem>>, vector<1x16xf32>
    %88 = arith.addf %86, %87 : vector<1x16xf32>
    %c0_76 = arith.constant 0 : index
    %c0_77 = arith.constant 0 : index
    %89 = vector.load %arg7[%c0_76, %c0_77] : memref<1x16xf32, #tpu.memory_space<vmem>>, vector<1x16xf32>
    %90 = vector.broadcast %89 : vector<1x16xf32> to vector<256x16xf32>
    %91 = arith.addf %75, %90 : vector<256x16xf32>
    %92 = vector.broadcast %88 : vector<1x16xf32> to vector<256x16xf32>
    %93 = arith.addf %91, %92 : vector<256x16xf32>
    %94 = arith.truncf %93 : vector<256x16xf32> to vector<256x16xbf16>
    %c0_78 = arith.constant 0 : index
    %c0_79 = arith.constant 0 : index
    %c0_80 = arith.constant 0 : index
    %95 = vector.load %arg10[%c0_78, %c0_79, %c0_80] : memref<1x256x16xbf16, #tpu.memory_space<vmem>>, vector<1x256x16xbf16>
    %96 = vector.shape_cast %95 : vector<1x256x16xbf16> to vector<256x16xbf16>
    %97 = vector.shape_cast %94 : vector<256x16xbf16> to vector<1x256x16xbf16>
    tpu.vector_store %arg10[%c0_78, %c0_79, %c0_80], %97 {strides = array<i32>} : memref<1x256x16xbf16, #tpu.memory_space<vmem>>, vector<1x256x16xbf16>,
    return
  }
  func.func @transform_0(%arg0: i32) -> (i32, i32, i32) {
    %c0_i32 = arith.constant 0 : i32
    %c0_i32_0 = arith.constant 0 : i32
    %c0_i32_1 = arith.constant 0 : i32
    return %arg0, %c0_i32, %c0_i32_0 : i32, i32, i32
  }
  func.func @transform_1(%arg0: i32) -> (i32, i32, i32) {
    %c0_i32 = arith.constant 0 : i32
    %c0_i32_0 = arith.constant 0 : i32
    %c0_i32_1 = arith.constant 0 : i32
    return %arg0, %c0_i32, %c0_i32_0 : i32, i32, i32
  }
  func.func @transform_2(%arg0: i32) -> (i32, i32) {
    %c0_i32 = arith.constant 0 : i32
    %c0_i32_0 = arith.constant 0 : i32
    %c0_i32_1 = arith.constant 0 : i32
    return %c0_i32, %c0_i32_0 : i32, i32
  }
  func.func @transform_3(%arg0: i32) -> (i32, i32) {
    %c0_i32 = arith.constant 0 : i32
    %c0_i32_0 = arith.constant 0 : i32
    %c0_i32_1 = arith.constant 0 : i32
    return %c0_i32, %c0_i32_0 : i32, i32
  }
  func.func @transform_4(%arg0: i32) -> (i32, i32) {
    %c0_i32 = arith.constant 0 : i32
    %c0_i32_0 = arith.constant 0 : i32
    %c0_i32_1 = arith.constant 0 : i32
    return %c0_i32, %c0_i32_0 : i32, i32
  }
  func.func @transform_5(%arg0: i32) -> (i32, i32, i32) {
    %c0_i32 = arith.constant 0 : i32
    %c0_i32_0 = arith.constant 0 : i32
    %c0_i32_1 = arith.constant 0 : i32
    %c0_i32_2 = arith.constant 0 : i32
    return %c0_i32, %c0_i32_0, %c0_i32_1 : i32, i32, i32
  }
  func.func @transform_6(%arg0: i32) -> (i32, i32) {
    %c0_i32 = arith.constant 0 : i32
    %c0_i32_0 = arith.constant 0 : i32
    %c0_i32_1 = arith.constant 0 : i32
    return %c0_i32, %c0_i32_0 : i32, i32
  }
  func.func @transform_7(%arg0: i32) -> (i32, i32) {
    %c0_i32 = arith.constant 0 : i32
    %c0_i32_0 = arith.constant 0 : i32
    %c0_i32_1 = arith.constant 0 : i32
    return %c0_i32, %c0_i32_0 : i32, i32
  }
  func.func @transform_8(%arg0: i32) -> (i32, i32) {
    %c0_i32 = arith.constant 0 : i32
    %c0_i32_0 = arith.constant 0 : i32
    %c0_i32_1 = arith.constant 0 : i32
    return %c0_i32, %c0_i32_0 : i32, i32
  }
  func.func @transform_9(%arg0: i32) -> (i32, i32, i32) {
    %c0_i32 = arith.constant 0 : i32
    %c0_i32_0 = arith.constant 0 : i32
    %c0_i32_1 = arith.constant 0 : i32
    return %arg0, %c0_i32, %c0_i32_0 : i32, i32, i32
  }
}

</mosaic_0001>

<llo_original>
// kernel: tpu_custom_call.1
$region0: #{tpu_custom_call.1}
  #allocation0 [shape = 'u32[]', space=smem, size = 0x4, offset = 0x4, fixed_abs, tag = 'smem constant byte address 0x4 - core index']
  #allocation1 [shape = 'u32[144,128]{1,0:T(1,128)}', space=vmem, size = 0x12000, scoped, tag = 'internal scratch']
  %s0 = inlined_call_operand.hbm [shape: f32[8,128], index: 0, kind: input, shape index: {}]
  %s1 = inlined_call_operand.hbm [shape: f32[8,128], index: 1, kind: input, shape index: {}]
  %s2 = inlined_call_operand.hbm [shape: f32[8,128], index: 2, kind: output, shape index: {}]
  %s3 = sld [smem:[#allocation0]]
  $region26: #{tpu_custom_call.1} parent=0
    _
  %s5 = ssub.s32 1, %s3
  %s6 = scalar_select 0, %s5, %s3
  $region1: #{tpu_custom_call.1} parent=0
    #allocation2 [shape = 'u8[4096]{0}', space=vmem, size = 0x1000, scoped, tag = 'input window, operand 0, single buffered']
    #allocation3 [shape = 's32[1]{0}', space=sflag, size = 0x4, scoped, tag = 'scoped memory for tpu_custom_call.1']
    #allocation4 [shape = 's32[1]{0}', space=sflag, size = 0x4, scoped, tag = 'scoped memory for tpu_custom_call.1']
    #allocation5 [shape = 'u8[4096]{0}', space=vmem, size = 0x1000, scoped, tag = 'input window, operand 1, single buffered']
    #allocation6 [shape = 's32[1]{0}', space=sflag, size = 0x4, scoped, tag = 'scoped memory for tpu_custom_call.1']
    #allocation7 [shape = 'u8[4096]{0}', space=vmem, size = 0x1000, scoped, tag = 'output window, operand 0, single buffered']
    %7 = vsyncpa [#allocation3], 0
    %8 = vsyncpa [#allocation6], 0
    %9 = vsyncpa [#allocation4], 0
    // Predicated region
    $region2: #{tpu_custom_call.1} parent=1 // pred_check
      _
    $region3: #{tpu_custom_call.1} parent=1 // pred_check_branch
      %11 = sbr.rel (0) target = $region5
    $region4: #{tpu_custom_call.1} parent=1 // pred_region
      %s13 = ssub.s32 128, 128
      %14 = vsyncadd [#allocation3], %s13
      %s16 = sshll.u32 [#allocation2], 4
      %s17 = int_to_ptr.vmem [resolvable:$true] %s16
      %19 = dma.hbm_to_vmem [thread:$0]  %s0, 128, %s17, [#allocation3]
    $region5: #{tpu_custom_call.1} parent=1 // pred_fallthru
      _
    // Predicated region
    $region6: #{tpu_custom_call.1} parent=1 // pred_check
      _
    $region7: #{tpu_custom_call.1} parent=1 // pred_check_branch
      %21 = sbr.rel (0) target = $region9
    $region8: #{tpu_custom_call.1} parent=1 // pred_region
      %s23 = ssub.s32 128, 128
      %24 = vsyncadd [#allocation6], %s23
      %s26 = sshll.u32 [#allocation5], 4
      %s27 = int_to_ptr.vmem [resolvable:$true] %s26
      %29 = dma.hbm_to_vmem [thread:$0]  %s1, 128, %s27, [#allocation6]
    $region9: #{tpu_custom_call.1} parent=1 // pred_fallthru
      _
    // Predicated region
    $region10: #{tpu_custom_call.1} parent=1 // pred_check
      _
    $region11: #{tpu_custom_call.1} parent=1 // pred_check_branch
      %31 = sbr.rel (0) target = $region13
    $region12: #{tpu_custom_call.1} parent=1 // pred_region
      %32 = dma.done [#allocation3], 128
    $region13: #{tpu_custom_call.1} parent=1 // pred_fallthru
      _
    // Predicated region
    $region14: #{tpu_custom_call.1} parent=1 // pred_check
      _
    $region15: #{tpu_custom_call.1} parent=1 // pred_check_branch
      %34 = sbr.rel (0) target = $region17
    $region16: #{tpu_custom_call.1} parent=1 // pred_region
      %35 = dma.done [#allocation6], 128
    $region17: #{tpu_custom_call.1} parent=1 // pred_fallthru
      _
    %v36 = vld [vmem:[#allocation2] sm:$0xff]
    %v37 = vld [vmem:[#allocation5] sm:$0xff]
    %v38 = vadd.f32 %v36, %v37
    %39 = vst [vmem:[#allocation7] sm:$0xff] %v38
    // Predicated region
    $region18: #{tpu_custom_call.1} parent=1 // pred_check
      _
    $region19: #{tpu_custom_call.1} parent=1 // pred_check_branch
      %41 = sbr.rel (0) target = $region21
    $region20: #{tpu_custom_call.1} parent=1 // pred_region
      %s43 = ssub.s32 128, 128
      %44 = vsyncadd [#allocation4], %s43
      %s46 = sshll.u32 [#allocation7], 4
      %s47 = int_to_ptr.vmem [resolvable:$true] %s46
      %49 = dma.vmem_to_hbm [thread:$0]  %s47, 128, %s2, [#allocation4]
    $region21: #{tpu_custom_call.1} parent=1 // pred_fallthru
      _
    // Predicated region
    $region22: #{tpu_custom_call.1} parent=1 // pred_check
      _
    $region23: #{tpu_custom_call.1} parent=1 // pred_check_branch
      %51 = sbr.rel (0) target = $region25
    $region24: #{tpu_custom_call.1} parent=1 // pred_region
      %52 = dma.done [#allocation4], 128
    $region25: #{tpu_custom_call.1} parent=1 // pred_fallthru
      _
    %53 = vsyncpa [#allocation3], 1
    %54 = vsyncpa [#allocation6], 1
    %55 = vsyncpa [#allocation4], 1

// kernel: tpu_custom_call.1
$region0: #{tpu_custom_call.1}
  #allocation0 [shape = 'u32[]', space=smem, size = 0x4, offset = 0x4, fixed_abs, tag = 'smem constant byte address 0x4 - core index']
  #allocation1 [shape = 'u32[144,128]{1,0:T(1,128)}', space=vmem, size = 0x12000, scoped, tag = 'internal scratch']
  #allocation2 [shape = 'bf16[18,18,8]{2,1,0:T(8,128)(2,1)}', space=vmem, size = 0x1b000, scoped, tag = 'scratch operand']
  #allocation3 [shape = 'bf16[18,16,24]{2,1,0:T(8,128)(2,1)}', space=vmem, size = 0x12000, scoped, tag = 'scratch operand']
  %s0 = inlined_call_operand.vmem [shape: f32[2,256,8], index: 0, kind: input, shape index: {}]
  %s1 = inlined_call_operand.vmem [shape: f32[2,1,32], index: 1, kind: input, shape index: {}]
  %s2 = inlined_call_operand.vmem [shape: f32[1,8], index: 2, kind: input, shape index: {}]
  %s3 = inlined_call_operand.vmem [shape: f32[1,8], index: 3, kind: input, shape index: {}]
  %s4 = inlined_call_operand.vmem [shape: f32[8,8], index: 4, kind: input, shape index: {}]
  %s5 = inlined_call_operand.vmem [shape: bf16[3,24,16], index: 5, kind: input, shape index: {}]
  %s6 = inlined_call_operand.vmem [shape: f32[1,16], index: 6, kind: input, shape index: {}]
  %s7 = inlined_call_operand.vmem [shape: bf16[32,16], index: 7, kind: input, shape index: {}]
  %s8 = inlined_call_operand.vmem [shape: f32[1,16], index: 8, kind: input, shape index: {}]
  %s9 = inlined_call_operand.vmem [shape: bf16[2,256,16], index: 9, kind: output, shape index: {}]
  %s10 = sld [smem:[#allocation0]]
  $region69: #{tpu_custom_call.1} parent=0
    _
  %s12 = ssub.s32 1, %s10
  %s13 = scalar_select 0, %s12, %s10
  loop: start=0, step=1, limit=4
  $region2: #{tpu_custom_call.1} parent=0 // loop_pre_header
    _
  $region3: #{tpu_custom_call.1} parent=0 // loop_header
    %s15 = sphi 0, %s19
    %p16 = scmp.ge.s32.totalorder %s15, 4
    %s25 = sphi 0, %s27
    %s28 = sphi 0, %s25
    %s29 = sphi 0, %s28
    %s45 = sphi 0, %s29
    %s51 = sphi 0, %s53
    %s54 = sphi 0, %s51
    %s55 = sphi 0, %s54
    %s71 = sphi 0, %s55
    %s75 = sphi 0, %s75
    %s77 = sphi 0, %s75
    %s78 = sphi 0, %s77
    %s92 = sphi 0, %s78
    %s96 = sphi 0, %s96
    %s98 = sphi 0, %s96
    %s99 = sphi 0, %s98
    %s113 = sphi 0, %s99
    %s117 = sphi 0, %s117
    %s119 = sphi 0, %s117
    %s120 = sphi 0, %s119
    %s134 = sphi 0, %s120
    %s138 = sphi 0, %s138
    %s140 = sphi 0, %s138
    %s141 = sphi 0, %s140
    %s155 = sphi 0, %s141
    %s159 = sphi 0, %s159
    %s161 = sphi 0, %s159
    %s162 = sphi 0, %s161
    %s176 = sphi 0, %s162
    %s180 = sphi 0, %s180
    %s182 = sphi 0, %s180
    %s183 = sphi 0, %s182
    %s197 = sphi 0, %s183
    %s201 = sphi 0, %s201
    %s203 = sphi 0, %s201
    %s204 = sphi 0, %s203
    %s218 = sphi 0, %s204
    %s224 = sphi 0, %s226
    %s227 = sphi 0, %s224
    %s228 = sphi 0, %s227
    %s244 = sphi 0, %s228
  $region4: #{tpu_custom_call.1} parent=0 // loop_header_branch
    %18 = sbr.rel (%p16) target = $region8
  $region5: #{tpu_custom_call.1} parent=0 // loop_body
    %s20 = ssub.s32 %s15, 1
    %s21 = ssub.s32 %s15, 2
    %s22 = sadd.s32 %s15, 1
    %s23 = ssub.s32 %s15, %s22
    %p24 = scmp.eq.s32.totalorder %s23, 0
    %s26 = sadd.s32 %s25, 1
    %s27 = scalar_select %p24, %s25, %s26
    %p30 = pneg %p24
    %p31 = scmp.eq.s32.totalorder %s15, 1
    %p32 = por %p30, %p31
    %p33 = scmp.ne.s32.totalorder %s25, %s28
    %p34 = scmp.eq.s32.totalorder %s15, 0
    %p35 = por %p33, %p34
    %p36 = scmp.ne.s32.totalorder %s25, %s28
    %p37 = scmp.eq.s32.totalorder %s20, 1
    %p38 = por %p36, %p37
    %p39 = scmp.ne.s32.totalorder %s28, %s29
    %p40 = scmp.eq.s32.totalorder %s20, 0
    %p41 = por %p39, %p40
    %p42 = scmp.ne.s32.totalorder %s28, %s29
    %p43 = scmp.eq.s32.totalorder %s21, 1
    %p44 = por %p42, %p43
    %p46 = scmp.ne.s32.totalorder %s29, %s45
    %p47 = scmp.eq.s32.totalorder %s21, 0
    %p48 = por %p46, %p47
    %s49 = ssub.s32 %s15, %s22
    %p50 = scmp.eq.s32.totalorder %s49, 0
    %s52 = sadd.s32 %s51, 1
    %s53 = scalar_select %p50, %s51, %s52
    %p56 = pneg %p50
    %p57 = scmp.eq.s32.totalorder %s15, 1
    %p58 = por %p56, %p57
    %p59 = scmp.ne.s32.totalorder %s51, %s54
    %p60 = scmp.eq.s32.totalorder %s15, 0
    %p61 = por %p59, %p60
    %p62 = scmp.ne.s32.totalorder %s51, %s54
    %p63 = scmp.eq.s32.totalorder %s20, 1
    %p64 = por %p62, %p63
    %p65 = scmp.ne.s32.totalorder %s54, %s55
    %p66 = scmp.eq.s32.totalorder %s20, 0
    %p67 = por %p65, %p66
    %p68 = scmp.ne.s32.totalorder %s54, %s55
    %p69 = scmp.eq.s32.totalorder %s21, 1
    %p70 = por %p68, %p69
    %p72 = scmp.ne.s32.totalorder %s55, %s71
    %p73 = scmp.eq.s32.totalorder %s21, 0
    %p74 = por %p72, %p73
    %s76 = sadd.s32 %s75, 1
    %p79 = scmp.eq.s32.totalorder %s15, 1
    %p80 = scmp.ne.s32.totalorder %s75, %s77
    %p81 = scmp.eq.s32.totalorder %s15, 0
    %p82 = por %p80, %p81
    %p83 = scmp.ne.s32.totalorder %s75, %s77
    %p84 = scmp.eq.s32.totalorder %s20, 1
    %p85 = por %p83, %p84
    %p86 = scmp.ne.s32.totalorder %s77, %s78
    %p87 = scmp.eq.s32.totalorder %s20, 0
    %p88 = por %p86, %p87
    %p89 = scmp.ne.s32.totalorder %s77, %s78
    %p90 = scmp.eq.s32.totalorder %s21, 1
    %p91 = por %p89, %p90
    %p93 = scmp.ne.s32.totalorder %s78, %s92
    %p94 = scmp.eq.s32.totalorder %s21, 0
    %p95 = por %p93, %p94
    %s97 = sadd.s32 %s96, 1
    %p100 = scmp.eq.s32.totalorder %s15, 1
    %p101 = scmp.ne.s32.totalorder %s96, %s98
    %p102 = scmp.eq.s32.totalorder %s15, 0
    %p103 = por %p101, %p102
    %p104 = scmp.ne.s32.totalorder %s96, %s98
    %p105 = scmp.eq.s32.totalorder %s20, 1
    %p106 = por %p104, %p105
    %p107 = scmp.ne.s32.totalorder %s98, %s99
    %p108 = scmp.eq.s32.totalorder %s20, 0
    %p109 = por %p107, %p108
    %p110 = scmp.ne.s32.totalorder %s98, %s99
    %p111 = scmp.eq.s32.totalorder %s21, 1
    %p112 = por %p110, %p111
    %p114 = scmp.ne.s32.totalorder %s99, %s113
    %p115 = scmp.eq.s32.totalorder %s21, 0
    %p116 = por %p114, %p115
    %s118 = sadd.s32 %s117, 1
    %p121 = scmp.eq.s32.totalorder %s15, 1
    %p122 = scmp.ne.s32.totalorder %s117, %s119
    %p123 = scmp.eq.s32.totalorder %s15, 0
    %p124 = por %p122, %p123
    %p125 = scmp.ne.s32.totalorder %s117, %s119
    %p126 = scmp.eq.s32.totalorder %s20, 1
    %p127 = por %p125, %p126
    %p128 = scmp.ne.s32.totalorder %s119, %s120
    %p129 = scmp.eq.s32.totalorder %s20, 0
    %p130 = por %p128, %p129
    %p131 = scmp.ne.s32.totalorder %s119, %s120
    %p132 = scmp.eq.s32.totalorder %s21, 1
    %p133 = por %p131, %p132
    %p135 = scmp.ne.s32.totalorder %s120, %s134
    %p136 = scmp.eq.s32.totalorder %s21, 0
    %p137 = por %p135, %p136
    %s139 = sadd.s32 %s138, 1
    %p142 = scmp.eq.s32.totalorder %s15, 1
    %p143 = scmp.ne.s32.totalorder %s138, %s140
    %p144 = scmp.eq.s32.totalorder %s15, 0
    %p145 = por %p143, %p144
    %p146 = scmp.ne.s32.totalorder %s138, %s140
    %p147 = scmp.eq.s32.totalorder %s20, 1
    %p148 = por %p146, %p147
    %p149 = scmp.ne.s32.totalorder %s140, %s141
    %p150 = scmp.eq.s32.totalorder %s20, 0
    %p151 = por %p149, %p150
    %p152 = scmp.ne.s32.totalorder %s140, %s141
    %p153 = scmp.eq.s32.totalorder %s21, 1
    %p154 = por %p152, %p153
    %p156 = scmp.ne.s32.totalorder %s141, %s155
    %p157 = scmp.eq.s32.totalorder %s21, 0
    %p158 = por %p156, %p157
    %s160 = sadd.s32 %s159, 1
    %p163 = scmp.eq.s32.totalorder %s15, 1
    %p164 = scmp.ne.s32.totalorder %s159, %s161
    %p165 = scmp.eq.s32.totalorder %s15, 0
    %p166 = por %p164, %p165
    %p167 = scmp.ne.s32.totalorder %s159, %s161
    %p168 = scmp.eq.s32.totalorder %s20, 1
    %p169 = por %p167, %p168
    %p170 = scmp.ne.s32.totalorder %s161, %s162
    %p171 = scmp.eq.s32.totalorder %s20, 0
    %p172 = por %p170, %p171
    %p173 = scmp.ne.s32.totalorder %s161, %s162
    %p174 = scmp.eq.s32.totalorder %s21, 1
    %p175 = por %p173, %p174
    %p177 = scmp.ne.s32.totalorder %s162, %s176
    %p178 = scmp.eq.s32.totalorder %s21, 0
    %p179 = por %p177, %p178
    %s181 = sadd.s32 %s180, 1
    %p184 = scmp.eq.s32.totalorder %s15, 1
    %p185 = scmp.ne.s32.totalorder %s180, %s182
    %p186 = scmp.eq.s32.totalorder %s15, 0
    %p187 = por %p185, %p186
    %p188 = scmp.ne.s32.totalorder %s180, %s182
    %p189 = scmp.eq.s32.totalorder %s20, 1
    %p190 = por %p188, %p189
    %p191 = scmp.ne.s32.totalorder %s182, %s183
    %p192 = scmp.eq.s32.totalorder %s20, 0
    %p193 = por %p191, %p192
    %p194 = scmp.ne.s32.totalorder %s182, %s183
    %p195 = scmp.eq.s32.totalorder %s21, 1
    %p196 = por %p194, %p195
    %p198 = scmp.ne.s32.totalorder %s183, %s197
    %p199 = scmp.eq.s32.totalorder %s21, 0
    %p200 = por %p198, %p199
    %s202 = sadd.s32 %s201, 1
    %p205 = scmp.eq.s32.totalorder %s15, 1
    %p206 = scmp.ne.s32.totalorder %s201, %s203
    %p207 = scmp.eq.s32.totalorder %s15, 0
    %p208 = por %p206, %p207
    %p209 = scmp.ne.s32.totalorder %s201, %s203
    %p210 = scmp.eq.s32.totalorder %s20, 1
    %p211 = por %p209, %p210
    %p212 = scmp.ne.s32.totalorder %s203, %s204
    %p213 = scmp.eq.s32.totalorder %s20, 0
    %p214 = por %p212, %p213
    %p215 = scmp.ne.s32.totalorder %s203, %s204
    %p216 = scmp.eq.s32.totalorder %s21, 1
    %p217 = por %p215, %p216
    %p219 = scmp.ne.s32.totalorder %s204, %s218
    %p220 = scmp.eq.s32.totalorder %s21, 0
    %p221 = por %p219, %p220
    %s222 = ssub.s32 %s15, %s22
    %p223 = scmp.eq.s32.totalorder %s222, 0
    %s225 = sadd.s32 %s224, 1
    %s226 = scalar_select %p223, %s224, %s225
    %p229 = pneg %p223
    %p230 = scmp.eq.s32.totalorder %s15, 1
    %p231 = por %p229, %p230
    %p232 = scmp.ne.s32.totalorder %s224, %s227
    %p233 = scmp.eq.s32.totalorder %s15, 0
    %p234 = por %p232, %p233
    %p235 = scmp.ne.s32.totalorder %s224, %s227
    %p236 = scmp.eq.s32.totalorder %s20, 1
    %p237 = por %p235, %p236
    %p238 = scmp.ne.s32.totalorder %s227, %s228
    %p239 = scmp.eq.s32.totalorder %s20, 0
    %p240 = por %p238, %p239
    %p241 = scmp.ne.s32.totalorder %s227, %s228
    %p242 = scmp.eq.s32.totalorder %s21, 1
    %p243 = por %p241, %p242
    %p245 = scmp.ne.s32.totalorder %s228, %s244
    %p246 = scmp.eq.s32.totalorder %s21, 0
    %p247 = por %p245, %p246
    %p248 = scmp.le.s32.totalorder 1, %s15
    %p249 = scmp.lt.s32.totalorder %s15, 3
    %p250 = pnand %p248, %p249
    %p251 = pneg %p250
    // Predicated region
    $region9: #{tpu_custom_call.1} parent=5 // pred_check
      _
    $region10: #{tpu_custom_call.1} parent=5 // pred_check_branch
      %253 = sbr.rel (%p250) target = $region12
    $region11: #{tpu_custom_call.1} parent=5 // pred_region
      %s254 = ssub.s32 %s15, 1
      // Predicated region
      $region13: #{tpu_custom_call.1} parent=11 // pred_check
        %p255 = pneg %p88
      $region14: #{tpu_custom_call.1} parent=11 // pred_check_branch
        %257 = sbr.rel (%p255) target = $region16
      $region15: #{tpu_custom_call.1} parent=11 // pred_region
        _
      $region16: #{tpu_custom_call.1} parent=11 // pred_fallthru
        _
      // Predicated region
      $region17: #{tpu_custom_call.1} parent=11 // pred_check
        %p258 = pneg %p109
      $region18: #{tpu_custom_call.1} parent=11 // pred_check_branch
        %260 = sbr.rel (%p258) target = $region20
      $region19: #{tpu_custom_call.1} parent=11 // pred_region
        _
      $region20: #{tpu_custom_call.1} parent=11 // pred_fallthru
        _
      // Predicated region
      $region21: #{tpu_custom_call.1} parent=11 // pred_check
        %p261 = pneg %p130
      $region22: #{tpu_custom_call.1} parent=11 // pred_check_branch
        %263 = sbr.rel (%p261) target = $region24
      $region23: #{tpu_custom_call.1} parent=11 // pred_region
        _
      $region24: #{tpu_custom_call.1} parent=11 // pred_fallthru
        _
      // Predicated region
      $region25: #{tpu_custom_call.1} parent=11 // pred_check
        %p264 = pneg %p151
      $region26: #{tpu_custom_call.1} parent=11 // pred_check_branch
        %266 = sbr.rel (%p264) target = $region28
      $region27: #{tpu_custom_call.1} parent=11 // pred_region
        _
      $region28: #{tpu_custom_call.1} parent=11 // pred_fallthru
        _
      // Predicated region
      $region29: #{tpu_custom_call.1} parent=11 // pred_check
        %p267 = pneg %p172
      $region30: #{tpu_custom_call.1} parent=11 // pred_check_branch
        %269 = sbr.rel (%p267) target = $region32
      $region31: #{tpu_custom_call.1} parent=11 // pred_region
        _
      $region32: #{tpu_custom_call.1} parent=11 // pred_fallthru
        _
      // Predicated region
      $region33: #{tpu_custom_call.1} parent=11 // pred_check
        %p270 = pneg %p193
      $region34: #{tpu_custom_call.1} parent=11 // pred_check_branch
        %272 = sbr.rel (%p270) target = $region36
      $region35: #{tpu_custom_call.1} parent=11 // pred_region
        _
      $region36: #{tpu_custom_call.1} parent=11 // pred_fallthru
        _
      // Predicated region
      $region37: #{tpu_custom_call.1} parent=11 // pred_check
        %p273 = pneg %p214
      $region38: #{tpu_custom_call.1} parent=11 // pred_check_branch
        %275 = sbr.rel (%p273) target = $region40
      $region39: #{tpu_custom_call.1} parent=11 // pred_region
        _
      $region40: #{tpu_custom_call.1} parent=11 // pred_fallthru
        _
    $region12: #{tpu_custom_call.1} parent=5 // pred_fallthru
      _
    %p276 = scmp.lt.s32.totalorder %s15, 2
    // Predicated region
    $region41: #{tpu_custom_call.1} parent=5 // pred_check
      %p277 = pneg %p276
    $region42: #{tpu_custom_call.1} parent=5 // pred_check_branch
      %279 = sbr.rel (%p277) target = $region44
    $region43: #{tpu_custom_call.1} parent=5 // pred_region
      // Predicated region
      $region45: #{tpu_custom_call.1} parent=43 // pred_check
        %p280 = pneg %p35
      $region46: #{tpu_custom_call.1} parent=43 // pred_check_branch
        %282 = sbr.rel (%p280) target = $region48
      $region47: #{tpu_custom_call.1} parent=43 // pred_region
        %p283 = scmp.lt.s32.totalorder %s15, 1
        %s284 = scalar_select %p283, %s15, 1
        %s285 = smul.addr %s284, 32
        %s286 = smul.addr %s285, 8
        %s287 = scalar_lea.vmem %s0, %s286
      $region48: #{tpu_custom_call.1} parent=43 // pred_fallthru
        _
      // Predicated region
      $region49: #{tpu_custom_call.1} parent=43 // pred_check
        %p288 = pneg %p61
      $region50: #{tpu_custom_call.1} parent=43 // pred_check_branch
        %290 = sbr.rel (%p288) target = $region52
      $region51: #{tpu_custom_call.1} parent=43 // pred_region
        %p291 = scmp.lt.s32.totalorder %s15, 1
        %s292 = scalar_select %p291, %s15, 1
        %s293 = scalar_lea.vmem %s1, %s292
      $region52: #{tpu_custom_call.1} parent=43 // pred_fallthru
        _
    $region44: #{tpu_custom_call.1} parent=5 // pred_fallthru
      _
    %p294 = scmp.le.s32.totalorder 1, %s15
    %p295 = scmp.lt.s32.totalorder %s15, 3
    %p296 = pnand %p294, %p295
    %p297 = pneg %p296
    // Predicated region
    $region53: #{tpu_custom_call.1} parent=5 // pred_check
      _
    $region54: #{tpu_custom_call.1} parent=5 // pred_check_branch
      %299 = sbr.rel (%p296) target = $region56
    $region55: #{tpu_custom_call.1} parent=5 // pred_region
      %s300 = ssub.s32 %s15, 1
      %p301 = scmp.lt.s32.totalorder %s20, 1
      %s302 = scalar_select %p301, %s20, 1
      %s303 = smul.addr %s302, 32
      %s304 = smul.addr %s303, 8
      %s305 = scalar_lea.vmem %s0, %s304
      %p306 = pneg %p41
      %p307 = pneg %p38
      %p308 = scmp.lt.s32.totalorder %s20, 1
      %s309 = scalar_select %p308, %s20, 1
      %s310 = scalar_lea.vmem %s1, %s309
      %p311 = pneg %p67
      %p312 = pneg %p64
      %p313 = pneg %p88
      %p314 = pneg %p85
      %p315 = pneg %p109
      %p316 = pneg %p106
      %p317 = pneg %p130
      %p318 = pneg %p127
      %p319 = pneg %p151
      %p320 = pneg %p148
      %p321 = pneg %p172
      %p322 = pneg %p169
      %p323 = pneg %p193
      %p324 = pneg %p190
      %p325 = pneg %p214
      %p326 = pneg %p211
      %p327 = pneg %p240
      %p328 = pneg %p237
      %p329 = scmp.lt.s32.totalorder %s20, 1
      %s330 = scalar_select %p329, %s20, 1
      %s331 = smul.addr %s330, 32
      %s332 = smul.addr %s331, 4
      %s333 = scalar_lea.vmem %s9, %s332
      %p334 = scmp.lt.s32.totalorder %s20, 1
      %s335 = scalar_select %p334, %s20, 1
      %s336 = smul.addr %s335, 32
      %s337 = smul.addr %s336, 8
      %s338 = scalar_lea.vmem %s0, %s337
      %p339 = scmp.lt.s32.totalorder %s20, 1
      %s340 = scalar_select %p339, %s20, 1
      %s341 = scalar_lea.vmem %s1, %s340
      %p342 = scmp.lt.s32.totalorder %s20, 1
      %s343 = scalar_select %p342, %s20, 1
      %s344 = smul.addr %s343, 32
      %s345 = smul.addr %s344, 4
      %s346 = scalar_lea.vmem %s9, %s345
      %v348 = vld [vmem:[%s338] sm:$0xff]
      %v349 = vld [vmem:[%s338 + $0x8] sm:$0xff]
      %v350 = vld [vmem:[%s338 + $0x10] sm:$0xff]
      %v351 = vld [vmem:[%s338 + $0x18] sm:$0xff]
      %v352 = vld [vmem:[%s338 + $0x20] sm:$0xff]
      %v353 = vld [vmem:[%s338 + $0x28] sm:$0xff]
      %v354 = vld [vmem:[%s338 + $0x30] sm:$0xff]
      %v355 = vld [vmem:[%s338 + $0x38] sm:$0xff]
      %v356 = vld [vmem:[%s338 + $0x40] sm:$0xff]
      %v357 = vld [vmem:[%s338 + $0x48] sm:$0xff]
      %v358 = vld [vmem:[%s338 + $0x50] sm:$0xff]
      %v359 = vld [vmem:[%s338 + $0x58] sm:$0xff]
      %v360 = vld [vmem:[%s338 + $0x60] sm:$0xff]
      %v361 = vld [vmem:[%s338 + $0x68] sm:$0xff]
      %v362 = vld [vmem:[%s338 + $0x70] sm:$0xff]
      %v363 = vld [vmem:[%s338 + $0x78] sm:$0xff]
      %v364 = vld [vmem:[%s338 + $0x80] sm:$0xff]
      %v365 = vld [vmem:[%s338 + $0x88] sm:$0xff]
      %v366 = vld [vmem:[%s338 + $0x90] sm:$0xff]
      %v367 = vld [vmem:[%s338 + $0x98] sm:$0xff]
      %v368 = vld [vmem:[%s338 + $0xa0] sm:$0xff]
      %v369 = vld [vmem:[%s338 + $0xa8] sm:$0xff]
      %v370 = vld [vmem:[%s338 + $0xb0] sm:$0xff]
      %v371 = vld [vmem:[%s338 + $0xb8] sm:$0xff]
      %v372 = vld [vmem:[%s338 + $0xc0] sm:$0xff]
      %v373 = vld [vmem:[%s338 + $0xc8] sm:$0xff]
      %v374 = vld [vmem:[%s338 + $0xd0] sm:$0xff]
      %v375 = vld [vmem:[%s338 + $0xd8] sm:$0xff]
      %v376 = vld [vmem:[%s338 + $0xe0] sm:$0xff]
      %v377 = vld [vmem:[%s338 + $0xe8] sm:$0xff]
      %v378 = vld [vmem:[%s338 + $0xf0] sm:$0xff]
      %v379 = vld [vmem:[%s338 + $0xf8] sm:$0xff]
      %v380 = vld [vmem:[%s2] sm:$0x1]
      %v381 = vld [vmem:[%s3] sm:$0x1]
      %v382 = vld [vmem:[%s4] sm:$0xff]
      %vm383 = vcmask 64512
      %v384 = vsel %vm383, %v348, 0.0
      %v385 = vsel %vm383, %v349, 0.0
      %v386 = vadd.f32 %v384, %v385
      %v387 = vsel %vm383, %v350, 0.0
      %v388 = vadd.f32 %v386, %v387
      %v389 = vsel %vm383, %v351, 0.0
      %v390 = vadd.f32 %v388, %v389
      %v391 = vsel %vm383, %v352, 0.0
      %v392 = vadd.f32 %v390, %v391
      %v393 = vsel %vm383, %v353, 0.0
      %v394 = vadd.f32 %v392, %v393
      %v395 = vsel %vm383, %v354, 0.0
      %v396 = vadd.f32 %v394, %v395
      %v397 = vsel %vm383, %v355, 0.0
      %v398 = vadd.f32 %v396, %v397
      %v399 = vsel %vm383, %v356, 0.0
      %v400 = vadd.f32 %v398, %v399
      %v401 = vsel %vm383, %v357, 0.0
      %v402 = vadd.f32 %v400, %v401
      %v403 = vsel %vm383, %v358, 0.0
      %v404 = vadd.f32 %v402, %v403
      %v405 = vsel %vm383, %v359, 0.0
      %v406 = vadd.f32 %v404, %v405
      %v407 = vsel %vm383, %v360, 0.0
      %v408 = vadd.f32 %v406, %v407
      %v409 = vsel %vm383, %v361, 0.0
      %v410 = vadd.f32 %v408, %v409
      %v411 = vsel %vm383, %v362, 0.0
      %v412 = vadd.f32 %v410, %v411
      %v413 = vsel %vm383, %v363, 0.0
      %v414 = vadd.f32 %v412, %v413
      %v415 = vsel %vm383, %v364, 0.0
      %v416 = vadd.f32 %v414, %v415
      %v417 = vsel %vm383, %v365, 0.0
      %v418 = vadd.f32 %v416, %v417
      %v419 = vsel %vm383, %v366, 0.0
      %v420 = vadd.f32 %v418, %v419
      %v421 = vsel %vm383, %v367, 0.0
      %v422 = vadd.f32 %v420, %v421
      %v423 = vsel %vm383, %v368, 0.0
      %v424 = vadd.f32 %v422, %v423
      %v425 = vsel %vm383, %v369, 0.0
      %v426 = vadd.f32 %v424, %v425
      %v427 = vsel %vm383, %v370, 0.0
      %v428 = vadd.f32 %v426, %v427
      %v429 = vsel %vm383, %v371, 0.0
      %v430 = vadd.f32 %v428, %v429
      %v431 = vsel %vm383, %v372, 0.0
      %v432 = vadd.f32 %v430, %v431
      %v433 = vsel %vm383, %v373, 0.0
      %v434 = vadd.f32 %v432, %v433
      %v435 = vsel %vm383, %v374, 0.0
      %v436 = vadd.f32 %v434, %v435
      %v437 = vsel %vm383, %v375, 0.0
      %v438 = vadd.f32 %v436, %v437
      %v439 = vsel %vm383, %v376, 0.0
      %v440 = vadd.f32 %v438, %v439
      %v441 = vsel %vm383, %v377, 0.0
      %v442 = vadd.f32 %v440, %v441
      %v443 = vsel %vm383, %v378, 0.0
      %v444 = vadd.f32 %v442, %v443
      %v445 = vsel %vm383, %v379, 0.0
      %v446 = vadd.f32 %v444, %v445
      %v447 = vrot.slane %v446, 4
      %v448 = vadd.f32 %v446, %v447
      %v449 = vrot.slane %v448, 2
      %v450 = vadd.f32 %v448, %v449
      %v451 = vrot.slane %v450, 1
      %v452 = vadd.f32 %v450, %v451
      %v453 = vmul.f32 %v348, %v348
      %v454 = vmul.f32 %v349, %v349
      %v455 = vmul.f32 %v350, %v350
      %v456 = vmul.f32 %v351, %v351
      %v457 = vmul.f32 %v352, %v352
      %v458 = vmul.f32 %v353, %v353
      %v459 = vmul.f32 %v354, %v354
      %v460 = vmul.f32 %v355, %v355
      %v461 = vmul.f32 %v356, %v356
      %v462 = vmul.f32 %v357, %v357
      %v463 = vmul.f32 %v358, %v358
      %v464 = vmul.f32 %v359, %v359
      %v465 = vmul.f32 %v360, %v360
      %v466 = vmul.f32 %v361, %v361
      %v467 = vmul.f32 %v362, %v362
      %v468 = vmul.f32 %v363, %v363
      %v469 = vmul.f32 %v364, %v364
      %v470 = vmul.f32 %v365, %v365
      %v471 = vmul.f32 %v366, %v366
      %v472 = vmul.f32 %v367, %v367
      %v473 = vmul.f32 %v368, %v368
      %v474 = vmul.f32 %v369, %v369
      %v475 = vmul.f32 %v370, %v370
      %v476 = vmul.f32 %v371, %v371
      %v477 = vmul.f32 %v372, %v372
      %v478 = vmul.f32 %v373, %v373
      %v479 = vmul.f32 %v374, %v374
      %v480 = vmul.f32 %v375, %v375
      %v481 = vmul.f32 %v376, %v376
      %v482 = vmul.f32 %v377, %v377
      %v483 = vmul.f32 %v378, %v378
      %v484 = vmul.f32 %v379, %v379
      %v485 = vsel %vm383, %v453, 0.0
      %v486 = vsel %vm383, %v454, 0.0
      %v487 = vadd.f32 %v485, %v486
      %v488 = vsel %vm383, %v455, 0.0
      %v489 = vadd.f32 %v487, %v488
      %v490 = vsel %vm383, %v456, 0.0
      %v491 = vadd.f32 %v489, %v490
      %v492 = vsel %vm383, %v457, 0.0
      %v493 = vadd.f32 %v491, %v492
      %v494 = vsel %vm383, %v458, 0.0
      %v495 = vadd.f32 %v493, %v494
      %v496 = vsel %vm383, %v459, 0.0
      %v497 = vadd.f32 %v495, %v496
      %v498 = vsel %vm383, %v460, 0.0
      %v499 = vadd.f32 %v497, %v498
      %v500 = vsel %vm383, %v461, 0.0
      %v501 = vadd.f32 %v499, %v500
      %v502 = vsel %vm383, %v462, 0.0
      %v503 = vadd.f32 %v501, %v502
      %v504 = vsel %vm383, %v463, 0.0
      %v505 = vadd.f32 %v503, %v504
      %v506 = vsel %vm383, %v464, 0.0
      %v507 = vadd.f32 %v505, %v506
      %v508 = vsel %vm383, %v465, 0.0
      %v509 = vadd.f32 %v507, %v508
      %v510 = vsel %vm383, %v466, 0.0
      %v511 = vadd.f32 %v509, %v510
      %v512 = vsel %vm383, %v467, 0.0
      %v513 = vadd.f32 %v511, %v512
      %v514 = vsel %vm383, %v468, 0.0
      %v515 = vadd.f32 %v513, %v514
      %v516 = vsel %vm383, %v469, 0.0
      %v517 = vadd.f32 %v515, %v516
      %v518 = vsel %vm383, %v470, 0.0
      %v519 = vadd.f32 %v517, %v518
      %v520 = vsel %vm383, %v471, 0.0
      %v521 = vadd.f32 %v519, %v520
      %v522 = vsel %vm383, %v472, 0.0
      %v523 = vadd.f32 %v521, %v522
      %v524 = vsel %vm383, %v473, 0.0
      %v525 = vadd.f32 %v523, %v524
      %v526 = vsel %vm383, %v474, 0.0
      %v527 = vadd.f32 %v525, %v526
      %v528 = vsel %vm383, %v475, 0.0
      %v529 = vadd.f32 %v527, %v528
      %v530 = vsel %vm383, %v476, 0.0
      %v531 = vadd.f32 %v529, %v530
      %v532 = vsel %vm383, %v477, 0.0
      %v533 = vadd.f32 %v531, %v532
      %v534 = vsel %vm383, %v478, 0.0
      %v535 = vadd.f32 %v533, %v534
      %v536 = vsel %vm383, %v479, 0.0
      %v537 = vadd.f32 %v535, %v536
      %v538 = vsel %vm383, %v480, 0.0
      %v539 = vadd.f32 %v537, %v538
      %v540 = vsel %vm383, %v481, 0.0
      %v541 = vadd.f32 %v539, %v540
      %v542 = vsel %vm383, %v482, 0.0
      %v543 = vadd.f32 %v541, %v542
      %v544 = vsel %vm383, %v483, 0.0
      %v545 = vadd.f32 %v543, %v544
      %v546 = vsel %vm383, %v484, 0.0
      %v547 = vadd.f32 %v545, %v546
      %v548 = vrot.slane %v547, 4
      %v549 = vadd.f32 %v547, %v548
      %v550 = vrot.slane %v549, 2
      %v551 = vadd.f32 %v549, %v550
      %v552 = vrot.slane %v551, 1
      %v553 = vadd.f32 %v551, %v552
      %vm554 = vcmask 1040384
      %v555 = vsel %vm554, %v452, %v553
      %v557 = vsel %vm383, %v555, 0
      %559 = vmatprep.subr.mxu0 0.0
      %560 = vmatpush1.msra.mxu0 0.0
      %561 = vmatprep.subr.mxu0 0.0
      %562 = vmatpush1.msra.mxu0 0.0
      %563 = vmatprep.subr.mxu0 0.0
      %564 = vmatpush1.msra.mxu0 0.0
      %565 = vmatprep.subr.mxu0 0.0
      %566 = vmatpush1.msra.mxu0 0.0
      %567 = vmatprep.subr.mxu0 0.0
      %568 = vmatpush1.msra.mxu0 0.0
      %569 = vmatprep.subr.mxu0 0.0
      %570 = vmatpush1.msra.mxu0 0.0
      %571 = vmatprep.subr.mxu0 0.0
      %572 = vmatpush1.msra.mxu0 0.0
      %573 = vmatprep.subr.mxu0 0.0
      %574 = vmatpush1.msra.mxu0 0.0
      %575 = vmatprep.subr.mxu0 0.0
      %576 = vmatpush1.msra.mxu0 0.0
      %577 = vmatprep.subr.mxu0 0.0
      %578 = vmatpush1.msra.mxu0 0.0
      %579 = vmatprep.subr.mxu0 0.0
      %580 = vmatpush1.msra.mxu0 0.0
      %581 = vmatprep.subr.mxu0 0.0
      %582 = vmatpush1.msra.mxu0 0.0
      %583 = vmatprep.subr.mxu0 0.0
      %584 = vmatpush1.msra.mxu0 0.0
      %585 = vmatprep.subr.mxu0 0.0
      %586 = vmatpush1.msra.mxu0 0.0
      %587 = vmatprep.subr.mxu0 0.0
      %588 = vmatpush1.msra.mxu0 0.0
      %589 = vmatprep.subr.mxu0 0.0
      %590 = vmatpush1.msra.mxu0 %v382
      %591 = vmatprep.subr.mxu0 0.0
      %592 = vmatpush2.msra.mxu0 0.0
      %593 = vmatprep.subr.mxu0 0.0
      %594 = vmatpush2.msra.mxu0 0.0
      %595 = vmatprep.subr.mxu0 0.0
      %596 = vmatpush2.msra.mxu0 0.0
      %597 = vmatprep.subr.mxu0 0.0
      %598 = vmatpush2.msra.mxu0 0.0
      %599 = vmatprep.subr.mxu0 0.0
      %600 = vmatpush2.msra.mxu0 0.0
      %601 = vmatprep.subr.mxu0 0.0
      %602 = vmatpush2.msra.mxu0 0.0
      %603 = vmatprep.subr.mxu0 0.0
      %604 = vmatpush2.msra.mxu0 0.0
      %605 = vmatprep.subr.mxu0 0.0
      %606 = vmatpush2.msra.mxu0 0.0
      %607 = vmatprep.subr.mxu0 0.0
      %608 = vmatpush2.msra.mxu0 0.0
      %609 = vmatprep.subr.mxu0 0.0
      %610 = vmatpush2.msra.mxu0 0.0
      %611 = vmatprep.subr.mxu0 0.0
      %612 = vmatpush2.msra.mxu0 0.0
      %613 = vmatprep.subr.mxu0 0.0
      %614 = vmatpush2.msra.mxu0 0.0
      %615 = vmatprep.subr.mxu0 0.0
      %616 = vmatpush2.msra.mxu0 0.0
      %617 = vmatprep.subr.mxu0 0.0
      %618 = vmatpush2.msra.mxu0 0.0
      %619 = vmatprep.subr.mxu0 0.0
      %620 = vmatpush2.msra.mxu0 0.0
      %621 = vmatprep.subr.mxu0 0.0
      %622 = vmatpush2.msra.mxu0 0.0
      %623 = vmatprep.mubr.f32.mxu0 0.0
      %624 = vmatmul.mubr.f32.gmra.mxu0 %v557
      %v625 = vpop.f32.mrf.mxu0
      %v626 = vadd.f32 0.0, %v625
      %v627 = vpop.f32.mrf.mxu0
      %628 = vdwg.mxu0
      %v629 = vmul.f32 %v626, 0.00390625
      %v630 = vmul.f32 %v629, %v629
      %v632 = vrot.slane %v630, 7
      %v634 = vsub.f32 %v629, %v632
      %v635 = vmax.f32 %v634, 0.0
      %v636 = vadd.f32 %v635, 1e-05
      %v637 = vrsqrt.pop %v636
      %v638 = vsel %vm554, %v629, %v637
      %v640 = vsel %vm383, %v638, 0
      %v643 = vsel %vm383, %v382, 0
      %645 = vmatprep.subr.mxu0 0.0
      %646 = vmatpush1.xpose.msra.mxu0 0.0
      %647 = vmatprep.subr.mxu0 0.0
      %648 = vmatpush1.xpose.msra.mxu0 0.0
      %649 = vmatprep.subr.mxu0 0.0
      %650 = vmatpush1.xpose.msra.mxu0 0.0
      %651 = vmatprep.subr.mxu0 0.0
      %652 = vmatpush1.xpose.msra.mxu0 0.0
      %653 = vmatprep.subr.mxu0 0.0
      %654 = vmatpush1.xpose.msra.mxu0 0.0
      %655 = vmatprep.subr.mxu0 0.0
      %656 = vmatpush1.xpose.msra.mxu0 0.0
      %657 = vmatprep.subr.mxu0 0.0
      %658 = vmatpush1.xpose.msra.mxu0 0.0
      %659 = vmatprep.subr.mxu0 0.0
      %660 = vmatpush1.xpose.msra.mxu0 0.0
      %661 = vmatprep.subr.mxu0 0.0
      %662 = vmatpush1.xpose.msra.mxu0 0.0
      %663 = vmatprep.subr.mxu0 0.0
      %664 = vmatpush1.xpose.msra.mxu0 0.0
      %665 = vmatprep.subr.mxu0 0.0
      %666 = vmatpush1.xpose.msra.mxu0 0.0
      %667 = vmatprep.subr.mxu0 0.0
      %668 = vmatpush1.xpose.msra.mxu0 0.0
      %669 = vmatprep.subr.mxu0 0.0
      %670 = vmatpush1.xpose.msra.mxu0 0.0
      %671 = vmatprep.subr.mxu0 0.0
      %672 = vmatpush1.xpose.msra.mxu0 0.0
      %673 = vmatprep.subr.mxu0 0.0
      %674 = vmatpush1.xpose.msra.mxu0 0.0
      %675 = vmatprep.subr.mxu0 0.0
      %676 = vmatpush1.xpose.msra.mxu0 %v643
      %677 = vmatprep.subr.mxu0 0.0
      %678 = vmatpush2.xpose.msra.mxu0 0.0
      %679 = vmatprep.subr.mxu0 0.0
      %680 = vmatpush2.xpose.msra.mxu0 0.0
      %681 = vmatprep.subr.mxu0 0.0
      %682 = vmatpush2.xpose.msra.mxu0 0.0
      %683 = vmatprep.subr.mxu0 0.0
      %684 = vmatpush2.xpose.msra.mxu0 0.0
      %685 = vmatprep.subr.mxu0 0.0
      %686 = vmatpush2.xpose.msra.mxu0 0.0
      %687 = vmatprep.subr.mxu0 0.0
      %688 = vmatpush2.xpose.msra.mxu0 0.0
      %689 = vmatprep.subr.mxu0 0.0
      %690 = vmatpush2.xpose.msra.mxu0 0.0
      %691 = vmatprep.subr.mxu0 0.0
      %692 = vmatpush2.xpose.msra.mxu0 0.0
      %693 = vmatprep.subr.mxu0 0.0
      %694 = vmatpush2.xpose.msra.mxu0 0.0
      %695 = vmatprep.subr.mxu0 0.0
      %696 = vmatpush2.xpose.msra.mxu0 0.0
      %697 = vmatprep.subr.mxu0 0.0
      %698 = vmatpush2.xpose.msra.mxu0 0.0
      %699 = vmatprep.subr.mxu0 0.0
      %700 = vmatpush2.xpose.msra.mxu0 0.0
      %701 = vmatprep.subr.mxu0 0.0
      %702 = vmatpush2.xpose.msra.mxu0 0.0
      %703 = vmatprep.subr.mxu0 0.0
      %704 = vmatpush2.xpose.msra.mxu0 0.0
      %705 = vmatprep.subr.mxu0 0.0
      %706 = vmatpush2.xpose.msra.mxu0 0.0
      %707 = vmatprep.subr.mxu0 0.0
      %708 = vmatpush2.xpose.msra.mxu0 0.0
      %709 = vmatprep.mubr.f32.mxu0 0.0
      %710 = vmatmul.mubr.f32.gmra.mxu0 %v640
      %v711 = vpop.f32.mrf.mxu0
      %v712 = vadd.f32 0.0, %v711
      %v713 = vpop.f32.mrf.mxu0
      %714 = vdwg.mxu0
      %v715 = vlaneseq
      %v716 = vshrl.u32 %v715, 7
      %v717 = vsub.s32 0, %v716
      %v718 = vrot.slane %v712, %v717
      %v719 = vsub.f32 %v348, %v718
      %v720 = vsub.f32 %v349, %v718
      %v721 = vsub.f32 %v350, %v718
      %v722 = vsub.f32 %v351, %v718
      %v723 = vsub.f32 %v352, %v718
      %v724 = vsub.f32 %v353, %v718
      %v725 = vsub.f32 %v354, %v718
      %v726 = vsub.f32 %v355, %v718
      %v727 = vsub.f32 %v356, %v718
      %v728 = vsub.f32 %v357, %v718
      %v729 = vsub.f32 %v358, %v718
      %v730 = vsub.f32 %v359, %v718
      %v731 = vsub.f32 %v360, %v718
      %v732 = vsub.f32 %v361, %v718
      %v733 = vsub.f32 %v362, %v718
      %v734 = vsub.f32 %v363, %v718
      %v735 = vsub.f32 %v364, %v718
      %v736 = vsub.f32 %v365, %v718
      %v737 = vsub.f32 %v366, %v718
      %v738 = vsub.f32 %v367, %v718
      %v739 = vsub.f32 %v368, %v718
      %v740 = vsub.f32 %v369, %v718
      %v741 = vsub.f32 %v370, %v718
      %v742 = vsub.f32 %v371, %v718
      %v743 = vsub.f32 %v372, %v718
      %v744 = vsub.f32 %v373, %v718
      %v745 = vsub.f32 %v374, %v718
      %v746 = vsub.f32 %v375, %v718
      %v747 = vsub.f32 %v376, %v718
      %v748 = vsub.f32 %v377, %v718
      %v749 = vsub.f32 %v378, %v718
      %v750 = vsub.f32 %v379, %v718
      %v751 = vlaneseq
      %v752 = vshrl.u32 %v751, 7
      %v753 = vsub.s32 1, %v752
      %v754 = vrot.slane %v712, %v753
      %v755 = vmul.f32 %v719, %v754
      %v756 = vmul.f32 %v720, %v754
      %v757 = vmul.f32 %v721, %v754
      %v758 = vmul.f32 %v722, %v754
      %v759 = vmul.f32 %v723, %v754
      %v760 = vmul.f32 %v724, %v754
      %v761 = vmul.f32 %v725, %v754
      %v762 = vmul.f32 %v726, %v754
      %v763 = vmul.f32 %v727, %v754
      %v764 = vmul.f32 %v728, %v754
      %v765 = vmul.f32 %v729, %v754
      %v766 = vmul.f32 %v730, %v754
      %v767 = vmul.f32 %v731, %v754
      %v768 = vmul.f32 %v732, %v754
      %v769 = vmul.f32 %v733, %v754
      %v770 = vmul.f32 %v734, %v754
      %v771 = vmul.f32 %v735, %v754
      %v772 = vmul.f32 %v736, %v754
      %v773 = vmul.f32 %v737, %v754
      %v774 = vmul.f32 %v738, %v754
      %v775 = vmul.f32 %v739, %v754
      %v776 = vmul.f32 %v740, %v754
      %v777 = vmul.f32 %v741, %v754
      %v778 = vmul.f32 %v742, %v754
      %v779 = vmul.f32 %v743, %v754
      %v780 = vmul.f32 %v744, %v754
      %v781 = vmul.f32 %v745, %v754
      %v782 = vmul.f32 %v746, %v754
      %v783 = vmul.f32 %v747, %v754
      %v784 = vmul.f32 %v748, %v754
      %v785 = vmul.f32 %v749, %v754
      %v786 = vmul.f32 %v750, %v754
      %v788 = vlaneseq
      %v789 = vshrl.u32 %v788, 7
      %v790 = vsub.s32 0, %v789
      %v791 = vrot.slane %v380, %v790
      %v793 = vmul.f32 %v755, %v791
      %v794 = vmul.f32 %v756, %v791
      %v795 = vmul.f32 %v757, %v791
      %v796 = vmul.f32 %v758, %v791
      %v797 = vmul.f32 %v759, %v791
      %v798 = vmul.f32 %v760, %v791
      %v799 = vmul.f32 %v761, %v791
      %v800 = vmul.f32 %v762, %v791
      %v801 = vmul.f32 %v763, %v791
      %v802 = vmul.f32 %v764, %v791
      %v803 = vmul.f32 %v765, %v791
      %v804 = vmul.f32 %v766, %v791
      %v805 = vmul.f32 %v767, %v791
      %v806 = vmul.f32 %v768, %v791
      %v807 = vmul.f32 %v769, %v791
      %v808 = vmul.f32 %v770, %v791
      %v809 = vmul.f32 %v771, %v791
      %v810 = vmul.f32 %v772, %v791
      %v811 = vmul.f32 %v773, %v791
      %v812 = vmul.f32 %v774, %v791
      %v813 = vmul.f32 %v775, %v791
      %v814 = vmul.f32 %v776, %v791
      %v815 = vmul.f32 %v777, %v791
      %v816 = vmul.f32 %v778, %v791
      %v817 = vmul.f32 %v779, %v791
      %v818 = vmul.f32 %v780, %v791
      %v819 = vmul.f32 %v781, %v791
      %v820 = vmul.f32 %v782, %v791
      %v821 = vmul.f32 %v783, %v791
      %v822 = vmul.f32 %v784, %v791
      %v823 = vmul.f32 %v785, %v791
      %v824 = vmul.f32 %v786, %v791
      %v826 = vlaneseq
      %v827 = vshrl.u32 %v826, 7
      %v828 = vsub.s32 0, %v827
      %v829 = vrot.slane %v381, %v828
      %v831 = vadd.f32 %v793, %v829
      %v832 = vadd.f32 %v794, %v829
      %v833 = vadd.f32 %v795, %v829
      %v834 = vadd.f32 %v796, %v829
      %v835 = vadd.f32 %v797, %v829
      %v836 = vadd.f32 %v798, %v829
      %v837 = vadd.f32 %v799, %v829
      %v838 = vadd.f32 %v800, %v829
      %v839 = vadd.f32 %v801, %v829
      %v840 = vadd.f32 %v802, %v829
      %v841 = vadd.f32 %v803, %v829
      %v842 = vadd.f32 %v804, %v829
      %v843 = vadd.f32 %v805, %v829
      %v844 = vadd.f32 %v806, %v829
      %v845 = vadd.f32 %v807, %v829
      %v846 = vadd.f32 %v808, %v829
      %v847 = vadd.f32 %v809, %v829
      %v848 = vadd.f32 %v810, %v829
      %v849 = vadd.f32 %v811, %v829
      %v850 = vadd.f32 %v812, %v829
      %v851 = vadd.f32 %v813, %v829
      %v852 = vadd.f32 %v814, %v829
      %v853 = vadd.f32 %v815, %v829
      %v854 = vadd.f32 %v816, %v829
      %v855 = vadd.f32 %v817, %v829
      %v856 = vadd.f32 %v818, %v829
      %v857 = vadd.f32 %v819, %v829
      %v858 = vadd.f32 %v820, %v829
      %v859 = vadd.f32 %v821, %v829
      %v860 = vadd.f32 %v822, %v829
      %v861 = vadd.f32 %v823, %v829
      %v862 = vadd.f32 %v824, %v829
      %v863 = vxor.u32 %v831, 2147483648
      %v864 = vxor.u32 %v832, 2147483648
      %v865 = vxor.u32 %v833, 2147483648
      %v866 = vxor.u32 %v834, 2147483648
      %v867 = vxor.u32 %v835, 2147483648
      %v868 = vxor.u32 %v836, 2147483648
      %v869 = vxor.u32 %v837, 2147483648
      %v870 = vxor.u32 %v838, 2147483648
      %v871 = vxor.u32 %v839, 2147483648
      %v872 = vxor.u32 %v840, 2147483648
      %v873 = vxor.u32 %v841, 2147483648
      %v874 = vxor.u32 %v842, 2147483648
      %v875 = vxor.u32 %v843, 2147483648
      %v876 = vxor.u32 %v844, 2147483648
      %v877 = vxor.u32 %v845, 2147483648
      %v878 = vxor.u32 %v846, 2147483648
      %v879 = vxor.u32 %v847, 2147483648
      %v880 = vxor.u32 %v848, 2147483648
      %v881 = vxor.u32 %v849, 2147483648
      %v882 = vxor.u32 %v850, 2147483648
      %v883 = vxor.u32 %v851, 2147483648
      %v884 = vxor.u32 %v852, 2147483648
      %v885 = vxor.u32 %v853, 2147483648
      %v886 = vxor.u32 %v854, 2147483648
      %v887 = vxor.u32 %v855, 2147483648
      %v888 = vxor.u32 %v856, 2147483648
      %v889 = vxor.u32 %v857, 2147483648
      %v890 = vxor.u32 %v858, 2147483648
      %v891 = vxor.u32 %v859, 2147483648
      %v892 = vxor.u32 %v860, 2147483648
      %v893 = vxor.u32 %v861, 2147483648
      %v894 = vxor.u32 %v862, 2147483648
      %v895 = vmul.f32 %v863, 1.442695
      %v896 = vpow.pop %v895
      %v897 = vmul.f32 %v864, 1.442695
      %v898 = vpow.pop %v897
      %v899 = vmul.f32 %v865, 1.442695
      %v900 = vpow.pop %v899
      %v901 = vmul.f32 %v866, 1.442695
      %v902 = vpow.pop %v901
      %v903 = vmul.f32 %v867, 1.442695
      %v904 = vpow.pop %v903
      %v905 = vmul.f32 %v868, 1.442695
      %v906 = vpow.pop %v905
      %v907 = vmul.f32 %v869, 1.442695
      %v908 = vpow.pop %v907
      %v909 = vmul.f32 %v870, 1.442695
      %v910 = vpow.pop %v909
      %v911 = vmul.f32 %v871, 1.442695
      %v912 = vpow.pop %v911
      %v913 = vmul.f32 %v872, 1.442695
      %v914 = vpow.pop %v913
      %v915 = vmul.f32 %v873, 1.442695
      %v916 = vpow.pop %v915
      %v917 = vmul.f32 %v874, 1.442695
      %v918 = vpow.pop %v917
      %v919 = vmul.f32 %v875, 1.442695
      %v920 = vpow.pop %v919
      %v921 = vmul.f32 %v876, 1.442695
      %v922 = vpow.pop %v921
      %v923 = vmul.f32 %v877, 1.442695
      %v924 = vpow.pop %v923
      %v925 = vmul.f32 %v878, 1.442695
      %v926 = vpow.pop %v925
      %v927 = vmul.f32 %v879, 1.442695
      %v928 = vpow.pop %v927
      %v929 = vmul.f32 %v880, 1.442695
      %v930 = vpow.pop %v929
      %v931 = vmul.f32 %v881, 1.442695
      %v932 = vpow.pop %v931
      %v933 = vmul.f32 %v882, 1.442695
      %v934 = vpow.pop %v933
      %v935 = vmul.f32 %v883, 1.442695
      %v936 = vpow.pop %v935
      %v937 = vmul.f32 %v884, 1.442695
      %v938 = vpow.pop %v937
      %v939 = vmul.f32 %v885, 1.442695
      %v940 = vpow.pop %v939
      %v941 = vmul.f32 %v886, 1.442695
      %v942 = vpow.pop %v941
      %v943 = vmul.f32 %v887, 1.442695
      %v944 = vpow.pop %v943
      %v945 = vmul.f32 %v888, 1.442695
      %v946 = vpow.pop %v945
      %v947 = vmul.f32 %v889, 1.442695
      %v948 = vpow.pop %v947
      %v949 = vmul.f32 %v890, 1.442695
      %v950 = vpow.pop %v949
      %v951 = vmul.f32 %v891, 1.442695
      %v952 = vpow.pop %v951
      %v953 = vmul.f32 %v892, 1.442695
      %v954 = vpow.pop %v953
      %v955 = vmul.f32 %v893, 1.442695
      %v956 = vpow.pop %v955
      %v957 = vmul.f32 %v894, 1.442695
      %v958 = vpow.pop %v957
      %v959 = vadd.f32 %v896, 1.0
      %v960 = vadd.f32 %v898, 1.0
      %v961 = vadd.f32 %v900, 1.0
      %v962 = vadd.f32 %v902, 1.0
      %v963 = vadd.f32 %v904, 1.0
      %v964 = vadd.f32 %v906, 1.0
      %v965 = vadd.f32 %v908, 1.0
      %v966 = vadd.f32 %v910, 1.0
      %v967 = vadd.f32 %v912, 1.0
      %v968 = vadd.f32 %v914, 1.0
      %v969 = vadd.f32 %v916, 1.0
      %v970 = vadd.f32 %v918, 1.0
      %v971 = vadd.f32 %v920, 1.0
      %v972 = vadd.f32 %v922, 1.0
      %v973 = vadd.f32 %v924, 1.0
      %v974 = vadd.f32 %v926, 1.0
      %v975 = vadd.f32 %v928, 1.0
      %v976 = vadd.f32 %v930, 1.0
      %v977 = vadd.f32 %v932, 1.0
      %v978 = vadd.f32 %v934, 1.0
      %v979 = vadd.f32 %v936, 1.0
      %v980 = vadd.f32 %v938, 1.0
      %v981 = vadd.f32 %v940, 1.0
      %v982 = vadd.f32 %v942, 1.0
      %v983 = vadd.f32 %v944, 1.0
      %v984 = vadd.f32 %v946, 1.0
      %v985 = vadd.f32 %v948, 1.0
      %v986 = vadd.f32 %v950, 1.0
      %v987 = vadd.f32 %v952, 1.0
      %v988 = vadd.f32 %v954, 1.0
      %v989 = vadd.f32 %v956, 1.0
      %v990 = vadd.f32 %v958, 1.0
      %v991 = vrcp.pop %v959
      %v992 = vmul.f32 1.0, %v991
      %v993 = vrcp.pop %v960
      %v994 = vmul.f32 1.0, %v993
      %v995 = vrcp.pop %v961
      %v996 = vmul.f32 1.0, %v995
      %v997 = vrcp.pop %v962
      %v998 = vmul.f32 1.0, %v997
      %v999 = vrcp.pop %v963
      %v1000 = vmul.f32 1.0, %v999
      %v1001 = vrcp.pop %v964
      %v1002 = vmul.f32 1.0, %v1001
      %v1003 = vrcp.pop %v965
      %v1004 = vmul.f32 1.0, %v1003
      %v1005 = vrcp.pop %v966
      %v1006 = vmul.f32 1.0, %v1005
      %v1007 = vrcp.pop %v967
      %v1008 = vmul.f32 1.0, %v1007
      %v1009 = vrcp.pop %v968
      %v1010 = vmul.f32 1.0, %v1009
      %v1011 = vrcp.pop %v969
      %v1012 = vmul.f32 1.0, %v1011
      %v1013 = vrcp.pop %v970
      %v1014 = vmul.f32 1.0, %v1013
      %v1015 = vrcp.pop %v971
      %v1016 = vmul.f32 1.0, %v1015
      %v1017 = vrcp.pop %v972
      %v1018 = vmul.f32 1.0, %v1017
      %v1019 = vrcp.pop %v973
      %v1020 = vmul.f32 1.0, %v1019
      %v1021 = vrcp.pop %v974
      %v1022 = vmul.f32 1.0, %v1021
      %v1023 = vrcp.pop %v975
      %v1024 = vmul.f32 1.0, %v1023
      %v1025 = vrcp.pop %v976
      %v1026 = vmul.f32 1.0, %v1025
      %v1027 = vrcp.pop %v977
      %v1028 = vmul.f32 1.0, %v1027
      %v1029 = vrcp.pop %v978
      %v1030 = vmul.f32 1.0, %v1029
      %v1031 = vrcp.pop %v979
      %v1032 = vmul.f32 1.0, %v1031
      %v1033 = vrcp.pop %v980
      %v1034 = vmul.f32 1.0, %v1033
      %v1035 = vrcp.pop %v981
      %v1036 = vmul.f32 1.0, %v1035
      %v1037 = vrcp.pop %v982
      %v1038 = vmul.f32 1.0, %v1037
      %v1039 = vrcp.pop %v983
      %v1040 = vmul.f32 1.0, %v1039
      %v1041 = vrcp.pop %v984
      %v1042 = vmul.f32 1.0, %v1041
      %v1043 = vrcp.pop %v985
      %v1044 = vmul.f32 1.0, %v1043
      %v1045 = vrcp.pop %v986
      %v1046 = vmul.f32 1.0, %v1045
      %v1047 = vrcp.pop %v987
      %v1048 = vmul.f32 1.0, %v1047
      %v1049 = vrcp.pop %v988
      %v1050 = vmul.f32 1.0, %v1049
      %v1051 = vrcp.pop %v989
      %v1052 = vmul.f32 1.0, %v1051
      %v1053 = vrcp.pop %v990
      %v1054 = vmul.f32 1.0, %v1053
      %v1055 = vmul.f32 %v831, %v992
      %v1056 = vmul.f32 %v832, %v994
      %v1057 = vmul.f32 %v833, %v996
      %v1058 = vmul.f32 %v834, %v998
      %v1059 = vmul.f32 %v835, %v1000
      %v1060 = vmul.f32 %v836, %v1002
      %v1061 = vmul.f32 %v837, %v1004
      %v1062 = vmul.f32 %v838, %v1006
      %v1063 = vmul.f32 %v839, %v1008
      %v1064 = vmul.f32 %v840, %v1010
      %v1065 = vmul.f32 %v841, %v1012
      %v1066 = vmul.f32 %v842, %v1014
      %v1067 = vmul.f32 %v843, %v1016
      %v1068 = vmul.f32 %v844, %v1018
      %v1069 = vmul.f32 %v845, %v1020
      %v1070 = vmul.f32 %v846, %v1022
      %v1071 = vmul.f32 %v847, %v1024
      %v1072 = vmul.f32 %v848, %v1026
      %v1073 = vmul.f32 %v849, %v1028
      %v1074 = vmul.f32 %v850, %v1030
      %v1075 = vmul.f32 %v851, %v1032
      %v1076 = vmul.f32 %v852, %v1034
      %v1077 = vmul.f32 %v853, %v1036
      %v1078 = vmul.f32 %v854, %v1038
      %v1079 = vmul.f32 %v855, %v1040
      %v1080 = vmul.f32 %v856, %v1042
      %v1081 = vmul.f32 %v857, %v1044
      %v1082 = vmul.f32 %v858, %v1046
      %v1083 = vmul.f32 %v859, %v1048
      %v1084 = vmul.f32 %v860, %v1050
      %v1085 = vmul.f32 %v861, %v1052
      %v1086 = vmul.f32 %v862, %v1054
      %vm1087 = vcmask 60416
      %1088 = vst.msk [vmem:[#allocation2] sm:$0xf] %vm1087, 0
      %1089 = vst.msk [vmem:[#allocation2 + $0x4] sm:$0xf] %vm1087, 0
      %vm1090 = vcmask 57344
      %1091 = vst.msk [vmem:[#allocation2 + $0x8] sm:$0x1] %vm1090, 0
      %s1092 = scalar_lea.vmem [#allocation2], 204
      %1093 = vst.msk [vmem:[%s1092] sm:$0xf] %vm1087, 0
      %1094 = vst.msk [vmem:[%s1092 + $0x4] sm:$0xf] %vm1087, 0
      %1095 = vst.msk [vmem:[%s1092 + $0x8] sm:$0x1] %vm1090, 0
      %vm1096 = vcmask 57344
      %vm1097 = vsmask.f32 256
      %vm1098 = vmand %vm1096, %vm1097
      %v1099 = vld [vmem:[#allocation2] sm:$0x1]
      %v1100 = vsel %vm1098, 0, %v1099
      %1101 = vst [vmem:[#allocation2] sm:$0x1] %v1100
      %v1102 = vld [vmem:[#allocation2 + $0xc] sm:$0x1]
      %v1103 = vsel %vm1098, 0, %v1102
      %1104 = vst [vmem:[#allocation2 + $0xc] sm:$0x1] %v1103
      %v1105 = vld [vmem:[#allocation2 + $0x18] sm:$0x1]
      %v1106 = vsel %vm1098, 0, %v1105
      %1107 = vst [vmem:[#allocation2 + $0x18] sm:$0x1] %v1106
      %v1108 = vld [vmem:[#allocation2 + $0x24] sm:$0x1]
      %v1109 = vsel %vm1098, 0, %v1108
      %1110 = vst [vmem:[#allocation2 + $0x24] sm:$0x1] %v1109
      %v1111 = vld [vmem:[#allocation2 + $0x30] sm:$0x1]
      %v1112 = vsel %vm1098, 0, %v1111
      %1113 = vst [vmem:[#allocation2 + $0x30] sm:$0x1] %v1112
      %v1114 = vld [vmem:[#allocation2 + $0x3c] sm:$0x1]
      %v1115 = vsel %vm1098, 0, %v1114
      %1116 = vst [vmem:[#allocation2 + $0x3c] sm:$0x1] %v1115
      %v1117 = vld [vmem:[#allocation2 + $0x48] sm:$0x1]
      %v1118 = vsel %vm1098, 0, %v1117
      %1119 = vst [vmem:[#allocation2 + $0x48] sm:$0x1] %v1118
      %v1120 = vld [vmem:[#allocation2 + $0x54] sm:$0x1]
      %v1121 = vsel %vm1098, 0, %v1120
      %1122 = vst [vmem:[#allocation2 + $0x54] sm:$0x1] %v1121
      %v1123 = vld [vmem:[#allocation2 + $0x60] sm:$0x1]
      %v1124 = vsel %vm1098, 0, %v1123
      %1125 = vst [vmem:[#allocation2 + $0x60] sm:$0x1] %v1124
      %v1126 = vld [vmem:[#allocation2 + $0x6c] sm:$0x1]
      %v1127 = vsel %vm1098, 0, %v1126
      %1128 = vst [vmem:[#allocation2 + $0x6c] sm:$0x1] %v1127
      %v1129 = vld [vmem:[#allocation2 + $0x78] sm:$0x1]
      %v1130 = vsel %vm1098, 0, %v1129
      %1131 = vst [vmem:[#allocation2 + $0x78] sm:$0x1] %v1130
      %v1132 = vld [vmem:[#allocation2 + $0x84] sm:$0x1]
      %v1133 = vsel %vm1098, 0, %v1132
      %1134 = vst [vmem:[#allocation2 + $0x84] sm:$0x1] %v1133
      %v1135 = vld [vmem:[#allocation2 + $0x90] sm:$0x1]
      %v1136 = vsel %vm1098, 0, %v1135
      %1137 = vst [vmem:[#allocation2 + $0x90] sm:$0x1] %v1136
      %v1138 = vld [vmem:[#allocation2 + $0x9c] sm:$0x1]
      %v1139 = vsel %vm1098, 0, %v1138
      %1140 = vst [vmem:[#allocation2 + $0x9c] sm:$0x1] %v1139
      %v1141 = vld [vmem:[#allocation2 + $0xa8] sm:$0x1]
      %v1142 = vsel %vm1098, 0, %v1141
      %1143 = vst [vmem:[#allocation2 + $0xa8] sm:$0x1] %v1142
      %v1144 = vld [vmem:[#allocation2 + $0xb4] sm:$0x1]
      %v1145 = vsel %vm1098, 0, %v1144
      %1146 = vst [vmem:[#allocation2 + $0xb4] sm:$0x1] %v1145
      %v1147 = vld [vmem:[#allocation2 + $0xc0] sm:$0x1]
      %v1148 = vsel %vm1098, 0, %v1147
      %1149 = vst [vmem:[#allocation2 + $0xc0] sm:$0x1] %v1148
      %v1150 = vld [vmem:[#allocation2 + $0xcc] sm:$0x1]
      %v1151 = vsel %vm1098, 0, %v1150
      %1152 = vst [vmem:[#allocation2 + $0xcc] sm:$0x1] %v1151
      %vm1153 = vsmask.f32 7938
      %vm1154 = vmand %vm1096, %vm1153
      %v1155 = vld [vmem:[#allocation2 + $0x8] sm:$0x1]
      %v1156 = vsel %vm1154, 0, %v1155
      %1157 = vst [vmem:[#allocation2 + $0x8] sm:$0x1] %v1156
      %v1158 = vld [vmem:[#allocation2 + $0x14] sm:$0x1]
      %v1159 = vsel %vm1154, 0, %v1158
      %1160 = vst [vmem:[#allocation2 + $0x14] sm:$0x1] %v1159
      %v1161 = vld [vmem:[#allocation2 + $0x20] sm:$0x1]
      %v1162 = vsel %vm1154, 0, %v1161
      %1163 = vst [vmem:[#allocation2 + $0x20] sm:$0x1] %v1162
      %v1164 = vld [vmem:[#allocation2 + $0x2c] sm:$0x1]
      %v1165 = vsel %vm1154, 0, %v1164
      %1166 = vst [vmem:[#allocation2 + $0x2c] sm:$0x1] %v1165
      %v1167 = vld [vmem:[#allocation2 + $0x38] sm:$0x1]
      %v1168 = vsel %vm1154, 0, %v1167
      %1169 = vst [vmem:[#allocation2 + $0x38] sm:$0x1] %v1168
      %v1170 = vld [vmem:[#allocation2 + $0x44] sm:$0x1]
      %v1171 = vsel %vm1154, 0, %v1170
      %1172 = vst [vmem:[#allocation2 + $0x44] sm:$0x1] %v1171
      %v1173 = vld [vmem:[#allocation2 + $0x50] sm:$0x1]
      %v1174 = vsel %vm1154, 0, %v1173
      %1175 = vst [vmem:[#allocation2 + $0x50] sm:$0x1] %v1174
      %v1176 = vld [vmem:[#allocation2 + $0x5c] sm:$0x1]
      %v1177 = vsel %vm1154, 0, %v1176
      %1178 = vst [vmem:[#allocation2 + $0x5c] sm:$0x1] %v1177
      %v1179 = vld [vmem:[#allocation2 + $0x68] sm:$0x1]
      %v1180 = vsel %vm1154, 0, %v1179
      %1181 = vst [vmem:[#allocation2 + $0x68] sm:$0x1] %v1180
      %v1182 = vld [vmem:[#allocation2 + $0x74] sm:$0x1]
      %v1183 = vsel %vm1154, 0, %v1182
      %1184 = vst [vmem:[#allocation2 + $0x74] sm:$0x1] %v1183
      %v1185 = vld [vmem:[#allocation2 + $0x80] sm:$0x1]
      %v1186 = vsel %vm1154, 0, %v1185
      %1187 = vst [vmem:[#allocation2 + $0x80] sm:$0x1] %v1186
      %v1188 = vld [vmem:[#allocation2 + $0x8c] sm:$0x1]
      %v1189 = vsel %vm1154, 0, %v1188
      %1190 = vst [vmem:[#allocation2 + $0x8c] sm:$0x1] %v1189
      %v1191 = vld [vmem:[#allocation2 + $0x98] sm:$0x1]
      %v1192 = vsel %vm1154, 0, %v1191
      %1193 = vst [vmem:[#allocation2 + $0x98] sm:$0x1] %v1192
      %v1194 = vld [vmem:[#allocation2 + $0xa4] sm:$0x1]
      %v1195 = vsel %vm1154, 0, %v1194
      %1196 = vst [vmem:[#allocation2 + $0xa4] sm:$0x1] %v1195
      %v1197 = vld [vmem:[#allocation2 + $0xb0] sm:$0x1]
      %v1198 = vsel %vm1154, 0, %v1197
      %1199 = vst [vmem:[#allocation2 + $0xb0] sm:$0x1] %v1198
      %v1200 = vld [vmem:[#allocation2 + $0xbc] sm:$0x1]
      %v1201 = vsel %vm1154, 0, %v1200
      %1202 = vst [vmem:[#allocation2 + $0xbc] sm:$0x1] %v1201
      %v1203 = vld [vmem:[#allocation2 + $0xc8] sm:$0x1]
      %v1204 = vsel %vm1154, 0, %v1203
      %1205 = vst [vmem:[#allocation2 + $0xc8] sm:$0x1] %v1204
      %v1206 = vld [vmem:[#allocation2 + $0xd4] sm:$0x1]
      %v1207 = vsel %vm1154, 0, %v1206
      %1208 = vst [vmem:[#allocation2 + $0xd4] sm:$0x1] %v1207
      %v1209 = vpack.c.bf16 %v1056, %v1055
      %v1210 = vpack.c.bf16 %v1058, %v1057
      %v1211 = vpack.c.bf16 %v1060, %v1059
      %v1212 = vpack.c.bf16 %v1062, %v1061
      %v1213 = vpack.c.bf16 %v1064, %v1063
      %v1214 = vpack.c.bf16 %v1066, %v1065
      %v1215 = vpack.c.bf16 %v1068, %v1067
      %v1216 = vpack.c.bf16 %v1070, %v1069
      %v1217 = vpack.c.bf16 %v1072, %v1071
      %v1218 = vpack.c.bf16 %v1074, %v1073
      %v1219 = vpack.c.bf16 %v1076, %v1075
      %v1220 = vpack.c.bf16 %v1078, %v1077
      %v1221 = vpack.c.bf16 %v1080, %v1079
      %v1222 = vpack.c.bf16 %v1082, %v1081
      %v1223 = vpack.c.bf16 %v1084, %v1083
      %v1224 = vpack.c.bf16 %v1086, %v1085
      %v1241 = vunpack.c.l.b16 %v1209
      %v1242 = vunpack.c.h.b16 %v1209
      %v1243 = vunpack.c.l.b16 %v1210
      %v1244 = vunpack.c.h.b16 %v1210
      %v1245 = vunpack.c.l.b16 %v1211
      %v1246 = vunpack.c.h.b16 %v1211
      %v1247 = vunpack.c.l.b16 %v1212
      %v1248 = vunpack.c.h.b16 %v1212
      %v1249 = vunpack.c.l.b16 %v1213
      %v1250 = vunpack.c.h.b16 %v1213
      %v1251 = vunpack.c.l.b16 %v1214
      %v1252 = vunpack.c.h.b16 %v1214
      %v1253 = vunpack.c.l.b16 %v1215
      %v1254 = vunpack.c.h.b16 %v1215
      %v1255 = vunpack.c.l.b16 %v1216
      %v1256 = vunpack.c.h.b16 %v1216
      %v1257 = vunpack.c.l.b16 %v1217
      %v1258 = vunpack.c.h.b16 %v1217
      %v1259 = vunpack.c.l.b16 %v1218
      %v1260 = vunpack.c.h.b16 %v1218
      %v1261 = vunpack.c.l.b16 %v1219
      %v1262 = vunpack.c.h.b16 %v1219
      %v1263 = vunpack.c.l.b16 %v1220
      %v1264 = vunpack.c.h.b16 %v1220
      %v1265 = vunpack.c.l.b16 %v1221
      %v1266 = vunpack.c.h.b16 %v1221
      %v1267 = vunpack.c.l.b16 %v1222
      %v1268 = vunpack.c.h.b16 %v1222
      %v1269 = vunpack.c.l.b16 %v1223
      %v1270 = vunpack.c.h.b16 %v1223
      %v1271 = vunpack.c.l.b16 %v1224
      %v1272 = vunpack.c.h.b16 %v1224
      %v1273 = vpack.c.b16 %v1241, %v1241
      %v1274 = vpack.c.b16 %v1242, %v1242
      %v1275 = vpack.c.b16 %v1243, %v1243
      %v1276 = vpack.c.b16 %v1244, %v1244
      %v1277 = vpack.c.b16 %v1245, %v1245
      %v1278 = vpack.c.b16 %v1246, %v1246
      %v1279 = vpack.c.b16 %v1247, %v1247
      %v1280 = vpack.c.b16 %v1248, %v1248
      %v1281 = vpack.c.b16 %v1249, %v1249
      %v1282 = vpack.c.b16 %v1250, %v1250
      %v1283 = vpack.c.b16 %v1251, %v1251
      %v1284 = vpack.c.b16 %v1252, %v1252
      %v1285 = vpack.c.b16 %v1253, %v1253
      %v1286 = vpack.c.b16 %v1254, %v1254
      %v1287 = vpack.c.b16 %v1255, %v1255
      %v1288 = vpack.c.b16 %v1256, %v1256
      %v1289 = vpack.c.b16 %v1257, %v1257
      %v1290 = vpack.c.b16 %v1258, %v1258
      %v1291 = vpack.c.b16 %v1259, %v1259
      %v1292 = vpack.c.b16 %v1260, %v1260
      %v1293 = vpack.c.b16 %v1261, %v1261
      %v1294 = vpack.c.b16 %v1262, %v1262
      %v1295 = vpack.c.b16 %v1263, %v1263
      %v1296 = vpack.c.b16 %v1264, %v1264
      %v1297 = vpack.c.b16 %v1265, %v1265
      %v1298 = vpack.c.b16 %v1266, %v1266
      %v1299 = vpack.c.b16 %v1267, %v1267
      %v1300 = vpack.c.b16 %v1268, %v1268
      %v1301 = vpack.c.b16 %v1269, %v1269
      %v1302 = vpack.c.b16 %v1270, %v1270
      %v1303 = vpack.c.b16 %v1271, %v1271
      %v1304 = vpack.c.b16 %v1272, %v1272
      %vm1305 = vsmask.f32 4368
      %vm1306 = vmor %vm1097, %vm1305
      %v1308 = vshrl.u32 %v1273, 16
      %v1310 = vrot.slane %v1308, 7
      %v1311 = vshll.u32 %v1273, 16
      %v1313 = vor.u32 %v1310, %v1311
      %v1314 = vrot.slane %v1310, 4
      %v1316 = vshrl.u32 %v1274, 16
      %v1318 = vrot.slane %v1316, 7
      %v1319 = vshll.u32 %v1274, 16
      %v1321 = vor.u32 %v1318, %v1319
      %v1322 = vsel %vm1306, %v1314, %v1321
      %v1323 = vrot.slane %v1318, 4
      %v1325 = vshrl.u32 %v1275, 16
      %v1327 = vrot.slane %v1325, 7
      %v1328 = vshll.u32 %v1275, 16
      %v1330 = vor.u32 %v1327, %v1328
      %v1331 = vrot.slane %v1327, 4
      %v1333 = vshrl.u32 %v1276, 16
      %v1335 = vrot.slane %v1333, 7
      %v1336 = vshll.u32 %v1276, 16
      %v1338 = vor.u32 %v1335, %v1336
      %v1339 = vsel %vm1306, %v1331, %v1338
      %v1340 = vrot.slane %v1335, 4
      %v1342 = vshrl.u32 %v1277, 16
      %v1344 = vrot.slane %v1342, 7
      %v1345 = vshll.u32 %v1277, 16
      %v1347 = vor.u32 %v1344, %v1345
      %v1348 = vrot.slane %v1344, 4
      %v1350 = vshrl.u32 %v1278, 16
      %v1352 = vrot.slane %v1350, 7
      %v1353 = vshll.u32 %v1278, 16
      %v1355 = vor.u32 %v1352, %v1353
      %v1356 = vsel %vm1306, %v1348, %v1355
      %v1357 = vrot.slane %v1352, 4
      %v1359 = vshrl.u32 %v1279, 16
      %v1361 = vrot.slane %v1359, 7
      %v1362 = vshll.u32 %v1279, 16
      %v1364 = vor.u32 %v1361, %v1362
      %v1365 = vrot.slane %v1361, 4
      %v1367 = vshrl.u32 %v1280, 16
      %v1369 = vrot.slane %v1367, 7
      %v1370 = vshll.u32 %v1280, 16
      %v1372 = vor.u32 %v1369, %v1370
      %v1373 = vsel %vm1306, %v1365, %v1372
      %v1374 = vrot.slane %v1369, 4
      %v1376 = vshrl.u32 %v1281, 16
      %v1378 = vrot.slane %v1376, 7
      %v1379 = vshll.u32 %v1281, 16
      %v1381 = vor.u32 %v1378, %v1379
      %v1382 = vrot.slane %v1378, 4
      %v1384 = vshrl.u32 %v1282, 16
      %v1386 = vrot.slane %v1384, 7
      %v1387 = vshll.u32 %v1282, 16
      %v1389 = vor.u32 %v1386, %v1387
      %v1390 = vsel %vm1306, %v1382, %v1389
      %v1391 = vrot.slane %v1386, 4
      %v1393 = vshrl.u32 %v1283, 16
      %v1395 = vrot.slane %v1393, 7
      %v1396 = vshll.u32 %v1283, 16
      %v1398 = vor.u32 %v1395, %v1396
      %v1399 = vrot.slane %v1395, 4
      %v1401 = vshrl.u32 %v1284, 16
      %v1403 = vrot.slane %v1401, 7
      %v1404 = vshll.u32 %v1284, 16
      %v1406 = vor.u32 %v1403, %v1404
      %v1407 = vsel %vm1306, %v1399, %v1406
      %v1408 = vrot.slane %v1403, 4
      %v1410 = vshrl.u32 %v1285, 16
      %v1412 = vrot.slane %v1410, 7
      %v1413 = vshll.u32 %v1285, 16
      %v1415 = vor.u32 %v1412, %v1413
      %v1416 = vrot.slane %v1412, 4
      %v1418 = vshrl.u32 %v1286, 16
      %v1420 = vrot.slane %v1418, 7
      %v1421 = vshll.u32 %v1286, 16
      %v1423 = vor.u32 %v1420, %v1421
      %v1424 = vsel %vm1306, %v1416, %v1423
      %v1425 = vrot.slane %v1420, 4
      %v1427 = vshrl.u32 %v1287, 16
      %v1429 = vrot.slane %v1427, 7
      %v1430 = vshll.u32 %v1287, 16
      %v1432 = vor.u32 %v1429, %v1430
      %v1433 = vrot.slane %v1429, 4
      %v1435 = vshrl.u32 %v1288, 16
      %v1437 = vrot.slane %v1435, 7
      %v1438 = vshll.u32 %v1288, 16
      %v1440 = vor.u32 %v1437, %v1438
      %v1441 = vsel %vm1306, %v1433, %v1440
      %v1442 = vrot.slane %v1437, 4
      %v1444 = vshrl.u32 %v1289, 16
      %v1446 = vrot.slane %v1444, 7
      %v1447 = vshll.u32 %v1289, 16
      %v1449 = vor.u32 %v1446, %v1447
      %v1450 = vrot.slane %v1446, 4
      %v1452 = vshrl.u32 %v1290, 16
      %v1454 = vrot.slane %v1452, 7
      %v1455 = vshll.u32 %v1290, 16
      %v1457 = vor.u32 %v1454, %v1455
      %v1458 = vsel %vm1306, %v1450, %v1457
      %v1459 = vrot.slane %v1454, 4
      %v1461 = vshrl.u32 %v1291, 16
      %v1463 = vrot.slane %v1461, 7
      %v1464 = vshll.u32 %v1291, 16
      %v1466 = vor.u32 %v1463, %v1464
      %v1467 = vrot.slane %v1463, 4
      %v1469 = vshrl.u32 %v1292, 16
      %v1471 = vrot.slane %v1469, 7
      %v1472 = vshll.u32 %v1292, 16
      %v1474 = vor.u32 %v1471, %v1472
      %v1475 = vsel %vm1306, %v1467, %v1474
      %v1476 = vrot.slane %v1471, 4
      %v1478 = vshrl.u32 %v1293, 16
      %v1480 = vrot.slane %v1478, 7
      %v1481 = vshll.u32 %v1293, 16
      %v1483 = vor.u32 %v1480, %v1481
      %v1484 = vrot.slane %v1480, 4
      %v1486 = vshrl.u32 %v1294, 16
      %v1488 = vrot.slane %v1486, 7
      %v1489 = vshll.u32 %v1294, 16
      %v1491 = vor.u32 %v1488, %v1489
      %v1492 = vsel %vm1306, %v1484, %v1491
      %v1493 = vrot.slane %v1488, 4
      %v1495 = vshrl.u32 %v1295, 16
      %v1497 = vrot.slane %v1495, 7
      %v1498 = vshll.u32 %v1295, 16
      %v1500 = vor.u32 %v1497, %v1498
      %v1501 = vrot.slane %v1497, 4
      %v1503 = vshrl.u32 %v1296, 16
      %v1505 = vrot.slane %v1503, 7
      %v1506 = vshll.u32 %v1296, 16
      %v1508 = vor.u32 %v1505, %v1506
      %v1509 = vsel %vm1306, %v1501, %v1508
      %v1510 = vrot.slane %v1505, 4
      %v1512 = vshrl.u32 %v1297, 16
      %v1514 = vrot.slane %v1512, 7
      %v1515 = vshll.u32 %v1297, 16
      %v1517 = vor.u32 %v1514, %v1515
      %v1518 = vrot.slane %v1514, 4
      %v1520 = vshrl.u32 %v1298, 16
      %v1522 = vrot.slane %v1520, 7
      %v1523 = vshll.u32 %v1298, 16
      %v1525 = vor.u32 %v1522, %v1523
      %v1526 = vsel %vm1306, %v1518, %v1525
      %v1527 = vrot.slane %v1522, 4
      %v1529 = vshrl.u32 %v1299, 16
      %v1531 = vrot.slane %v1529, 7
      %v1532 = vshll.u32 %v1299, 16
      %v1534 = vor.u32 %v1531, %v1532
      %v1535 = vrot.slane %v1531, 4
      %v1537 = vshrl.u32 %v1300, 16
      %v1539 = vrot.slane %v1537, 7
      %v1540 = vshll.u32 %v1300, 16
      %v1542 = vor.u32 %v1539, %v1540
      %v1543 = vsel %vm1306, %v1535, %v1542
      %v1544 = vrot.slane %v1539, 4
      %v1546 = vshrl.u32 %v1301, 16
      %v1548 = vrot.slane %v1546, 7
      %v1549 = vshll.u32 %v1301, 16
      %v1551 = vor.u32 %v1548, %v1549
      %v1552 = vrot.slane %v1548, 4
      %v1554 = vshrl.u32 %v1302, 16
      %v1556 = vrot.slane %v1554, 7
      %v1557 = vshll.u32 %v1302, 16
      %v1559 = vor.u32 %v1556, %v1557
      %v1560 = vsel %vm1306, %v1552, %v1559
      %v1561 = vrot.slane %v1556, 4
      %v1563 = vshrl.u32 %v1303, 16
      %v1565 = vrot.slane %v1563, 7
      %v1566 = vshll.u32 %v1303, 16
      %v1568 = vor.u32 %v1565, %v1566
      %v1569 = vrot.slane %v1565, 4
      %v1571 = vshrl.u32 %v1304, 16
      %v1573 = vrot.slane %v1571, 7
      %v1574 = vshll.u32 %v1304, 16
      %v1576 = vor.u32 %v1573, %v1574
      %v1577 = vsel %vm1306, %v1569, %v1576
      %v1578 = vrot.slane %v1573, 4
      %s1627 = scalar_lea.vmem [#allocation2], 12
      %vm1628 = vcmask 60416
      %vm1629 = vmand %vm1628, %vm1153
      %v1630 = vld [vmem:[%s1627] sm:$0xf]
      %v1631 = vsel %vm1629, %v1313, %v1630
      %1632 = vst [vmem:[%s1627] sm:$0xf] %v1631
      %1633 = vst.msk [vmem:[%s1627 + $0x4] sm:$0xf] %vm1087, %v1322
      %v1634 = vld [vmem:[%s1627 + $0x8] sm:$0x1]
      %v1635 = vsel %vm1098, %v1323, %v1634
      %1636 = vst [vmem:[%s1627 + $0x8] sm:$0x1] %v1635
      %v1637 = vld [vmem:[%s1627 + $0xc] sm:$0xf]
      %v1638 = vsel %vm1629, %v1330, %v1637
      %1639 = vst [vmem:[%s1627 + $0xc] sm:$0xf] %v1638
      %1640 = vst.msk [vmem:[%s1627 + $0x10] sm:$0xf] %vm1087, %v1339
      %v1641 = vld [vmem:[%s1627 + $0x14] sm:$0x1]
      %v1642 = vsel %vm1098, %v1340, %v1641
      %1643 = vst [vmem:[%s1627 + $0x14] sm:$0x1] %v1642
      %v1644 = vld [vmem:[%s1627 + $0x18] sm:$0xf]
      %v1645 = vsel %vm1629, %v1347, %v1644
      %1646 = vst [vmem:[%s1627 + $0x18] sm:$0xf] %v1645
      %1647 = vst.msk [vmem:[%s1627 + $0x1c] sm:$0xf] %vm1087, %v1356
      %v1648 = vld [vmem:[%s1627 + $0x20] sm:$0x1]
      %v1649 = vsel %vm1098, %v1357, %v1648
      %1650 = vst [vmem:[%s1627 + $0x20] sm:$0x1] %v1649
      %v1651 = vld [vmem:[%s1627 + $0x24] sm:$0xf]
      %v1652 = vsel %vm1629, %v1364, %v1651
      %1653 = vst [vmem:[%s1627 + $0x24] sm:$0xf] %v1652
      %1654 = vst.msk [vmem:[%s1627 + $0x28] sm:$0xf] %vm1087, %v1373
      %v1655 = vld [vmem:[%s1627 + $0x2c] sm:$0x1]
      %v1656 = vsel %vm1098, %v1374, %v1655
      %1657 = vst [vmem:[%s1627 + $0x2c] sm:$0x1] %v1656
      %v1658 = vld [vmem:[%s1627 + $0x30] sm:$0xf]
      %v1659 = vsel %vm1629, %v1381, %v1658
      %1660 = vst [vmem:[%s1627 + $0x30] sm:$0xf] %v1659
      %1661 = vst.msk [vmem:[%s1627 + $0x34] sm:$0xf] %vm1087, %v1390
      %v1662 = vld [vmem:[%s1627 + $0x38] sm:$0x1]
      %v1663 = vsel %vm1098, %v1391, %v1662
      %1664 = vst [vmem:[%s1627 + $0x38] sm:$0x1] %v1663
      %v1665 = vld [vmem:[%s1627 + $0x3c] sm:$0xf]
      %v1666 = vsel %vm1629, %v1398, %v1665
      %1667 = vst [vmem:[%s1627 + $0x3c] sm:$0xf] %v1666
      %1668 = vst.msk [vmem:[%s1627 + $0x40] sm:$0xf] %vm1087, %v1407
      %v1669 = vld [vmem:[%s1627 + $0x44] sm:$0x1]
      %v1670 = vsel %vm1098, %v1408, %v1669
      %1671 = vst [vmem:[%s1627 + $0x44] sm:$0x1] %v1670
      %v1672 = vld [vmem:[%s1627 + $0x48] sm:$0xf]
      %v1673 = vsel %vm1629, %v1415, %v1672
      %1674 = vst [vmem:[%s1627 + $0x48] sm:$0xf] %v1673
      %1675 = vst.msk [vmem:[%s1627 + $0x4c] sm:$0xf] %vm1087, %v1424
      %v1676 = vld [vmem:[%s1627 + $0x50] sm:$0x1]
      %v1677 = vsel %vm1098, %v1425, %v1676
      %1678 = vst [vmem:[%s1627 + $0x50] sm:$0x1] %v1677
      %v1679 = vld [vmem:[%s1627 + $0x54] sm:$0xf]
      %v1680 = vsel %vm1629, %v1432, %v1679
      %1681 = vst [vmem:[%s1627 + $0x54] sm:$0xf] %v1680
      %1682 = vst.msk [vmem:[%s1627 + $0x58] sm:$0xf] %vm1087, %v1441
      %v1683 = vld [vmem:[%s1627 + $0x5c] sm:$0x1]
      %v1684 = vsel %vm1098, %v1442, %v1683
      %1685 = vst [vmem:[%s1627 + $0x5c] sm:$0x1] %v1684
      %v1686 = vld [vmem:[%s1627 + $0x60] sm:$0xf]
      %v1687 = vsel %vm1629, %v1449, %v1686
      %1688 = vst [vmem:[%s1627 + $0x60] sm:$0xf] %v1687
      %1689 = vst.msk [vmem:[%s1627 + $0x64] sm:$0xf] %vm1087, %v1458
      %v1690 = vld [vmem:[%s1627 + $0x68] sm:$0x1]
      %v1691 = vsel %vm1098, %v1459, %v1690
      %1692 = vst [vmem:[%s1627 + $0x68] sm:$0x1] %v1691
      %v1693 = vld [vmem:[%s1627 + $0x6c] sm:$0xf]
      %v1694 = vsel %vm1629, %v1466, %v1693
      %1695 = vst [vmem:[%s1627 + $0x6c] sm:$0xf] %v1694
      %1696 = vst.msk [vmem:[%s1627 + $0x70] sm:$0xf] %vm1087, %v1475
      %v1697 = vld [vmem:[%s1627 + $0x74] sm:$0x1]
      %v1698 = vsel %vm1098, %v1476, %v1697
      %1699 = vst [vmem:[%s1627 + $0x74] sm:$0x1] %v1698
      %v1700 = vld [vmem:[%s1627 + $0x78] sm:$0xf]
      %v1701 = vsel %vm1629, %v1483, %v1700
      %1702 = vst [vmem:[%s1627 + $0x78] sm:$0xf] %v1701
      %1703 = vst.msk [vmem:[%s1627 + $0x7c] sm:$0xf] %vm1087, %v1492
      %v1704 = vld [vmem:[%s1627 + $0x80] sm:$0x1]
      %v1705 = vsel %vm1098, %v1493, %v1704
      %1706 = vst [vmem:[%s1627 + $0x80] sm:$0x1] %v1705
      %v1707 = vld [vmem:[%s1627 + $0x84] sm:$0xf]
      %v1708 = vsel %vm1629, %v1500, %v1707
      %1709 = vst [vmem:[%s1627 + $0x84] sm:$0xf] %v1708
      %1710 = vst.msk [vmem:[%s1627 + $0x88] sm:$0xf] %vm1087, %v1509
      %v1711 = vld [vmem:[%s1627 + $0x8c] sm:$0x1]
      %v1712 = vsel %vm1098, %v1510, %v1711
      %1713 = vst [vmem:[%s1627 + $0x8c] sm:$0x1] %v1712
      %v1714 = vld [vmem:[%s1627 + $0x90] sm:$0xf]
      %v1715 = vsel %vm1629, %v1517, %v1714
      %1716 = vst [vmem:[%s1627 + $0x90] sm:$0xf] %v1715
      %1717 = vst.msk [vmem:[%s1627 + $0x94] sm:$0xf] %vm1087, %v1526
      %v1718 = vld [vmem:[%s1627 + $0x98] sm:$0x1]
      %v1719 = vsel %vm1098, %v1527, %v1718
      %1720 = vst [vmem:[%s1627 + $0x98] sm:$0x1] %v1719
      %v1721 = vld [vmem:[%s1627 + $0x9c] sm:$0xf]
      %v1722 = vsel %vm1629, %v1534, %v1721
      %1723 = vst [vmem:[%s1627 + $0x9c] sm:$0xf] %v1722
      %1724 = vst.msk [vmem:[%s1627 + $0xa0] sm:$0xf] %vm1087, %v1543
      %v1725 = vld [vmem:[%s1627 + $0xa4] sm:$0x1]
      %v1726 = vsel %vm1098, %v1544, %v1725
      %1727 = vst [vmem:[%s1627 + $0xa4] sm:$0x1] %v1726
      %v1728 = vld [vmem:[%s1627 + $0xa8] sm:$0xf]
      %v1729 = vsel %vm1629, %v1551, %v1728
      %1730 = vst [vmem:[%s1627 + $0xa8] sm:$0xf] %v1729
      %1731 = vst.msk [vmem:[%s1627 + $0xac] sm:$0xf] %vm1087, %v1560
      %v1732 = vld [vmem:[%s1627 + $0xb0] sm:$0x1]
      %v1733 = vsel %vm1098, %v1561, %v1732
      %1734 = vst [vmem:[%s1627 + $0xb0] sm:$0x1] %v1733
      %v1735 = vld [vmem:[%s1627 + $0xb4] sm:$0xf]
      %v1736 = vsel %vm1629, %v1568, %v1735
      %1737 = vst [vmem:[%s1627 + $0xb4] sm:$0xf] %v1736
      %1738 = vst.msk [vmem:[%s1627 + $0xb8] sm:$0xf] %vm1087, %v1577
      %v1739 = vld [vmem:[%s1627 + $0xbc] sm:$0x1]
      %v1740 = vsel %vm1098, %v1578, %v1739
      %1741 = vst [vmem:[%s1627 + $0xbc] sm:$0x1] %v1740
      %v1742 = vld [vmem:[#allocation2] sm:$0xf]
      %v1743 = vld [vmem:[#allocation2 + $0x4] sm:$0xf]
      %v1744 = vld [vmem:[#allocation2 + $0xc] sm:$0xf]
      %v1745 = vld [vmem:[#allocation2 + $0x10] sm:$0xf]
      %v1746 = vld [vmem:[#allocation2 + $0x18] sm:$0xf]
      %v1747 = vld [vmem:[#allocation2 + $0x1c] sm:$0xf]
      %v1748 = vld [vmem:[#allocation2 + $0x24] sm:$0xf]
      %v1749 = vld [vmem:[#allocation2 + $0x28] sm:$0xf]
      %v1750 = vld [vmem:[#allocation2 + $0x30] sm:$0xf]
      %v1751 = vld [vmem:[#allocation2 + $0x34] sm:$0xf]
      %v1752 = vld [vmem:[#allocation2 + $0x3c] sm:$0xf]
      %v1753 = vld [vmem:[#allocation2 + $0x40] sm:$0xf]
      %v1754 = vld [vmem:[#allocation2 + $0x48] sm:$0xf]
      %v1755 = vld [vmem:[#allocation2 + $0x4c] sm:$0xf]
      %v1756 = vld [vmem:[#allocation2 + $0x54] sm:$0xf]
      %v1757 = vld [vmem:[#allocation2 + $0x58] sm:$0xf]
      %v1758 = vld [vmem:[#allocation2 + $0x60] sm:$0xf]
      %v1759 = vld [vmem:[#allocation2 + $0x64] sm:$0xf]
      %v1760 = vld [vmem:[#allocation2 + $0x6c] sm:$0xf]
      %v1761 = vld [vmem:[#allocation2 + $0x70] sm:$0xf]
      %v1762 = vld [vmem:[#allocation2 + $0x78] sm:$0xf]
      %v1763 = vld [vmem:[#allocation2 + $0x7c] sm:$0xf]
      %v1764 = vld [vmem:[#allocation2 + $0x84] sm:$0xf]
      %v1765 = vld [vmem:[#allocation2 + $0x88] sm:$0xf]
      %v1766 = vld [vmem:[#allocation2 + $0x90] sm:$0xf]
      %v1767 = vld [vmem:[#allocation2 + $0x94] sm:$0xf]
      %v1768 = vld [vmem:[#allocation2 + $0x9c] sm:$0xf]
      %v1769 = vld [vmem:[#allocation2 + $0xa0] sm:$0xf]
      %v1770 = vld [vmem:[#allocation2 + $0xa8] sm:$0xf]
      %v1771 = vld [vmem:[#allocation2 + $0xac] sm:$0xf]
      %v1772 = vld [vmem:[#allocation2 + $0xb4] sm:$0xf]
      %v1773 = vld [vmem:[#allocation2 + $0xb8] sm:$0xf]
      %v1774 = vld [vmem:[#allocation2 + $0xc0] sm:$0xf]
      %v1775 = vld [vmem:[#allocation2 + $0xc4] sm:$0xf]
      %v1776 = vld [vmem:[#allocation2 + $0xcc] sm:$0xf]
      %v1777 = vld [vmem:[#allocation2 + $0xd0] sm:$0xf]
      %1778 = vst.msk [vmem:[#allocation3] sm:$0xf] %vm1087, %v1742
      %1779 = vst.msk [vmem:[#allocation3 + $0x4] sm:$0xf] %vm1087, %v1743
      %1780 = vst.msk [vmem:[#allocation3 + $0x8] sm:$0xf] %vm1087, %v1744
      %1781 = vst.msk [vmem:[#allocation3 + $0xc] sm:$0xf] %vm1087, %v1745
      %1782 = vst.msk [vmem:[#allocation3 + $0x10] sm:$0xf] %vm1087, %v1746
      %1783 = vst.msk [vmem:[#allocation3 + $0x14] sm:$0xf] %vm1087, %v1747
      %1784 = vst.msk [vmem:[#allocation3 + $0x18] sm:$0xf] %vm1087, %v1748
      %1785 = vst.msk [vmem:[#allocation3 + $0x1c] sm:$0xf] %vm1087, %v1749
      %1786 = vst.msk [vmem:[#allocation3 + $0x20] sm:$0xf] %vm1087, %v1750
      %1787 = vst.msk [vmem:[#allocation3 + $0x24] sm:$0xf] %vm1087, %v1751
      %1788 = vst.msk [vmem:[#allocation3 + $0x28] sm:$0xf] %vm1087, %v1752
      %1789 = vst.msk [vmem:[#allocation3 + $0x2c] sm:$0xf] %vm1087, %v1753
      %1790 = vst.msk [vmem:[#allocation3 + $0x30] sm:$0xf] %vm1087, %v1754
      %1791 = vst.msk [vmem:[#allocation3 + $0x34] sm:$0xf] %vm1087, %v1755
      %1792 = vst.msk [vmem:[#allocation3 + $0x38] sm:$0xf] %vm1087, %v1756
      %1793 = vst.msk [vmem:[#allocation3 + $0x3c] sm:$0xf] %vm1087, %v1757
      %1794 = vst.msk [vmem:[#allocation3 + $0x40] sm:$0xf] %vm1087, %v1758
      %1795 = vst.msk [vmem:[#allocation3 + $0x44] sm:$0xf] %vm1087, %v1759
      %1796 = vst.msk [vmem:[#allocation3 + $0x48] sm:$0xf] %vm1087, %v1760
      %1797 = vst.msk [vmem:[#allocation3 + $0x4c] sm:$0xf] %vm1087, %v1761
      %1798 = vst.msk [vmem:[#allocation3 + $0x50] sm:$0xf] %vm1087, %v1762
      %1799 = vst.msk [vmem:[#allocation3 + $0x54] sm:$0xf] %vm1087, %v1763
      %1800 = vst.msk [vmem:[#allocation3 + $0x58] sm:$0xf] %vm1087, %v1764
      %1801 = vst.msk [vmem:[#allocation3 + $0x5c] sm:$0xf] %vm1087, %v1765
      %1802 = vst.msk [vmem:[#allocation3 + $0x60] sm:$0xf] %vm1087, %v1766
      %1803 = vst.msk [vmem:[#allocation3 + $0x64] sm:$0xf] %vm1087, %v1767
      %1804 = vst.msk [vmem:[#allocation3 + $0x68] sm:$0xf] %vm1087, %v1768
      %1805 = vst.msk [vmem:[#allocation3 + $0x6c] sm:$0xf] %vm1087, %v1769
      %1806 = vst.msk [vmem:[#allocation3 + $0x70] sm:$0xf] %vm1087, %v1770
      %1807 = vst.msk [vmem:[#allocation3 + $0x74] sm:$0xf] %vm1087, %v1771
      %1808 = vst.msk [vmem:[#allocation3 + $0x78] sm:$0xf] %vm1087, %v1772
      %1809 = vst.msk [vmem:[#allocation3 + $0x7c] sm:$0xf] %vm1087, %v1773
      %1810 = vst.msk [vmem:[#allocation3 + $0x80] sm:$0xf] %vm1087, %v1774
      %1811 = vst.msk [vmem:[#allocation3 + $0x84] sm:$0xf] %vm1087, %v1775
      %1812 = vst.msk [vmem:[#allocation3 + $0x88] sm:$0xf] %vm1087, %v1776
      %1813 = vst.msk [vmem:[#allocation3 + $0x8c] sm:$0xf] %vm1087, %v1777
      %v1814 = vld [vmem:[#allocation2] sm:$0xf]
      %v1815 = vld [vmem:[#allocation2 + $0x4] sm:$0xf]
      %v1816 = vld [vmem:[#allocation2 + $0x8] sm:$0x1]
      %v1817 = vld [vmem:[#allocation2 + $0xc] sm:$0xf]
      %v1818 = vld [vmem:[#allocation2 + $0x10] sm:$0xf]
      %v1819 = vld [vmem:[#allocation2 + $0x14] sm:$0x1]
      %v1820 = vld [vmem:[#allocation2 + $0x18] sm:$0xf]
      %v1821 = vld [vmem:[#allocation2 + $0x1c] sm:$0xf]
      %v1822 = vld [vmem:[#allocation2 + $0x20] sm:$0x1]
      %v1823 = vld [vmem:[#allocation2 + $0x24] sm:$0xf]
      %v1824 = vld [vmem:[#allocation2 + $0x28] sm:$0xf]
      %v1825 = vld [vmem:[#allocation2 + $0x2c] sm:$0x1]
      %v1826 = vld [vmem:[#allocation2 + $0x30] sm:$0xf]
      %v1827 = vld [vmem:[#allocation2 + $0x34] sm:$0xf]
      %v1828 = vld [vmem:[#allocation2 + $0x38] sm:$0x1]
      %v1829 = vld [vmem:[#allocation2 + $0x3c] sm:$0xf]
      %v1830 = vld [vmem:[#allocation2 + $0x40] sm:$0xf]
      %v1831 = vld [vmem:[#allocation2 + $0x44] sm:$0x1]
      %v1832 = vld [vmem:[#allocation2 + $0x48] sm:$0xf]
      %v1833 = vld [vmem:[#allocation2 + $0x4c] sm:$0xf]
      %v1834 = vld [vmem:[#allocation2 + $0x50] sm:$0x1]
      %v1835 = vld [vmem:[#allocation2 + $0x54] sm:$0xf]
      %v1836 = vld [vmem:[#allocation2 + $0x58] sm:$0xf]
      %v1837 = vld [vmem:[#allocation2 + $0x5c] sm:$0x1]
      %v1838 = vld [vmem:[#allocation2 + $0x60] sm:$0xf]
      %v1839 = vld [vmem:[#allocation2 + $0x64] sm:$0xf]
      %v1840 = vld [vmem:[#allocation2 + $0x68] sm:$0x1]
      %v1841 = vld [vmem:[#allocation2 + $0x6c] sm:$0xf]
      %v1842 = vld [vmem:[#allocation2 + $0x70] sm:$0xf]
      %v1843 = vld [vmem:[#allocation2 + $0x74] sm:$0x1]
      %v1844 = vld [vmem:[#allocation2 + $0x78] sm:$0xf]
      %v1845 = vld [vmem:[#allocation2 + $0x7c] sm:$0xf]
      %v1846 = vld [vmem:[#allocation2 + $0x80] sm:$0x1]
      %v1847 = vld [vmem:[#allocation2 + $0x84] sm:$0xf]
      %v1848 = vld [vmem:[#allocation2 + $0x88] sm:$0xf]
      %v1849 = vld [vmem:[#allocation2 + $0x8c] sm:$0x1]
      %v1850 = vld [vmem:[#allocation2 + $0x90] sm:$0xf]
      %v1851 = vld [vmem:[#allocation2 + $0x94] sm:$0xf]
      %v1852 = vld [vmem:[#allocation2 + $0x98] sm:$0x1]
      %v1853 = vld [vmem:[#allocation2 + $0x9c] sm:$0xf]
      %v1854 = vld [vmem:[#allocation2 + $0xa0] sm:$0xf]
      %v1855 = vld [vmem:[#allocation2 + $0xa4] sm:$0x1]
      %v1856 = vld [vmem:[#allocation2 + $0xa8] sm:$0xf]
      %v1857 = vld [vmem:[#allocation2 + $0xac] sm:$0xf]
      %v1858 = vld [vmem:[#allocation2 + $0xb0] sm:$0x1]
      %v1859 = vld [vmem:[#allocation2 + $0xb4] sm:$0xf]
      %v1860 = vld [vmem:[#allocation2 + $0xb8] sm:$0xf]
      %v1861 = vld [vmem:[#allocation2 + $0xbc] sm:$0x1]
      %v1862 = vld [vmem:[#allocation2 + $0xc0] sm:$0xf]
      %v1863 = vld [vmem:[#allocation2 + $0xc4] sm:$0xf]
      %v1864 = vld [vmem:[#allocation2 + $0xc8] sm:$0x1]
      %v1865 = vld [vmem:[#allocation2 + $0xcc] sm:$0xf]
      %v1866 = vld [vmem:[#allocation2 + $0xd0] sm:$0xf]
      %v1867 = vld [vmem:[#allocation2 + $0xd4] sm:$0x1]
      %vm1868 = vsmask.f32 3328
      %vm1869 = vsmask.f32 7440
      %vm1870 = vmor %vm1868, %vm1869
      %v1872 = vshrl.u32 %v1814, 16
      %v1874 = vrot.slane %v1872, 4
      %v1875 = vshll.u32 %v1814, 16
      %v1877 = vrot.slane %v1875, 5
      %v1878 = vor.u32 %v1874, %v1877
      %v1879 = vrot.slane %v1878, 4
      %v1881 = vshll.u32 %v1815, 16
      %v1883 = vrot.slane %v1881, 5
      %v1884 = vsel %vm1870, %v1879, %v1883
      %v1885 = vshrl.u32 %v1815, 16
      %v1887 = vrot.slane %v1885, 4
      %v1888 = vor.u32 %v1887, %v1883
      %v1889 = vrot.slane %v1888, 4
      %v1891 = vshll.u32 %v1816, 16
      %v1893 = vrot.slane %v1891, 5
      %v1894 = vsel %vm1870, %v1889, %v1893
      %v1896 = vshrl.u32 %v1817, 16
      %v1898 = vrot.slane %v1896, 4
      %v1899 = vshll.u32 %v1817, 16
      %v1901 = vrot.slane %v1899, 5
      %v1902 = vor.u32 %v1898, %v1901
      %v1903 = vrot.slane %v1902, 4
      %v1905 = vshll.u32 %v1818, 16
      %v1907 = vrot.slane %v1905, 5
      %v1908 = vsel %vm1870, %v1903, %v1907
      %v1909 = vshrl.u32 %v1818, 16
      %v1911 = vrot.slane %v1909, 4
      %v1912 = vor.u32 %v1911, %v1907
      %v1913 = vrot.slane %v1912, 4
      %v1915 = vshll.u32 %v1819, 16
      %v1917 = vrot.slane %v1915, 5
      %v1918 = vsel %vm1870, %v1913, %v1917
      %v1920 = vshrl.u32 %v1820, 16
      %v1922 = vrot.slane %v1920, 4
      %v1923 = vshll.u32 %v1820, 16
      %v1925 = vrot.slane %v1923, 5
      %v1926 = vor.u32 %v1922, %v1925
      %v1927 = vrot.slane %v1926, 4
      %v1929 = vshll.u32 %v1821, 16
      %v1931 = vrot.slane %v1929, 5
      %v1932 = vsel %vm1870, %v1927, %v1931
      %v1933 = vshrl.u32 %v1821, 16
      %v1935 = vrot.slane %v1933, 4
      %v1936 = vor.u32 %v1935, %v1931
      %v1937 = vrot.slane %v1936, 4
      %v1939 = vshll.u32 %v1822, 16
      %v1941 = vrot.slane %v1939, 5
      %v1942 = vsel %vm1870, %v1937, %v1941
      %v1944 = vshrl.u32 %v1823, 16
      %v1946 = vrot.slane %v1944, 4
      %v1947 = vshll.u32 %v1823, 16
      %v1949 = vrot.slane %v1947, 5
      %v1950 = vor.u32 %v1946, %v1949
      %v1951 = vrot.slane %v1950, 4
      %v1953 = vshll.u32 %v1824, 16
      %v1955 = vrot.slane %v1953, 5
      %v1956 = vsel %vm1870, %v1951, %v1955
      %v1957 = vshrl.u32 %v1824, 16
      %v1959 = vrot.slane %v1957, 4
      %v1960 = vor.u32 %v1959, %v1955
      %v1961 = vrot.slane %v1960, 4
      %v1963 = vshll.u32 %v1825, 16
      %v1965 = vrot.slane %v1963, 5
      %v1966 = vsel %vm1870, %v1961, %v1965
      %v1968 = vshrl.u32 %v1826, 16
      %v1970 = vrot.slane %v1968, 4
      %v1971 = vshll.u32 %v1826, 16
      %v1973 = vrot.slane %v1971, 5
      %v1974 = vor.u32 %v1970, %v1973
      %v1975 = vrot.slane %v1974, 4
      %v1977 = vshll.u32 %v1827, 16
      %v1979 = vrot.slane %v1977, 5
      %v1980 = vsel %vm1870, %v1975, %v1979
      %v1981 = vshrl.u32 %v1827, 16
      %v1983 = vrot.slane %v1981, 4
      %v1984 = vor.u32 %v1983, %v1979
      %v1985 = vrot.slane %v1984, 4
      %v1987 = vshll.u32 %v1828, 16
      %v1989 = vrot.slane %v1987, 5
      %v1990 = vsel %vm1870, %v1985, %v1989
      %v1992 = vshrl.u32 %v1829, 16
      %v1994 = vrot.slane %v1992, 4
      %v1995 = vshll.u32 %v1829, 16
      %v1997 = vrot.slane %v1995, 5
      %v1998 = vor.u32 %v1994, %v1997
      %v1999 = vrot.slane %v1998, 4
      %v2001 = vshll.u32 %v1830, 16
      %v2003 = vrot.slane %v2001, 5
      %v2004 = vsel %vm1870, %v1999, %v2003
      %v2005 = vshrl.u32 %v1830, 16
      %v2007 = vrot.slane %v2005, 4
      %v2008 = vor.u32 %v2007, %v2003
      %v2009 = vrot.slane %v2008, 4
      %v2011 = vshll.u32 %v1831, 16
      %v2013 = vrot.slane %v2011, 5
      %v2014 = vsel %vm1870, %v2009, %v2013
      %v2016 = vshrl.u32 %v1832, 16
      %v2018 = vrot.slane %v2016, 4
      %v2019 = vshll.u32 %v1832, 16
      %v2021 = vrot.slane %v2019, 5
      %v2022 = vor.u32 %v2018, %v2021
      %v2023 = vrot.slane %v2022, 4
      %v2025 = vshll.u32 %v1833, 16
      %v2027 = vrot.slane %v2025, 5
      %v2028 = vsel %vm1870, %v2023, %v2027
      %v2029 = vshrl.u32 %v1833, 16
      %v2031 = vrot.slane %v2029, 4
      %v2032 = vor.u32 %v2031, %v2027
      %v2033 = vrot.slane %v2032, 4
      %v2035 = vshll.u32 %v1834, 16
      %v2037 = vrot.slane %v2035, 5
      %v2038 = vsel %vm1870, %v2033, %v2037
      %v2040 = vshrl.u32 %v1835, 16
      %v2042 = vrot.slane %v2040, 4
      %v2043 = vshll.u32 %v1835, 16
      %v2045 = vrot.slane %v2043, 5
      %v2046 = vor.u32 %v2042, %v2045
      %v2047 = vrot.slane %v2046, 4
      %v2049 = vshll.u32 %v1836, 16
      %v2051 = vrot.slane %v2049, 5
      %v2052 = vsel %vm1870, %v2047, %v2051
      %v2053 = vshrl.u32 %v1836, 16
      %v2055 = vrot.slane %v2053, 4
      %v2056 = vor.u32 %v2055, %v2051
      %v2057 = vrot.slane %v2056, 4
      %v2059 = vshll.u32 %v1837, 16
      %v2061 = vrot.slane %v2059, 5
      %v2062 = vsel %vm1870, %v2057, %v2061
      %v2064 = vshrl.u32 %v1838, 16
      %v2066 = vrot.slane %v2064, 4
      %v2067 = vshll.u32 %v1838, 16
      %v2069 = vrot.slane %v2067, 5
      %v2070 = vor.u32 %v2066, %v2069
      %v2071 = vrot.slane %v2070, 4
      %v2073 = vshll.u32 %v1839, 16
      %v2075 = vrot.slane %v2073, 5
      %v2076 = vsel %vm1870, %v2071, %v2075
      %v2077 = vshrl.u32 %v1839, 16
      %v2079 = vrot.slane %v2077, 4
      %v2080 = vor.u32 %v2079, %v2075
      %v2081 = vrot.slane %v2080, 4
      %v2083 = vshll.u32 %v1840, 16
      %v2085 = vrot.slane %v2083, 5
      %v2086 = vsel %vm1870, %v2081, %v2085
      %v2088 = vshrl.u32 %v1841, 16
      %v2090 = vrot.slane %v2088, 4
      %v2091 = vshll.u32 %v1841, 16
      %v2093 = vrot.slane %v2091, 5
      %v2094 = vor.u32 %v2090, %v2093
      %v2095 = vrot.slane %v2094, 4
      %v2097 = vshll.u32 %v1842, 16
      %v2099 = vrot.slane %v2097, 5
      %v2100 = vsel %vm1870, %v2095, %v2099
      %v2101 = vshrl.u32 %v1842, 16
      %v2103 = vrot.slane %v2101, 4
      %v2104 = vor.u32 %v2103, %v2099
      %v2105 = vrot.slane %v2104, 4
      %v2107 = vshll.u32 %v1843, 16
      %v2109 = vrot.slane %v2107, 5
      %v2110 = vsel %vm1870, %v2105, %v2109
      %v2112 = vshrl.u32 %v1844, 16
      %v2114 = vrot.slane %v2112, 4
      %v2115 = vshll.u32 %v1844, 16
      %v2117 = vrot.slane %v2115, 5
      %v2118 = vor.u32 %v2114, %v2117
      %v2119 = vrot.slane %v2118, 4
      %v2121 = vshll.u32 %v1845, 16
      %v2123 = vrot.slane %v2121, 5
      %v2124 = vsel %vm1870, %v2119, %v2123
      %v2125 = vshrl.u32 %v1845, 16
      %v2127 = vrot.slane %v2125, 4
      %v2128 = vor.u32 %v2127, %v2123
      %v2129 = vrot.slane %v2128, 4
      %v2131 = vshll.u32 %v1846, 16
      %v2133 = vrot.slane %v2131, 5
      %v2134 = vsel %vm1870, %v2129, %v2133
      %v2136 = vshrl.u32 %v1847, 16
      %v2138 = vrot.slane %v2136, 4
      %v2139 = vshll.u32 %v1847, 16
      %v2141 = vrot.slane %v2139, 5
      %v2142 = vor.u32 %v2138, %v2141
      %v2143 = vrot.slane %v2142, 4
      %v2145 = vshll.u32 %v1848, 16
      %v2147 = vrot.slane %v2145, 5
      %v2148 = vsel %vm1870, %v2143, %v2147
      %v2149 = vshrl.u32 %v1848, 16
      %v2151 = vrot.slane %v2149, 4
      %v2152 = vor.u32 %v2151, %v2147
      %v2153 = vrot.slane %v2152, 4
      %v2155 = vshll.u32 %v1849, 16
      %v2157 = vrot.slane %v2155, 5
      %v2158 = vsel %vm1870, %v2153, %v2157
      %v2160 = vshrl.u32 %v1850, 16
      %v2162 = vrot.slane %v2160, 4
      %v2163 = vshll.u32 %v1850, 16
      %v2165 = vrot.slane %v2163, 5
      %v2166 = vor.u32 %v2162, %v2165
      %v2167 = vrot.slane %v2166, 4
      %v2169 = vshll.u32 %v1851, 16
      %v2171 = vrot.slane %v2169, 5
      %v2172 = vsel %vm1870, %v2167, %v2171
      %v2173 = vshrl.u32 %v1851, 16
      %v2175 = vrot.slane %v2173, 4
      %v2176 = vor.u32 %v2175, %v2171
      %v2177 = vrot.slane %v2176, 4
      %v2179 = vshll.u32 %v1852, 16
      %v2181 = vrot.slane %v2179, 5
      %v2182 = vsel %vm1870, %v2177, %v2181
      %v2184 = vshrl.u32 %v1853, 16
      %v2186 = vrot.slane %v2184, 4
      %v2187 = vshll.u32 %v1853, 16
      %v2189 = vrot.slane %v2187, 5
      %v2190 = vor.u32 %v2186, %v2189
      %v2191 = vrot.slane %v2190, 4
      %v2193 = vshll.u32 %v1854, 16
      %v2195 = vrot.slane %v2193, 5
      %v2196 = vsel %vm1870, %v2191, %v2195
      %v2197 = vshrl.u32 %v1854, 16
      %v2199 = vrot.slane %v2197, 4
      %v2200 = vor.u32 %v2199, %v2195
      %v2201 = vrot.slane %v2200, 4
      %v2203 = vshll.u32 %v1855, 16
      %v2205 = vrot.slane %v2203, 5
      %v2206 = vsel %vm1870, %v2201, %v2205
      %v2208 = vshrl.u32 %v1856, 16
      %v2210 = vrot.slane %v2208, 4
      %v2211 = vshll.u32 %v1856, 16
      %v2213 = vrot.slane %v2211, 5
      %v2214 = vor.u32 %v2210, %v2213
      %v2215 = vrot.slane %v2214, 4
      %v2217 = vshll.u32 %v1857, 16
      %v2219 = vrot.slane %v2217, 5
      %v2220 = vsel %vm1870, %v2215, %v2219
      %v2221 = vshrl.u32 %v1857, 16
      %v2223 = vrot.slane %v2221, 4
      %v2224 = vor.u32 %v2223, %v2219
      %v2225 = vrot.slane %v2224, 4
      %v2227 = vshll.u32 %v1858, 16
      %v2229 = vrot.slane %v2227, 5
      %v2230 = vsel %vm1870, %v2225, %v2229
      %v2232 = vshrl.u32 %v1859, 16
      %v2234 = vrot.slane %v2232, 4
      %v2235 = vshll.u32 %v1859, 16
      %v2237 = vrot.slane %v2235, 5
      %v2238 = vor.u32 %v2234, %v2237
      %v2239 = vrot.slane %v2238, 4
      %v2241 = vshll.u32 %v1860, 16
      %v2243 = vrot.slane %v2241, 5
      %v2244 = vsel %vm1870, %v2239, %v2243
      %v2245 = vshrl.u32 %v1860, 16
      %v2247 = vrot.slane %v2245, 4
      %v2248 = vor.u32 %v2247, %v2243
      %v2249 = vrot.slane %v2248, 4
      %v2251 = vshll.u32 %v1861, 16
      %v2253 = vrot.slane %v2251, 5
      %v2254 = vsel %vm1870, %v2249, %v2253
      %v2256 = vshrl.u32 %v1862, 16
      %v2258 = vrot.slane %v2256, 4
      %v2259 = vshll.u32 %v1862, 16
      %v2261 = vrot.slane %v2259, 5
      %v2262 = vor.u32 %v2258, %v2261
      %v2263 = vrot.slane %v2262, 4
      %v2265 = vshll.u32 %v1863, 16
      %v2267 = vrot.slane %v2265, 5
      %v2268 = vsel %vm1870, %v2263, %v2267
      %v2269 = vshrl.u32 %v1863, 16
      %v2271 = vrot.slane %v2269, 4
      %v2272 = vor.u32 %v2271, %v2267
      %v2273 = vrot.slane %v2272, 4
      %v2275 = vshll.u32 %v1864, 16
      %v2277 = vrot.slane %v2275, 5
      %v2278 = vsel %vm1870, %v2273, %v2277
      %v2280 = vshrl.u32 %v1865, 16
      %v2282 = vrot.slane %v2280, 4
      %v2283 = vshll.u32 %v1865, 16
      %v2285 = vrot.slane %v2283, 5
      %v2286 = vor.u32 %v2282, %v2285
      %v2287 = vrot.slane %v2286, 4
      %v2289 = vshll.u32 %v1866, 16
      %v2291 = vrot.slane %v2289, 5
      %v2292 = vsel %vm1870, %v2287, %v2291
      %v2293 = vshrl.u32 %v1866, 16
      %v2295 = vrot.slane %v2293, 4
      %v2296 = vor.u32 %v2295, %v2291
      %v2297 = vrot.slane %v2296, 4
      %v2299 = vshll.u32 %v1867, 16
      %v2301 = vrot.slane %v2299, 5
      %v2302 = vsel %vm1870, %v2297, %v2301
      %2303 = vrot.lane.b32.xlu0 %v1884, 8
      %v2304 = vpop.permute.xlu0 %2303
      %2305 = vrot.lane.b32.xlu0 %v1894, 8
      %v2306 = vpop.permute.xlu0 %2305
      %2307 = vrot.lane.b32.xlu0 %v1908, 8
      %v2308 = vpop.permute.xlu0 %2307
      %2309 = vrot.lane.b32.xlu0 %v1918, 8
      %v2310 = vpop.permute.xlu0 %2309
      %2311 = vrot.lane.b32.xlu0 %v1932, 8
      %v2312 = vpop.permute.xlu0 %2311
      %2313 = vrot.lane.b32.xlu0 %v1942, 8
      %v2314 = vpop.permute.xlu0 %2313
      %2315 = vrot.lane.b32.xlu0 %v1956, 8
      %v2316 = vpop.permute.xlu0 %2315
      %2317 = vrot.lane.b32.xlu0 %v1966, 8
      %v2318 = vpop.permute.xlu0 %2317
      %2319 = vrot.lane.b32.xlu0 %v1980, 8
      %v2320 = vpop.permute.xlu0 %2319
      %2321 = vrot.lane.b32.xlu0 %v1990, 8
      %v2322 = vpop.permute.xlu0 %2321
      %2323 = vrot.lane.b32.xlu0 %v2004, 8
      %v2324 = vpop.permute.xlu0 %2323
      %2325 = vrot.lane.b32.xlu0 %v2014, 8
      %v2326 = vpop.permute.xlu0 %2325
      %2327 = vrot.lane.b32.xlu0 %v2028, 8
      %v2328 = vpop.permute.xlu0 %2327
      %2329 = vrot.lane.b32.xlu0 %v2038, 8
      %v2330 = vpop.permute.xlu0 %2329
      %2331 = vrot.lane.b32.xlu0 %v2052, 8
      %v2332 = vpop.permute.xlu0 %2331
      %2333 = vrot.lane.b32.xlu0 %v2062, 8
      %v2334 = vpop.permute.xlu0 %2333
      %2335 = vrot.lane.b32.xlu0 %v2076, 8
      %v2336 = vpop.permute.xlu0 %2335
      %2337 = vrot.lane.b32.xlu0 %v2086, 8
      %v2338 = vpop.permute.xlu0 %2337
      %2339 = vrot.lane.b32.xlu0 %v2100, 8
      %v2340 = vpop.permute.xlu0 %2339
      %2341 = vrot.lane.b32.xlu0 %v2110, 8
      %v2342 = vpop.permute.xlu0 %2341
      %2343 = vrot.lane.b32.xlu0 %v2124, 8
      %v2344 = vpop.permute.xlu0 %2343
      %2345 = vrot.lane.b32.xlu0 %v2134, 8
      %v2346 = vpop.permute.xlu0 %2345
      %2347 = vrot.lane.b32.xlu0 %v2148, 8
      %v2348 = vpop.permute.xlu0 %2347
      %2349 = vrot.lane.b32.xlu0 %v2158, 8
      %v2350 = vpop.permute.xlu0 %2349
      %2351 = vrot.lane.b32.xlu0 %v2172, 8
      %v2352 = vpop.permute.xlu0 %2351
      %2353 = vrot.lane.b32.xlu0 %v2182, 8
      %v2354 = vpop.permute.xlu0 %2353
      %2355 = vrot.lane.b32.xlu0 %v2196, 8
      %v2356 = vpop.permute.xlu0 %2355
      %2357 = vrot.lane.b32.xlu0 %v2206, 8
      %v2358 = vpop.permute.xlu0 %2357
      %2359 = vrot.lane.b32.xlu0 %v2220, 8
      %v2360 = vpop.permute.xlu0 %2359
      %2361 = vrot.lane.b32.xlu0 %v2230, 8
      %v2362 = vpop.permute.xlu0 %2361
      %2363 = vrot.lane.b32.xlu0 %v2244, 8
      %v2364 = vpop.permute.xlu0 %2363
      %2365 = vrot.lane.b32.xlu0 %v2254, 8
      %v2366 = vpop.permute.xlu0 %2365
      %2367 = vrot.lane.b32.xlu0 %v2268, 8
      %v2368 = vpop.permute.xlu0 %2367
      %2369 = vrot.lane.b32.xlu0 %v2278, 8
      %v2370 = vpop.permute.xlu0 %2369
      %2371 = vrot.lane.b32.xlu0 %v2292, 8
      %v2372 = vpop.permute.xlu0 %2371
      %2373 = vrot.lane.b32.xlu0 %v2302, 8
      %v2374 = vpop.permute.xlu0 %2373
      %vm2411 = vcmask 126016
      %2412 = vst.msk [vmem:[#allocation3] sm:$0xf] %vm2411, %v2304
      %2413 = vst.msk [vmem:[#allocation3 + $0x4] sm:$0xf] %vm2411, %v2306
      %2414 = vst.msk [vmem:[#allocation3 + $0x8] sm:$0xf] %vm2411, %v2308
      %2415 = vst.msk [vmem:[#allocation3 + $0xc] sm:$0xf] %vm2411, %v2310
      %2416 = vst.msk [vmem:[#allocation3 + $0x10] sm:$0xf] %vm2411, %v2312
      %2417 = vst.msk [vmem:[#allocation3 + $0x14] sm:$0xf] %vm2411, %v2314
      %2418 = vst.msk [vmem:[#allocation3 + $0x18] sm:$0xf] %vm2411, %v2316
      %2419 = vst.msk [vmem:[#allocation3 + $0x1c] sm:$0xf] %vm2411, %v2318
      %2420 = vst.msk [vmem:[#allocation3 + $0x20] sm:$0xf] %vm2411, %v2320
      %2421 = vst.msk [vmem:[#allocation3 + $0x24] sm:$0xf] %vm2411, %v2322
      %2422 = vst.msk [vmem:[#allocation3 + $0x28] sm:$0xf] %vm2411, %v2324
      %2423 = vst.msk [vmem:[#allocation3 + $0x2c] sm:$0xf] %vm2411, %v2326
      %2424 = vst.msk [vmem:[#allocation3 + $0x30] sm:$0xf] %vm2411, %v2328
      %2425 = vst.msk [vmem:[#allocation3 + $0x34] sm:$0xf] %vm2411, %v2330
      %2426 = vst.msk [vmem:[#allocation3 + $0x38] sm:$0xf] %vm2411, %v2332
      %2427 = vst.msk [vmem:[#allocation3 + $0x3c] sm:$0xf] %vm2411, %v2334
      %2428 = vst.msk [vmem:[#allocation3 + $0x40] sm:$0xf] %vm2411, %v2336
      %2429 = vst.msk [vmem:[#allocation3 + $0x44] sm:$0xf] %vm2411, %v2338
      %2430 = vst.msk [vmem:[#allocation3 + $0x48] sm:$0xf] %vm2411, %v2340
      %2431 = vst.msk [vmem:[#allocation3 + $0x4c] sm:$0xf] %vm2411, %v2342
      %2432 = vst.msk [vmem:[#allocation3 + $0x50] sm:$0xf] %vm2411, %v2344
      %2433 = vst.msk [vmem:[#allocation3 + $0x54] sm:$0xf] %vm2411, %v2346
      %2434 = vst.msk [vmem:[#allocation3 + $0x58] sm:$0xf] %vm2411, %v2348
      %2435 = vst.msk [vmem:[#allocation3 + $0x5c] sm:$0xf] %vm2411, %v2350
      %2436 = vst.msk [vmem:[#allocation3 + $0x60] sm:$0xf] %vm2411, %v2352
      %2437 = vst.msk [vmem:[#allocation3 + $0x64] sm:$0xf] %vm2411, %v2354
      %2438 = vst.msk [vmem:[#allocation3 + $0x68] sm:$0xf] %vm2411, %v2356
      %2439 = vst.msk [vmem:[#allocation3 + $0x6c] sm:$0xf] %vm2411, %v2358
      %2440 = vst.msk [vmem:[#allocation3 + $0x70] sm:$0xf] %vm2411, %v2360
      %2441 = vst.msk [vmem:[#allocation3 + $0x74] sm:$0xf] %vm2411, %v2362
      %2442 = vst.msk [vmem:[#allocation3 + $0x78] sm:$0xf] %vm2411, %v2364
      %2443 = vst.msk [vmem:[#allocation3 + $0x7c] sm:$0xf] %vm2411, %v2366
      %2444 = vst.msk [vmem:[#allocation3 + $0x80] sm:$0xf] %vm2411, %v2368
      %2445 = vst.msk [vmem:[#allocation3 + $0x84] sm:$0xf] %vm2411, %v2370
      %2446 = vst.msk [vmem:[#allocation3 + $0x88] sm:$0xf] %vm2411, %v2372
      %2447 = vst.msk [vmem:[#allocation3 + $0x8c] sm:$0xf] %vm2411, %v2374
      %v2448 = vld [vmem:[#allocation2] sm:$0xe]
      %v2449 = vld [vmem:[#allocation2 + $0x4] sm:$0xf]
      %v2450 = vld [vmem:[#allocation2 + $0x8] sm:$0x1]
      %v2451 = vld [vmem:[#allocation2 + $0xc] sm:$0xe]
      %v2452 = vld [vmem:[#allocation2 + $0x10] sm:$0xf]
      %v2453 = vld [vmem:[#allocation2 + $0x14] sm:$0x1]
      %v2454 = vld [vmem:[#allocation2 + $0x18] sm:$0xe]
      %v2455 = vld [vmem:[#allocation2 + $0x1c] sm:$0xf]
      %v2456 = vld [vmem:[#allocation2 + $0x20] sm:$0x1]
      %v2457 = vld [vmem:[#allocation2 + $0x24] sm:$0xe]
      %v2458 = vld [vmem:[#allocation2 + $0x28] sm:$0xf]
      %v2459 = vld [vmem:[#allocation2 + $0x2c] sm:$0x1]
      %v2460 = vld [vmem:[#allocation2 + $0x30] sm:$0xe]
      %v2461 = vld [vmem:[#allocation2 + $0x34] sm:$0xf]
      %v2462 = vld [vmem:[#allocation2 + $0x38] sm:$0x1]
      %v2463 = vld [vmem:[#allocation2 + $0x3c] sm:$0xe]
      %v2464 = vld [vmem:[#allocation2 + $0x40] sm:$0xf]
      %v2465 = vld [vmem:[#allocation2 + $0x44] sm:$0x1]
      %v2466 = vld [vmem:[#allocation2 + $0x48] sm:$0xe]
      %v2467 = vld [vmem:[#allocation2 + $0x4c] sm:$0xf]
      %v2468 = vld [vmem:[#allocation2 + $0x50] sm:$0x1]
      %v2469 = vld [vmem:[#allocation2 + $0x54] sm:$0xe]
      %v2470 = vld [vmem:[#allocation2 + $0x58] sm:$0xf]
      %v2471 = vld [vmem:[#allocation2 + $0x5c] sm:$0x1]
      %v2472 = vld [vmem:[#allocation2 + $0x60] sm:$0xe]
      %v2473 = vld [vmem:[#allocation2 + $0x64] sm:$0xf]
      %v2474 = vld [vmem:[#allocation2 + $0x68] sm:$0x1]
      %v2475 = vld [vmem:[#allocation2 + $0x6c] sm:$0xe]
      %v2476 = vld [vmem:[#allocation2 + $0x70] sm:$0xf]
      %v2477 = vld [vmem:[#allocation2 + $0x74] sm:$0x1]
      %v2478 = vld [vmem:[#allocation2 + $0x78] sm:$0xe]
      %v2479 = vld [vmem:[#allocation2 + $0x7c] sm:$0xf]
      %v2480 = vld [vmem:[#allocation2 + $0x80] sm:$0x1]
      %v2481 = vld [vmem:[#allocation2 + $0x84] sm:$0xe]
      %v2482 = vld [vmem:[#allocation2 + $0x88] sm:$0xf]
      %v2483 = vld [vmem:[#allocation2 + $0x8c] sm:$0x1]
      %v2484 = vld [vmem:[#allocation2 + $0x90] sm:$0xe]
      %v2485 = vld [vmem:[#allocation2 + $0x94] sm:$0xf]
      %v2486 = vld [vmem:[#allocation2 + $0x98] sm:$0x1]
      %v2487 = vld [vmem:[#allocation2 + $0x9c] sm:$0xe]
      %v2488 = vld [vmem:[#allocation2 + $0xa0] sm:$0xf]
      %v2489 = vld [vmem:[#allocation2 + $0xa4] sm:$0x1]
      %v2490 = vld [vmem:[#allocation2 + $0xa8] sm:$0xe]
      %v2491 = vld [vmem:[#allocation2 + $0xac] sm:$0xf]
      %v2492 = vld [vmem:[#allocation2 + $0xb0] sm:$0x1]
      %v2493 = vld [vmem:[#allocation2 + $0xb4] sm:$0xe]
      %v2494 = vld [vmem:[#allocation2 + $0xb8] sm:$0xf]
      %v2495 = vld [vmem:[#allocation2 + $0xbc] sm:$0x1]
      %v2496 = vld [vmem:[#allocation2 + $0xc0] sm:$0xe]
      %v2497 = vld [vmem:[#allocation2 + $0xc4] sm:$0xf]
      %v2498 = vld [vmem:[#allocation2 + $0xc8] sm:$0x1]
      %v2499 = vld [vmem:[#allocation2 + $0xcc] sm:$0xe]
      %v2500 = vld [vmem:[#allocation2 + $0xd0] sm:$0xf]
      %v2501 = vld [vmem:[#allocation2 + $0xd4] sm:$0x1]
      %vm2556 = vcmask 1042432
      %vm2557 = vcmask 1046532
      %vm2558 = vmor %vm2556, %vm2557
      %v2559 = vrot.slane %v2448, 5
      %v2560 = vrot.slane %v2559, 4
      %v2561 = vrot.slane %v2449, 5
      %v2562 = vsel %vm2558, %v2560, %v2561
      %v2563 = vrot.slane %v2561, 4
      %v2564 = vrot.slane %v2450, 5
      %v2565 = vsel %vm2558, %v2563, %v2564
      %v2566 = vrot.slane %v2451, 5
      %v2567 = vrot.slane %v2566, 4
      %v2568 = vrot.slane %v2452, 5
      %v2569 = vsel %vm2558, %v2567, %v2568
      %v2570 = vrot.slane %v2568, 4
      %v2571 = vrot.slane %v2453, 5
      %v2572 = vsel %vm2558, %v2570, %v2571
      %v2573 = vrot.slane %v2454, 5
      %v2574 = vrot.slane %v2573, 4
      %v2575 = vrot.slane %v2455, 5
      %v2576 = vsel %vm2558, %v2574, %v2575
      %v2577 = vrot.slane %v2575, 4
      %v2578 = vrot.slane %v2456, 5
      %v2579 = vsel %vm2558, %v2577, %v2578
      %v2580 = vrot.slane %v2457, 5
      %v2581 = vrot.slane %v2580, 4
      %v2582 = vrot.slane %v2458, 5
      %v2583 = vsel %vm2558, %v2581, %v2582
      %v2584 = vrot.slane %v2582, 4
      %v2585 = vrot.slane %v2459, 5
      %v2586 = vsel %vm2558, %v2584, %v2585
      %v2587 = vrot.slane %v2460, 5
      %v2588 = vrot.slane %v2587, 4
      %v2589 = vrot.slane %v2461, 5
      %v2590 = vsel %vm2558, %v2588, %v2589
      %v2591 = vrot.slane %v2589, 4
      %v2592 = vrot.slane %v2462, 5
      %v2593 = vsel %vm2558, %v2591, %v2592
      %v2594 = vrot.slane %v2463, 5
      %v2595 = vrot.slane %v2594, 4
      %v2596 = vrot.slane %v2464, 5
      %v2597 = vsel %vm2558, %v2595, %v2596
      %v2598 = vrot.slane %v2596, 4
      %v2599 = vrot.slane %v2465, 5
      %v2600 = vsel %vm2558, %v2598, %v2599
      %v2601 = vrot.slane %v2466, 5
      %v2602 = vrot.slane %v2601, 4
      %v2603 = vrot.slane %v2467, 5
      %v2604 = vsel %vm2558, %v2602, %v2603
      %v2605 = vrot.slane %v2603, 4
      %v2606 = vrot.slane %v2468, 5
      %v2607 = vsel %vm2558, %v2605, %v2606
      %v2608 = vrot.slane %v2469, 5
      %v2609 = vrot.slane %v2608, 4
      %v2610 = vrot.slane %v2470, 5
      %v2611 = vsel %vm2558, %v2609, %v2610
      %v2612 = vrot.slane %v2610, 4
      %v2613 = vrot.slane %v2471, 5
      %v2614 = vsel %vm2558, %v2612, %v2613
      %v2615 = vrot.slane %v2472, 5
      %v2616 = vrot.slane %v2615, 4
      %v2617 = vrot.slane %v2473, 5
      %v2618 = vsel %vm2558, %v2616, %v2617
      %v2619 = vrot.slane %v2617, 4
      %v2620 = vrot.slane %v2474, 5
      %v2621 = vsel %vm2558, %v2619, %v2620
      %v2622 = vrot.slane %v2475, 5
      %v2623 = vrot.slane %v2622, 4
      %v2624 = vrot.slane %v2476, 5
      %v2625 = vsel %vm2558, %v2623, %v2624
      %v2626 = vrot.slane %v2624, 4
      %v2627 = vrot.slane %v2477, 5
      %v2628 = vsel %vm2558, %v2626, %v2627
      %v2629 = vrot.slane %v2478, 5
      %v2630 = vrot.slane %v2629, 4
      %v2631 = vrot.slane %v2479, 5
      %v2632 = vsel %vm2558, %v2630, %v2631
      %v2633 = vrot.slane %v2631, 4
      %v2634 = vrot.slane %v2480, 5
      %v2635 = vsel %vm2558, %v2633, %v2634
      %v2636 = vrot.slane %v2481, 5
      %v2637 = vrot.slane %v2636, 4
      %v2638 = vrot.slane %v2482, 5
      %v2639 = vsel %vm2558, %v2637, %v2638
      %v2640 = vrot.slane %v2638, 4
      %v2641 = vrot.slane %v2483, 5
      %v2642 = vsel %vm2558, %v2640, %v2641
      %v2643 = vrot.slane %v2484, 5
      %v2644 = vrot.slane %v2643, 4
      %v2645 = vrot.slane %v2485, 5
      %v2646 = vsel %vm2558, %v2644, %v2645
      %v2647 = vrot.slane %v2645, 4
      %v2648 = vrot.slane %v2486, 5
      %v2649 = vsel %vm2558, %v2647, %v2648
      %v2650 = vrot.slane %v2487, 5
      %v2651 = vrot.slane %v2650, 4
      %v2652 = vrot.slane %v2488, 5
      %v2653 = vsel %vm2558, %v2651, %v2652
      %v2654 = vrot.slane %v2652, 4
      %v2655 = vrot.slane %v2489, 5
      %v2656 = vsel %vm2558, %v2654, %v2655
      %v2657 = vrot.slane %v2490, 5
      %v2658 = vrot.slane %v2657, 4
      %v2659 = vrot.slane %v2491, 5
      %v2660 = vsel %vm2558, %v2658, %v2659
      %v2661 = vrot.slane %v2659, 4
      %v2662 = vrot.slane %v2492, 5
      %v2663 = vsel %vm2558, %v2661, %v2662
      %v2664 = vrot.slane %v2493, 5
      %v2665 = vrot.slane %v2664, 4
      %v2666 = vrot.slane %v2494, 5
      %v2667 = vsel %vm2558, %v2665, %v2666
      %v2668 = vrot.slane %v2666, 4
      %v2669 = vrot.slane %v2495, 5
      %v2670 = vsel %vm2558, %v2668, %v2669
      %v2671 = vrot.slane %v2496, 5
      %v2672 = vrot.slane %v2671, 4
      %v2673 = vrot.slane %v2497, 5
      %v2674 = vsel %vm2558, %v2672, %v2673
      %v2675 = vrot.slane %v2673, 4
      %v2676 = vrot.slane %v2498, 5
      %v2677 = vsel %vm2558, %v2675, %v2676
      %v2678 = vrot.slane %v2499, 5
      %v2679 = vrot.slane %v2678, 4
      %v2680 = vrot.slane %v2500, 5
      %v2681 = vsel %vm2558, %v2679, %v2680
      %v2682 = vrot.slane %v2680, 4
      %v2683 = vrot.slane %v2501, 5
      %v2684 = vsel %vm2558, %v2682, %v2683
      %2685 = vrot.lane.b32.xlu0 %v2562, 16
      %v2686 = vpop.permute.xlu0 %2685
      %2687 = vrot.lane.b32.xlu0 %v2565, 16
      %v2688 = vpop.permute.xlu0 %2687
      %2689 = vrot.lane.b32.xlu0 %v2569, 16
      %v2690 = vpop.permute.xlu0 %2689
      %2691 = vrot.lane.b32.xlu0 %v2572, 16
      %v2692 = vpop.permute.xlu0 %2691
      %2693 = vrot.lane.b32.xlu0 %v2576, 16
      %v2694 = vpop.permute.xlu0 %2693
      %2695 = vrot.lane.b32.xlu0 %v2579, 16
      %v2696 = vpop.permute.xlu0 %2695
      %2697 = vrot.lane.b32.xlu0 %v2583, 16
      %v2698 = vpop.permute.xlu0 %2697
      %2699 = vrot.lane.b32.xlu0 %v2586, 16
      %v2700 = vpop.permute.xlu0 %2699
      %2701 = vrot.lane.b32.xlu0 %v2590, 16
      %v2702 = vpop.permute.xlu0 %2701
      %2703 = vrot.lane.b32.xlu0 %v2593, 16
      %v2704 = vpop.permute.xlu0 %2703
      %2705 = vrot.lane.b32.xlu0 %v2597, 16
      %v2706 = vpop.permute.xlu0 %2705
      %2707 = vrot.lane.b32.xlu0 %v2600, 16
      %v2708 = vpop.permute.xlu0 %2707
      %2709 = vrot.lane.b32.xlu0 %v2604, 16
      %v2710 = vpop.permute.xlu0 %2709
      %2711 = vrot.lane.b32.xlu0 %v2607, 16
      %v2712 = vpop.permute.xlu0 %2711
      %2713 = vrot.lane.b32.xlu0 %v2611, 16
      %v2714 = vpop.permute.xlu0 %2713
      %2715 = vrot.lane.b32.xlu0 %v2614, 16
      %v2716 = vpop.permute.xlu0 %2715
      %2717 = vrot.lane.b32.xlu0 %v2618, 16
      %v2718 = vpop.permute.xlu0 %2717
      %2719 = vrot.lane.b32.xlu0 %v2621, 16
      %v2720 = vpop.permute.xlu0 %2719
      %2721 = vrot.lane.b32.xlu0 %v2625, 16
      %v2722 = vpop.permute.xlu0 %2721
      %2723 = vrot.lane.b32.xlu0 %v2628, 16
      %v2724 = vpop.permute.xlu0 %2723
      %2725 = vrot.lane.b32.xlu0 %v2632, 16
      %v2726 = vpop.permute.xlu0 %2725
      %2727 = vrot.lane.b32.xlu0 %v2635, 16
      %v2728 = vpop.permute.xlu0 %2727
      %2729 = vrot.lane.b32.xlu0 %v2639, 16
      %v2730 = vpop.permute.xlu0 %2729
      %2731 = vrot.lane.b32.xlu0 %v2642, 16
      %v2732 = vpop.permute.xlu0 %2731
      %2733 = vrot.lane.b32.xlu0 %v2646, 16
      %v2734 = vpop.permute.xlu0 %2733
      %2735 = vrot.lane.b32.xlu0 %v2649, 16
      %v2736 = vpop.permute.xlu0 %2735
      %2737 = vrot.lane.b32.xlu0 %v2653, 16
      %v2738 = vpop.permute.xlu0 %2737
      %2739 = vrot.lane.b32.xlu0 %v2656, 16
      %v2740 = vpop.permute.xlu0 %2739
      %2741 = vrot.lane.b32.xlu0 %v2660, 16
      %v2742 = vpop.permute.xlu0 %2741
      %2743 = vrot.lane.b32.xlu0 %v2663, 16
      %v2744 = vpop.permute.xlu0 %2743
      %2745 = vrot.lane.b32.xlu0 %v2667, 16
      %v2746 = vpop.permute.xlu0 %2745
      %2747 = vrot.lane.b32.xlu0 %v2670, 16
      %v2748 = vpop.permute.xlu0 %2747
      %2749 = vrot.lane.b32.xlu0 %v2674, 16
      %v2750 = vpop.permute.xlu0 %2749
      %2751 = vrot.lane.b32.xlu0 %v2677, 16
      %v2752 = vpop.permute.xlu0 %2751
      %2753 = vrot.lane.b32.xlu0 %v2681, 16
      %v2754 = vpop.permute.xlu0 %2753
      %2755 = vrot.lane.b32.xlu0 %v2684, 16
      %v2756 = vpop.permute.xlu0 %2755
      %vm2793 = vcmask 191616
      %2794 = vst.msk [vmem:[#allocation3] sm:$0xf] %vm2793, %v2686
      %2795 = vst.msk [vmem:[#allocation3 + $0x4] sm:$0xf] %vm2793, %v2688
      %2796 = vst.msk [vmem:[#allocation3 + $0x8] sm:$0xf] %vm2793, %v2690
      %2797 = vst.msk [vmem:[#allocation3 + $0xc] sm:$0xf] %vm2793, %v2692
      %2798 = vst.msk [vmem:[#allocation3 + $0x10] sm:$0xf] %vm2793, %v2694
      %2799 = vst.msk [vmem:[#allocation3 + $0x14] sm:$0xf] %vm2793, %v2696
      %2800 = vst.msk [vmem:[#allocation3 + $0x18] sm:$0xf] %vm2793, %v2698
      %2801 = vst.msk [vmem:[#allocation3 + $0x1c] sm:$0xf] %vm2793, %v2700
      %2802 = vst.msk [vmem:[#allocation3 + $0x20] sm:$0xf] %vm2793, %v2702
      %2803 = vst.msk [vmem:[#allocation3 + $0x24] sm:$0xf] %vm2793, %v2704
      %2804 = vst.msk [vmem:[#allocation3 + $0x28] sm:$0xf] %vm2793, %v2706
      %2805 = vst.msk [vmem:[#allocation3 + $0x2c] sm:$0xf] %vm2793, %v2708
      %2806 = vst.msk [vmem:[#allocation3 + $0x30] sm:$0xf] %vm2793, %v2710
      %2807 = vst.msk [vmem:[#allocation3 + $0x34] sm:$0xf] %vm2793, %v2712
      %2808 = vst.msk [vmem:[#allocation3 + $0x38] sm:$0xf] %vm2793, %v2714
      %2809 = vst.msk [vmem:[#allocation3 + $0x3c] sm:$0xf] %vm2793, %v2716
      %2810 = vst.msk [vmem:[#allocation3 + $0x40] sm:$0xf] %vm2793, %v2718
      %2811 = vst.msk [vmem:[#allocation3 + $0x44] sm:$0xf] %vm2793, %v2720
      %2812 = vst.msk [vmem:[#allocation3 + $0x48] sm:$0xf] %vm2793, %v2722
      %2813 = vst.msk [vmem:[#allocation3 + $0x4c] sm:$0xf] %vm2793, %v2724
      %2814 = vst.msk [vmem:[#allocation3 + $0x50] sm:$0xf] %vm2793, %v2726
      %2815 = vst.msk [vmem:[#allocation3 + $0x54] sm:$0xf] %vm2793, %v2728
      %2816 = vst.msk [vmem:[#allocation3 + $0x58] sm:$0xf] %vm2793, %v2730
      %2817 = vst.msk [vmem:[#allocation3 + $0x5c] sm:$0xf] %vm2793, %v2732
      %2818 = vst.msk [vmem:[#allocation3 + $0x60] sm:$0xf] %vm2793, %v2734
      %2819 = vst.msk [vmem:[#allocation3 + $0x64] sm:$0xf] %vm2793, %v2736
      %2820 = vst.msk [vmem:[#allocation3 + $0x68] sm:$0xf] %vm2793, %v2738
      %2821 = vst.msk [vmem:[#allocation3 + $0x6c] sm:$0xf] %vm2793, %v2740
      %2822 = vst.msk [vmem:[#allocation3 + $0x70] sm:$0xf] %vm2793, %v2742
      %2823 = vst.msk [vmem:[#allocation3 + $0x74] sm:$0xf] %vm2793, %v2744
      %2824 = vst.msk [vmem:[#allocation3 + $0x78] sm:$0xf] %vm2793, %v2746
      %2825 = vst.msk [vmem:[#allocation3 + $0x7c] sm:$0xf] %vm2793, %v2748
      %2826 = vst.msk [vmem:[#allocation3 + $0x80] sm:$0xf] %vm2793, %v2750
      %2827 = vst.msk [vmem:[#allocation3 + $0x84] sm:$0xf] %vm2793, %v2752
      %2828 = vst.msk [vmem:[#allocation3 + $0x88] sm:$0xf] %vm2793, %v2754
      %2829 = vst.msk [vmem:[#allocation3 + $0x8c] sm:$0xf] %vm2793, %v2756
      %v2830 = vld [vmem:[#allocation3] sm:$0xf]
      %v2831 = vld [vmem:[#allocation3 + $0x4] sm:$0xf]
      %v2832 = vld [vmem:[#allocation3 + $0x8] sm:$0xf]
      %v2833 = vld [vmem:[#allocation3 + $0xc] sm:$0xf]
      %v2834 = vld [vmem:[#allocation3 + $0x10] sm:$0xf]
      %v2835 = vld [vmem:[#allocation3 + $0x14] sm:$0xf]
      %v2836 = vld [vmem:[#allocation3 + $0x18] sm:$0xf]
      %v2837 = vld [vmem:[#allocation3 + $0x1c] sm:$0xf]
      %v2838 = vld [vmem:[#allocation3 + $0x20] sm:$0xf]
      %v2839 = vld [vmem:[#allocation3 + $0x24] sm:$0xf]
      %v2840 = vld [vmem:[#allocation3 + $0x28] sm:$0xf]
      %v2841 = vld [vmem:[#allocation3 + $0x2c] sm:$0xf]
      %v2842 = vld [vmem:[#allocation3 + $0x30] sm:$0xf]
      %v2843 = vld [vmem:[#allocation3 + $0x34] sm:$0xf]
      %v2844 = vld [vmem:[#allocation3 + $0x38] sm:$0xf]
      %v2845 = vld [vmem:[#allocation3 + $0x3c] sm:$0xf]
      %v2846 = vld [vmem:[#allocation3 + $0x40] sm:$0xf]
      %v2847 = vld [vmem:[#allocation3 + $0x44] sm:$0xf]
      %v2848 = vld [vmem:[#allocation3 + $0x48] sm:$0xf]
      %v2849 = vld [vmem:[#allocation3 + $0x4c] sm:$0xf]
      %v2850 = vld [vmem:[#allocation3 + $0x50] sm:$0xf]
      %v2851 = vld [vmem:[#allocation3 + $0x54] sm:$0xf]
      %v2852 = vld [vmem:[#allocation3 + $0x58] sm:$0xf]
      %v2853 = vld [vmem:[#allocation3 + $0x5c] sm:$0xf]
      %v2854 = vld [vmem:[#allocation3 + $0x60] sm:$0xf]
      %v2855 = vld [vmem:[#allocation3 + $0x64] sm:$0xf]
      %v2856 = vld [vmem:[#allocation3 + $0x68] sm:$0xf]
      %v2857 = vld [vmem:[#allocation3 + $0x6c] sm:$0xf]
      %v2858 = vld [vmem:[#allocation3 + $0x70] sm:$0xf]
      %v2859 = vld [vmem:[#allocation3 + $0x74] sm:$0xf]
      %v2860 = vld [vmem:[#allocation3 + $0x78] sm:$0xf]
      %v2861 = vld [vmem:[#allocation3 + $0x7c] sm:$0xf]
      %v2862 = vld [vmem:[%s5] sm:$0xf]
      %v2863 = vld [vmem:[%s5 + $0x4] sm:$0xf]
      %v2864 = vld [vmem:[%s5 + $0x8] sm:$0xf]
      %s2865 = scalar_lea.vmem [#allocation3], 8
      %v2866 = vld [vmem:[%s2865] sm:$0xf]
      %v2867 = vld [vmem:[%s2865 + $0x4] sm:$0xf]
      %v2868 = vld [vmem:[%s2865 + $0x8] sm:$0xf]
      %v2869 = vld [vmem:[%s2865 + $0xc] sm:$0xf]
      %v2870 = vld [vmem:[%s2865 + $0x10] sm:$0xf]
      %v2871 = vld [vmem:[%s2865 + $0x14] sm:$0xf]
      %v2872 = vld [vmem:[%s2865 + $0x18] sm:$0xf]
      %v2873 = vld [vmem:[%s2865 + $0x1c] sm:$0xf]
      %v2874 = vld [vmem:[%s2865 + $0x20] sm:$0xf]
      %v2875 = vld [vmem:[%s2865 + $0x24] sm:$0xf]
      %v2876 = vld [vmem:[%s2865 + $0x28] sm:$0xf]
      %v2877 = vld [vmem:[%s2865 + $0x2c] sm:$0xf]
      %v2878 = vld [vmem:[%s2865 + $0x30] sm:$0xf]
      %v2879 = vld [vmem:[%s2865 + $0x34] sm:$0xf]
      %v2880 = vld [vmem:[%s2865 + $0x38] sm:$0xf]
      %v2881 = vld [vmem:[%s2865 + $0x3c] sm:$0xf]
      %v2882 = vld [vmem:[%s2865 + $0x40] sm:$0xf]
      %v2883 = vld [vmem:[%s2865 + $0x44] sm:$0xf]
      %v2884 = vld [vmem:[%s2865 + $0x48] sm:$0xf]
      %v2885 = vld [vmem:[%s2865 + $0x4c] sm:$0xf]
      %v2886 = vld [vmem:[%s2865 + $0x50] sm:$0xf]
      %v2887 = vld [vmem:[%s2865 + $0x54] sm:$0xf]
      %v2888 = vld [vmem:[%s2865 + $0x58] sm:$0xf]
      %v2889 = vld [vmem:[%s2865 + $0x5c] sm:$0xf]
      %v2890 = vld [vmem:[%s2865 + $0x60] sm:$0xf]
      %v2891 = vld [vmem:[%s2865 + $0x64] sm:$0xf]
      %v2892 = vld [vmem:[%s2865 + $0x68] sm:$0xf]
      %v2893 = vld [vmem:[%s2865 + $0x6c] sm:$0xf]
      %v2894 = vld [vmem:[%s2865 + $0x70] sm:$0xf]
      %v2895 = vld [vmem:[%s2865 + $0x74] sm:$0xf]
      %v2896 = vld [vmem:[%s2865 + $0x78] sm:$0xf]
      %v2897 = vld [vmem:[%s2865 + $0x7c] sm:$0xf]
      %s2898 = scalar_lea.vmem %s5, 12
      %v2899 = vld [vmem:[%s2898] sm:$0xf]
      %v2900 = vld [vmem:[%s2898 + $0x4] sm:$0xf]
      %v2901 = vld [vmem:[%s2898 + $0x8] sm:$0xf]
      %v2934 = vunpack.c.l.b16 %v2866
      %v2935 = vunpack.c.l.b16 %v2867
      %v2936 = vunpack.c.l.b16 %v2868
      %v2937 = vunpack.c.l.b16 %v2869
      %v2938 = vunpack.c.l.b16 %v2870
      %v2939 = vunpack.c.l.b16 %v2871
      %v2940 = vunpack.c.l.b16 %v2872
      %v2941 = vunpack.c.l.b16 %v2873
      %v2942 = vunpack.c.l.b16 %v2874
      %v2943 = vunpack.c.l.b16 %v2875
      %v2944 = vunpack.c.l.b16 %v2876
      %v2945 = vunpack.c.l.b16 %v2877
      %v2946 = vunpack.c.l.b16 %v2878
      %v2947 = vunpack.c.l.b16 %v2879
      %v2948 = vunpack.c.l.b16 %v2880
      %v2949 = vunpack.c.l.b16 %v2881
      %v2950 = vunpack.c.l.b16 %v2882
      %v2951 = vunpack.c.l.b16 %v2883
      %v2952 = vunpack.c.l.b16 %v2884
      %v2953 = vunpack.c.l.b16 %v2885
      %v2954 = vunpack.c.l.b16 %v2886
      %v2955 = vunpack.c.l.b16 %v2887
      %v2956 = vunpack.c.l.b16 %v2888
      %v2957 = vunpack.c.l.b16 %v2889
      %v2958 = vunpack.c.l.b16 %v2890
      %v2959 = vunpack.c.l.b16 %v2891
      %v2960 = vunpack.c.l.b16 %v2892
      %v2961 = vunpack.c.l.b16 %v2893
      %v2962 = vunpack.c.l.b16 %v2894
      %v2963 = vunpack.c.l.b16 %v2895
      %v2964 = vunpack.c.l.b16 %v2896
      %v2965 = vunpack.c.l.b16 %v2897
      %v2966 = vpack.c.b16 %v2935, %v2934
      %v2967 = vpack.c.b16 %v2937, %v2936
      %v2968 = vpack.c.b16 %v2939, %v2938
      %v2969 = vpack.c.b16 %v2941, %v2940
      %v2970 = vpack.c.b16 %v2943, %v2942
      %v2971 = vpack.c.b16 %v2945, %v2944
      %v2972 = vpack.c.b16 %v2947, %v2946
      %v2973 = vpack.c.b16 %v2949, %v2948
      %v2974 = vpack.c.b16 %v2951, %v2950
      %v2975 = vpack.c.b16 %v2953, %v2952
      %v2976 = vpack.c.b16 %v2955, %v2954
      %v2977 = vpack.c.b16 %v2957, %v2956
      %v2978 = vpack.c.b16 %v2959, %v2958
      %v2979 = vpack.c.b16 %v2961, %v2960
      %v2980 = vpack.c.b16 %v2963, %v2962
      %v2981 = vpack.c.b16 %v2965, %v2964
      %v2985 = vunpack.c.l.b16 %v2899
      %v2986 = vunpack.c.l.b16 %v2900
      %v2987 = vunpack.c.l.b16 %v2901
      %v2988 = vpack.c.b16 %v2986, %v2985
      %v2989 = vpack.c.b16 %v2987, %v2987
      %vm2991 = vcmask 195584
      %v2993 = vsel %vm2991, %v2966, 0
      %v2996 = vsel %vm2991, %v2967, 0
      %v2999 = vsel %vm2991, %v2968, 0
      %v3002 = vsel %vm2991, %v2969, 0
      %v3005 = vsel %vm2991, %v2970, 0
      %v3008 = vsel %vm2991, %v2971, 0
      %v3011 = vsel %vm2991, %v2972, 0
      %v3014 = vsel %vm2991, %v2973, 0
      %v3017 = vsel %vm2991, %v2974, 0
      %v3020 = vsel %vm2991, %v2975, 0
      %v3023 = vsel %vm2991, %v2976, 0
      %v3026 = vsel %vm2991, %v2977, 0
      %v3029 = vsel %vm2991, %v2978, 0
      %v3032 = vsel %vm2991, %v2979, 0
      %v3035 = vsel %vm2991, %v2980, 0
      %v3038 = vsel %vm2991, %v2981, 0
      %vm3040 = vcmask 1043456
      %v3042 = vsel %vm3040, %v2989, 0
      %3044 = vmatprep.subr.bf16.mxu0 0
      %3045 = vmatpush1.bf16.msra.mxu0 0
      %3046 = vmatprep.subr.bf16.mxu0 0
      %3047 = vmatpush1.bf16.msra.mxu0 0
      %3048 = vmatprep.subr.bf16.mxu0 0
      %3049 = vmatpush1.bf16.msra.mxu0 0
      %3050 = vmatprep.subr.bf16.mxu0 0
      %3051 = vmatpush1.bf16.msra.mxu0 0
      %3052 = vmatprep.subr.bf16.mxu0 0
      %3053 = vmatpush1.bf16.msra.mxu0 0
      %3054 = vmatprep.subr.bf16.mxu0 0
      %3055 = vmatpush1.bf16.msra.mxu0 0
      %3056 = vmatprep.subr.bf16.mxu0 0
      %3057 = vmatpush1.bf16.msra.mxu0 %v3042
      %3058 = vmatprep.subr.bf16.mxu0 0
      %3059 = vmatpush1.bf16.msra.mxu0 %v2988
      %3060 = vmatprep.subr.bf16.mxu0 0
      %3061 = vmatpush2.bf16.msra.mxu0 0
      %3062 = vmatprep.subr.bf16.mxu0 0
      %3063 = vmatpush2.bf16.msra.mxu0 0
      %3064 = vmatprep.subr.bf16.mxu0 0
      %3065 = vmatpush2.bf16.msra.mxu0 0
      %3066 = vmatprep.subr.bf16.mxu0 0
      %3067 = vmatpush2.bf16.msra.mxu0 0
      %3068 = vmatprep.subr.bf16.mxu0 0
      %3069 = vmatpush2.bf16.msra.mxu0 0
      %3070 = vmatprep.subr.bf16.mxu0 0
      %3071 = vmatpush2.bf16.msra.mxu0 0
      %3072 = vmatprep.subr.bf16.mxu0 0
      %3073 = vmatpush2.bf16.msra.mxu0 0
      %3074 = vmatprep.subr.bf16.mxu0 0
      %3075 = vmatpush2.bf16.msra.mxu0 0
      %3076 = vmatprep.mubr.bf16.mxu0 0
      %3077 = vmatmul.mubr.bf16.gmra.mxu0 %v2993
      %v3078 = vpop.f32.mrf.mxu0
      %v3079 = vadd.f32 0.0, %v3078
      %v3080 = vpop.f32.mrf.mxu0
      %v3081 = vpop.f32.mrf.mxu0
      %v3082 = vadd.f32 0.0, %v3081
      %v3083 = vpop.f32.mrf.mxu0
      %3084 = vmatprep.mubr.bf16.mxu0 0
      %3085 = vmatmul.mubr.bf16.gmra.mxu0 %v2996
      %v3086 = vpop.f32.mrf.mxu0
      %v3087 = vadd.f32 0.0, %v3086
      %v3088 = vpop.f32.mrf.mxu0
      %v3089 = vpop.f32.mrf.mxu0
      %v3090 = vadd.f32 0.0, %v3089
      %v3091 = vpop.f32.mrf.mxu0
      %3092 = vmatprep.mubr.bf16.mxu0 0
      %3093 = vmatmul.mubr.bf16.gmra.mxu0 %v2999
      %v3094 = vpop.f32.mrf.mxu0
      %v3095 = vadd.f32 0.0, %v3094
      %v3096 = vpop.f32.mrf.mxu0
      %v3097 = vpop.f32.mrf.mxu0
      %v3098 = vadd.f32 0.0, %v3097
      %v3099 = vpop.f32.mrf.mxu0
      %3100 = vmatprep.mubr.bf16.mxu0 0
      %3101 = vmatmul.mubr.bf16.gmra.mxu0 %v3002
      %v3102 = vpop.f32.mrf.mxu0
      %v3103 = vadd.f32 0.0, %v3102
      %v3104 = vpop.f32.mrf.mxu0
      %v3105 = vpop.f32.mrf.mxu0
      %v3106 = vadd.f32 0.0, %v3105
      %v3107 = vpop.f32.mrf.mxu0
      %3108 = vmatprep.mubr.bf16.mxu0 0
      %3109 = vmatmul.mubr.bf16.gmra.mxu0 %v3005
      %v3110 = vpop.f32.mrf.mxu0
      %v3111 = vadd.f32 0.0, %v3110
      %v3112 = vpop.f32.mrf.mxu0
      %v3113 = vpop.f32.mrf.mxu0
      %v3114 = vadd.f32 0.0, %v3113
      %v3115 = vpop.f32.mrf.mxu0
      %3116 = vmatprep.mubr.bf16.mxu0 0
      %3117 = vmatmul.mubr.bf16.gmra.mxu0 %v3008
      %v3118 = vpop.f32.mrf.mxu0
      %v3119 = vadd.f32 0.0, %v3118
      %v3120 = vpop.f32.mrf.mxu0
      %v3121 = vpop.f32.mrf.mxu0
      %v3122 = vadd.f32 0.0, %v3121
      %v3123 = vpop.f32.mrf.mxu0
      %3124 = vmatprep.mubr.bf16.mxu0 0
      %3125 = vmatmul.mubr.bf16.gmra.mxu0 %v3011
      %v3126 = vpop.f32.mrf.mxu0
      %v3127 = vadd.f32 0.0, %v3126
      %v3128 = vpop.f32.mrf.mxu0
      %v3129 = vpop.f32.mrf.mxu0
      %v3130 = vadd.f32 0.0, %v3129
      %v3131 = vpop.f32.mrf.mxu0
      %3132 = vmatprep.mubr.bf16.mxu0 0
      %3133 = vmatmul.mubr.bf16.gmra.mxu0 %v3014
      %v3134 = vpop.f32.mrf.mxu0
      %v3135 = vadd.f32 0.0, %v3134
      %v3136 = vpop.f32.mrf.mxu0
      %v3137 = vpop.f32.mrf.mxu0
      %v3138 = vadd.f32 0.0, %v3137
      %v3139 = vpop.f32.mrf.mxu0
      %3140 = vmatprep.mubr.bf16.mxu0 0
      %3141 = vmatmul.mubr.bf16.gmra.mxu0 %v3017
      %v3142 = vpop.f32.mrf.mxu0
      %v3143 = vadd.f32 0.0, %v3142
      %v3144 = vpop.f32.mrf.mxu0
      %v3145 = vpop.f32.mrf.mxu0
      %v3146 = vadd.f32 0.0, %v3145
      %v3147 = vpop.f32.mrf.mxu0
      %3148 = vmatprep.mubr.bf16.mxu0 0
      %3149 = vmatmul.mubr.bf16.gmra.mxu0 %v3020
      %v3150 = vpop.f32.mrf.mxu0
      %v3151 = vadd.f32 0.0, %v3150
      %v3152 = vpop.f32.mrf.mxu0
      %v3153 = vpop.f32.mrf.mxu0
      %v3154 = vadd.f32 0.0, %v3153
      %v3155 = vpop.f32.mrf.mxu0
      %3156 = vmatprep.mubr.bf16.mxu0 0
      %3157 = vmatmul.mubr.bf16.gmra.mxu0 %v3023
      %v3158 = vpop.f32.mrf.mxu0
      %v3159 = vadd.f32 0.0, %v3158
      %v3160 = vpop.f32.mrf.mxu0
      %v3161 = vpop.f32.mrf.mxu0
      %v3162 = vadd.f32 0.0, %v3161
      %v3163 = vpop.f32.mrf.mxu0
      %3164 = vmatprep.mubr.bf16.mxu0 0
      %3165 = vmatmul.mubr.bf16.gmra.mxu0 %v3026
      %v3166 = vpop.f32.mrf.mxu0
      %v3167 = vadd.f32 0.0, %v3166
      %v3168 = vpop.f32.mrf.mxu0
      %v3169 = vpop.f32.mrf.mxu0
      %v3170 = vadd.f32 0.0, %v3169
      %v3171 = vpop.f32.mrf.mxu0
      %3172 = vmatprep.mubr.bf16.mxu0 0
      %3173 = vmatmul.mubr.bf16.gmra.mxu0 %v3029
      %v3174 = vpop.f32.mrf.mxu0
      %v3175 = vadd.f32 0.0, %v3174
      %v3176 = vpop.f32.mrf.mxu0
      %v3177 = vpop.f32.mrf.mxu0
      %v3178 = vadd.f32 0.0, %v3177
      %v3179 = vpop.f32.mrf.mxu0
      %3180 = vmatprep.mubr.bf16.mxu0 0
      %3181 = vmatmul.mubr.bf16.gmra.mxu0 %v3032
      %v3182 = vpop.f32.mrf.mxu0
      %v3183 = vadd.f32 0.0, %v3182
      %v3184 = vpop.f32.mrf.mxu0
      %v3185 = vpop.f32.mrf.mxu0
      %v3186 = vadd.f32 0.0, %v3185
      %v3187 = vpop.f32.mrf.mxu0
      %3188 = vmatprep.mubr.bf16.mxu0 0
      %3189 = vmatmul.mubr.bf16.gmra.mxu0 %v3035
      %v3190 = vpop.f32.mrf.mxu0
      %v3191 = vadd.f32 0.0, %v3190
      %v3192 = vpop.f32.mrf.mxu0
      %v3193 = vpop.f32.mrf.mxu0
      %v3194 = vadd.f32 0.0, %v3193
      %v3195 = vpop.f32.mrf.mxu0
      %3196 = vmatprep.mubr.bf16.mxu0 0
      %3197 = vmatmul.mubr.bf16.gmra.mxu0 %v3038
      %v3198 = vpop.f32.mrf.mxu0
      %v3199 = vadd.f32 0.0, %v3198
      %v3200 = vpop.f32.mrf.mxu0
      %v3201 = vpop.f32.mrf.mxu0
      %v3202 = vadd.f32 0.0, %v3201
      %v3203 = vpop.f32.mrf.mxu0
      %3204 = vdwg.mxu0
      %v3237 = vunpack.c.l.b16 %v2830
      %v3238 = vunpack.c.l.b16 %v2831
      %v3239 = vunpack.c.l.b16 %v2832
      %v3240 = vunpack.c.l.b16 %v2833
      %v3241 = vunpack.c.l.b16 %v2834
      %v3242 = vunpack.c.l.b16 %v2835
      %v3243 = vunpack.c.l.b16 %v2836
      %v3244 = vunpack.c.l.b16 %v2837
      %v3245 = vunpack.c.l.b16 %v2838
      %v3246 = vunpack.c.l.b16 %v2839
      %v3247 = vunpack.c.l.b16 %v2840
      %v3248 = vunpack.c.l.b16 %v2841
      %v3249 = vunpack.c.l.b16 %v2842
      %v3250 = vunpack.c.l.b16 %v2843
      %v3251 = vunpack.c.l.b16 %v2844
      %v3252 = vunpack.c.l.b16 %v2845
      %v3253 = vunpack.c.l.b16 %v2846
      %v3254 = vunpack.c.l.b16 %v2847
      %v3255 = vunpack.c.l.b16 %v2848
      %v3256 = vunpack.c.l.b16 %v2849
      %v3257 = vunpack.c.l.b16 %v2850
      %v3258 = vunpack.c.l.b16 %v2851
      %v3259 = vunpack.c.l.b16 %v2852
      %v3260 = vunpack.c.l.b16 %v2853
      %v3261 = vunpack.c.l.b16 %v2854
      %v3262 = vunpack.c.l.b16 %v2855
      %v3263 = vunpack.c.l.b16 %v2856
      %v3264 = vunpack.c.l.b16 %v2857
      %v3265 = vunpack.c.l.b16 %v2858
      %v3266 = vunpack.c.l.b16 %v2859
      %v3267 = vunpack.c.l.b16 %v2860
      %v3268 = vunpack.c.l.b16 %v2861
      %v3269 = vpack.c.b16 %v3238, %v3237
      %v3270 = vpack.c.b16 %v3240, %v3239
      %v3271 = vpack.c.b16 %v3242, %v3241
      %v3272 = vpack.c.b16 %v3244, %v3243
      %v3273 = vpack.c.b16 %v3246, %v3245
      %v3274 = vpack.c.b16 %v3248, %v3247
      %v3275 = vpack.c.b16 %v3250, %v3249
      %v3276 = vpack.c.b16 %v3252, %v3251
      %v3277 = vpack.c.b16 %v3254, %v3253
      %v3278 = vpack.c.b16 %v3256, %v3255
      %v3279 = vpack.c.b16 %v3258, %v3257
      %v3280 = vpack.c.b16 %v3260, %v3259
      %v3281 = vpack.c.b16 %v3262, %v3261
      %v3282 = vpack.c.b16 %v3264, %v3263
      %v3283 = vpack.c.b16 %v3266, %v3265
      %v3284 = vpack.c.b16 %v3268, %v3267
      %v3288 = vunpack.c.l.b16 %v2862
      %v3289 = vunpack.c.l.b16 %v2863
      %v3290 = vunpack.c.l.b16 %v2864
      %v3291 = vpack.c.b16 %v3289, %v3288
      %v3292 = vpack.c.b16 %v3290, %v3290
      %v3295 = vsel %vm2991, %v3269, 0
      %v3298 = vsel %vm2991, %v3270, 0
      %v3301 = vsel %vm2991, %v3271, 0
      %v3304 = vsel %vm2991, %v3272, 0
      %v3307 = vsel %vm2991, %v3273, 0
      %v3310 = vsel %vm2991, %v3274, 0
      %v3313 = vsel %vm2991, %v3275, 0
      %v3316 = vsel %vm2991, %v3276, 0
      %v3319 = vsel %vm2991, %v3277, 0
      %v3322 = vsel %vm2991, %v3278, 0
      %v3325 = vsel %vm2991, %v3279, 0
      %v3328 = vsel %vm2991, %v3280, 0
      %v3331 = vsel %vm2991, %v3281, 0
      %v3334 = vsel %vm2991, %v3282, 0
      %v3337 = vsel %vm2991, %v3283, 0
      %v3340 = vsel %vm2991, %v3284, 0
      %v3343 = vsel %vm3040, %v3292, 0
      %3345 = vmatprep.subr.bf16.mxu0 0
      %3346 = vmatpush1.bf16.msra.mxu0 0
      %3347 = vmatprep.subr.bf16.mxu0 0
      %3348 = vmatpush1.bf16.msra.mxu0 0
      %3349 = vmatprep.subr.bf16.mxu0 0
      %3350 = vmatpush1.bf16.msra.mxu0 0
      %3351 = vmatprep.subr.bf16.mxu0 0
      %3352 = vmatpush1.bf16.msra.mxu0 0
      %3353 = vmatprep.subr.bf16.mxu0 0
      %3354 = vmatpush1.bf16.msra.mxu0 0
      %3355 = vmatprep.subr.bf16.mxu0 0
      %3356 = vmatpush1.bf16.msra.mxu0 0
      %3357 = vmatprep.subr.bf16.mxu0 0
      %3358 = vmatpush1.bf16.msra.mxu0 %v3343
      %3359 = vmatprep.subr.bf16.mxu0 0
      %3360 = vmatpush1.bf16.msra.mxu0 %v3291
      %3361 = vmatprep.subr.bf16.mxu0 0
      %3362 = vmatpush2.bf16.msra.mxu0 0
      %3363 = vmatprep.subr.bf16.mxu0 0
      %3364 = vmatpush2.bf16.msra.mxu0 0
      %3365 = vmatprep.subr.bf16.mxu0 0
      %3366 = vmatpush2.bf16.msra.mxu0 0
      %3367 = vmatprep.subr.bf16.mxu0 0
      %3368 = vmatpush2.bf16.msra.mxu0 0
      %3369 = vmatprep.subr.bf16.mxu0 0
      %3370 = vmatpush2.bf16.msra.mxu0 0
      %3371 = vmatprep.subr.bf16.mxu0 0
      %3372 = vmatpush2.bf16.msra.mxu0 0
      %3373 = vmatprep.subr.bf16.mxu0 0
      %3374 = vmatpush2.bf16.msra.mxu0 0
      %3375 = vmatprep.subr.bf16.mxu0 0
      %3376 = vmatpush2.bf16.msra.mxu0 0
      %3377 = vmatprep.mubr.bf16.mxu0 0
      %3378 = vmatmul.mubr.bf16.gmra.mxu0 %v3295
      %v3379 = vpop.f32.mrf.mxu0
      %v3380 = vadd.f32 %v3079, %v3379
      %v3381 = vpop.f32.mrf.mxu0
      %v3382 = vpop.f32.mrf.mxu0
      %v3383 = vadd.f32 %v3082, %v3382
      %v3384 = vpop.f32.mrf.mxu0
      %3385 = vmatprep.mubr.bf16.mxu0 0
      %3386 = vmatmul.mubr.bf16.gmra.mxu0 %v3298
      %v3387 = vpop.f32.mrf.mxu0
      %v3388 = vadd.f32 %v3087, %v3387
      %v3389 = vpop.f32.mrf.mxu0
      %v3390 = vpop.f32.mrf.mxu0
      %v3391 = vadd.f32 %v3090, %v3390
      %v3392 = vpop.f32.mrf.mxu0
      %3393 = vmatprep.mubr.bf16.mxu0 0
      %3394 = vmatmul.mubr.bf16.gmra.mxu0 %v3301
      %v3395 = vpop.f32.mrf.mxu0
      %v3396 = vadd.f32 %v3095, %v3395
      %v3397 = vpop.f32.mrf.mxu0
      %v3398 = vpop.f32.mrf.mxu0
      %v3399 = vadd.f32 %v3098, %v3398
      %v3400 = vpop.f32.mrf.mxu0
      %3401 = vmatprep.mubr.bf16.mxu0 0
      %3402 = vmatmul.mubr.bf16.gmra.mxu0 %v3304
      %v3403 = vpop.f32.mrf.mxu0
      %v3404 = vadd.f32 %v3103, %v3403
      %v3405 = vpop.f32.mrf.mxu0
      %v3406 = vpop.f32.mrf.mxu0
      %v3407 = vadd.f32 %v3106, %v3406
      %v3408 = vpop.f32.mrf.mxu0
      %3409 = vmatprep.mubr.bf16.mxu0 0
      %3410 = vmatmul.mubr.bf16.gmra.mxu0 %v3307
      %v3411 = vpop.f32.mrf.mxu0
      %v3412 = vadd.f32 %v3111, %v3411
      %v3413 = vpop.f32.mrf.mxu0
      %v3414 = vpop.f32.mrf.mxu0
      %v3415 = vadd.f32 %v3114, %v3414
      %v3416 = vpop.f32.mrf.mxu0
      %3417 = vmatprep.mubr.bf16.mxu0 0
      %3418 = vmatmul.mubr.bf16.gmra.mxu0 %v3310
      %v3419 = vpop.f32.mrf.mxu0
      %v3420 = vadd.f32 %v3119, %v3419
      %v3421 = vpop.f32.mrf.mxu0
      %v3422 = vpop.f32.mrf.mxu0
      %v3423 = vadd.f32 %v3122, %v3422
      %v3424 = vpop.f32.mrf.mxu0
      %3425 = vmatprep.mubr.bf16.mxu0 0
      %3426 = vmatmul.mubr.bf16.gmra.mxu0 %v3313
      %v3427 = vpop.f32.mrf.mxu0
      %v3428 = vadd.f32 %v3127, %v3427
      %v3429 = vpop.f32.mrf.mxu0
      %v3430 = vpop.f32.mrf.mxu0
      %v3431 = vadd.f32 %v3130, %v3430
      %v3432 = vpop.f32.mrf.mxu0
      %3433 = vmatprep.mubr.bf16.mxu0 0
      %3434 = vmatmul.mubr.bf16.gmra.mxu0 %v3316
      %v3435 = vpop.f32.mrf.mxu0
      %v3436 = vadd.f32 %v3135, %v3435
      %v3437 = vpop.f32.mrf.mxu0
      %v3438 = vpop.f32.mrf.mxu0
      %v3439 = vadd.f32 %v3138, %v3438
      %v3440 = vpop.f32.mrf.mxu0
      %3441 = vmatprep.mubr.bf16.mxu0 0
      %3442 = vmatmul.mubr.bf16.gmra.mxu0 %v3319
      %v3443 = vpop.f32.mrf.mxu0
      %v3444 = vadd.f32 %v3143, %v3443
      %v3445 = vpop.f32.mrf.mxu0
      %v3446 = vpop.f32.mrf.mxu0
      %v3447 = vadd.f32 %v3146, %v3446
      %v3448 = vpop.f32.mrf.mxu0
      %3449 = vmatprep.mubr.bf16.mxu0 0
      %3450 = vmatmul.mubr.bf16.gmra.mxu0 %v3322
      %v3451 = vpop.f32.mrf.mxu0
      %v3452 = vadd.f32 %v3151, %v3451
      %v3453 = vpop.f32.mrf.mxu0
      %v3454 = vpop.f32.mrf.mxu0
      %v3455 = vadd.f32 %v3154, %v3454
      %v3456 = vpop.f32.mrf.mxu0
      %3457 = vmatprep.mubr.bf16.mxu0 0
      %3458 = vmatmul.mubr.bf16.gmra.mxu0 %v3325
      %v3459 = vpop.f32.mrf.mxu0
      %v3460 = vadd.f32 %v3159, %v3459
      %v3461 = vpop.f32.mrf.mxu0
      %v3462 = vpop.f32.mrf.mxu0
      %v3463 = vadd.f32 %v3162, %v3462
      %v3464 = vpop.f32.mrf.mxu0
      %3465 = vmatprep.mubr.bf16.mxu0 0
      %3466 = vmatmul.mubr.bf16.gmra.mxu0 %v3328
      %v3467 = vpop.f32.mrf.mxu0
      %v3468 = vadd.f32 %v3167, %v3467
      %v3469 = vpop.f32.mrf.mxu0
      %v3470 = vpop.f32.mrf.mxu0
      %v3471 = vadd.f32 %v3170, %v3470
      %v3472 = vpop.f32.mrf.mxu0
      %3473 = vmatprep.mubr.bf16.mxu0 0
      %3474 = vmatmul.mubr.bf16.gmra.mxu0 %v3331
      %v3475 = vpop.f32.mrf.mxu0
      %v3476 = vadd.f32 %v3175, %v3475
      %v3477 = vpop.f32.mrf.mxu0
      %v3478 = vpop.f32.mrf.mxu0
      %v3479 = vadd.f32 %v3178, %v3478
      %v3480 = vpop.f32.mrf.mxu0
      %3481 = vmatprep.mubr.bf16.mxu0 0
      %3482 = vmatmul.mubr.bf16.gmra.mxu0 %v3334
      %v3483 = vpop.f32.mrf.mxu0
      %v3484 = vadd.f32 %v3183, %v3483
      %v3485 = vpop.f32.mrf.mxu0
      %v3486 = vpop.f32.mrf.mxu0
      %v3487 = vadd.f32 %v3186, %v3486
      %v3488 = vpop.f32.mrf.mxu0
      %3489 = vmatprep.mubr.bf16.mxu0 0
      %3490 = vmatmul.mubr.bf16.gmra.mxu0 %v3337
      %v3491 = vpop.f32.mrf.mxu0
      %v3492 = vadd.f32 %v3191, %v3491
      %v3493 = vpop.f32.mrf.mxu0
      %v3494 = vpop.f32.mrf.mxu0
      %v3495 = vadd.f32 %v3194, %v3494
      %v3496 = vpop.f32.mrf.mxu0
      %3497 = vmatprep.mubr.bf16.mxu0 0
      %3498 = vmatmul.mubr.bf16.gmra.mxu0 %v3340
      %v3499 = vpop.f32.mrf.mxu0
      %v3500 = vadd.f32 %v3199, %v3499
      %v3501 = vpop.f32.mrf.mxu0
      %v3502 = vpop.f32.mrf.mxu0
      %v3503 = vadd.f32 %v3202, %v3502
      %v3504 = vpop.f32.mrf.mxu0
      %3505 = vdwg.mxu0
      %s3506 = scalar_lea.vmem [#allocation3], 16
      %v3507 = vld [vmem:[%s3506] sm:$0xf]
      %v3508 = vld [vmem:[%s3506 + $0x4] sm:$0xf]
      %v3509 = vld [vmem:[%s3506 + $0x8] sm:$0xf]
      %v3510 = vld [vmem:[%s3506 + $0xc] sm:$0xf]
      %v3511 = vld [vmem:[%s3506 + $0x10] sm:$0xf]
      %v3512 = vld [vmem:[%s3506 + $0x14] sm:$0xf]
      %v3513 = vld [vmem:[%s3506 + $0x18] sm:$0xf]
      %v3514 = vld [vmem:[%s3506 + $0x1c] sm:$0xf]
      %v3515 = vld [vmem:[%s3506 + $0x20] sm:$0xf]
      %v3516 = vld [vmem:[%s3506 + $0x24] sm:$0xf]
      %v3517 = vld [vmem:[%s3506 + $0x28] sm:$0xf]
      %v3518 = vld [vmem:[%s3506 + $0x2c] sm:$0xf]
      %v3519 = vld [vmem:[%s3506 + $0x30] sm:$0xf]
      %v3520 = vld [vmem:[%s3506 + $0x34] sm:$0xf]
      %v3521 = vld [vmem:[%s3506 + $0x38] sm:$0xf]
      %v3522 = vld [vmem:[%s3506 + $0x3c] sm:$0xf]
      %v3523 = vld [vmem:[%s3506 + $0x40] sm:$0xf]
      %v3524 = vld [vmem:[%s3506 + $0x44] sm:$0xf]
      %v3525 = vld [vmem:[%s3506 + $0x48] sm:$0xf]
      %v3526 = vld [vmem:[%s3506 + $0x4c] sm:$0xf]
      %v3527 = vld [vmem:[%s3506 + $0x50] sm:$0xf]
      %v3528 = vld [vmem:[%s3506 + $0x54] sm:$0xf]
      %v3529 = vld [vmem:[%s3506 + $0x58] sm:$0xf]
      %v3530 = vld [vmem:[%s3506 + $0x5c] sm:$0xf]
      %v3531 = vld [vmem:[%s3506 + $0x60] sm:$0xf]
      %v3532 = vld [vmem:[%s3506 + $0x64] sm:$0xf]
      %v3533 = vld [vmem:[%s3506 + $0x68] sm:$0xf]
      %v3534 = vld [vmem:[%s3506 + $0x6c] sm:$0xf]
      %v3535 = vld [vmem:[%s3506 + $0x70] sm:$0xf]
      %v3536 = vld [vmem:[%s3506 + $0x74] sm:$0xf]
      %v3537 = vld [vmem:[%s3506 + $0x78] sm:$0xf]
      %v3538 = vld [vmem:[%s3506 + $0x7c] sm:$0xf]
      %s3539 = scalar_lea.vmem %s5, 24
      %v3540 = vld [vmem:[%s3539] sm:$0xf]
      %v3541 = vld [vmem:[%s3539 + $0x4] sm:$0xf]
      %v3542 = vld [vmem:[%s3539 + $0x8] sm:$0xf]
      %v3575 = vunpack.c.l.b16 %v3507
      %v3576 = vunpack.c.l.b16 %v3508
      %v3577 = vunpack.c.l.b16 %v3509
      %v3578 = vunpack.c.l.b16 %v3510
      %v3579 = vunpack.c.l.b16 %v3511
      %v3580 = vunpack.c.l.b16 %v3512
      %v3581 = vunpack.c.l.b16 %v3513
      %v3582 = vunpack.c.l.b16 %v3514
      %v3583 = vunpack.c.l.b16 %v3515
      %v3584 = vunpack.c.l.b16 %v3516
      %v3585 = vunpack.c.l.b16 %v3517
      %v3586 = vunpack.c.l.b16 %v3518
      %v3587 = vunpack.c.l.b16 %v3519
      %v3588 = vunpack.c.l.b16 %v3520
      %v3589 = vunpack.c.l.b16 %v3521
      %v3590 = vunpack.c.l.b16 %v3522
      %v3591 = vunpack.c.l.b16 %v3523
      %v3592 = vunpack.c.l.b16 %v3524
      %v3593 = vunpack.c.l.b16 %v3525
      %v3594 = vunpack.c.l.b16 %v3526
      %v3595 = vunpack.c.l.b16 %v3527
      %v3596 = vunpack.c.l.b16 %v3528
      %v3597 = vunpack.c.l.b16 %v3529
      %v3598 = vunpack.c.l.b16 %v3530
      %v3599 = vunpack.c.l.b16 %v3531
      %v3600 = vunpack.c.l.b16 %v3532
      %v3601 = vunpack.c.l.b16 %v3533
      %v3602 = vunpack.c.l.b16 %v3534
      %v3603 = vunpack.c.l.b16 %v3535
      %v3604 = vunpack.c.l.b16 %v3536
      %v3605 = vunpack.c.l.b16 %v3537
      %v3606 = vunpack.c.l.b16 %v3538
      %v3607 = vpack.c.b16 %v3576, %v3575
      %v3608 = vpack.c.b16 %v3578, %v3577
      %v3609 = vpack.c.b16 %v3580, %v3579
      %v3610 = vpack.c.b16 %v3582, %v3581
      %v3611 = vpack.c.b16 %v3584, %v3583
      %v3612 = vpack.c.b16 %v3586, %v3585
      %v3613 = vpack.c.b16 %v3588, %v3587
      %v3614 = vpack.c.b16 %v3590, %v3589
      %v3615 = vpack.c.b16 %v3592, %v3591
      %v3616 = vpack.c.b16 %v3594, %v3593
      %v3617 = vpack.c.b16 %v3596, %v3595
      %v3618 = vpack.c.b16 %v3598, %v3597
      %v3619 = vpack.c.b16 %v3600, %v3599
      %v3620 = vpack.c.b16 %v3602, %v3601
      %v3621 = vpack.c.b16 %v3604, %v3603
      %v3622 = vpack.c.b16 %v3606, %v3605
      %v3626 = vunpack.c.l.b16 %v3540
      %v3627 = vunpack.c.l.b16 %v3541
      %v3628 = vunpack.c.l.b16 %v3542
      %v3629 = vpack.c.b16 %v3627, %v3626
      %v3630 = vpack.c.b16 %v3628, %v3628
      %v3633 = vsel %vm2991, %v3607, 0
      %v3636 = vsel %vm2991, %v3608, 0
      %v3639 = vsel %vm2991, %v3609, 0
      %v3642 = vsel %vm2991, %v3610, 0
      %v3645 = vsel %vm2991, %v3611, 0
      %v3648 = vsel %vm2991, %v3612, 0
      %v3651 = vsel %vm2991, %v3613, 0
      %v3654 = vsel %vm2991, %v3614, 0
      %v3657 = vsel %vm2991, %v3615, 0
      %v3660 = vsel %vm2991, %v3616, 0
      %v3663 = vsel %vm2991, %v3617, 0
      %v3666 = vsel %vm2991, %v3618, 0
      %v3669 = vsel %vm2991, %v3619, 0
      %v3672 = vsel %vm2991, %v3620, 0
      %v3675 = vsel %vm2991, %v3621, 0
      %v3678 = vsel %vm2991, %v3622, 0
      %v3681 = vsel %vm3040, %v3630, 0
      %3683 = vmatprep.subr.bf16.mxu0 0
      %3684 = vmatpush1.bf16.msra.mxu0 0
      %3685 = vmatprep.subr.bf16.mxu0 0
      %3686 = vmatpush1.bf16.msra.mxu0 0
      %3687 = vmatprep.subr.bf16.mxu0 0
      %3688 = vmatpush1.bf16.msra.mxu0 0
      %3689 = vmatprep.subr.bf16.mxu0 0
      %3690 = vmatpush1.bf16.msra.mxu0 0
      %3691 = vmatprep.subr.bf16.mxu0 0
      %3692 = vmatpush1.bf16.msra.mxu0 0
      %3693 = vmatprep.subr.bf16.mxu0 0
      %3694 = vmatpush1.bf16.msra.mxu0 0
      %3695 = vmatprep.subr.bf16.mxu0 0
      %3696 = vmatpush1.bf16.msra.mxu0 %v3681
      %3697 = vmatprep.subr.bf16.mxu0 0
      %3698 = vmatpush1.bf16.msra.mxu0 %v3629
      %3699 = vmatprep.subr.bf16.mxu0 0
      %3700 = vmatpush2.bf16.msra.mxu0 0
      %3701 = vmatprep.subr.bf16.mxu0 0
      %3702 = vmatpush2.bf16.msra.mxu0 0
      %3703 = vmatprep.subr.bf16.mxu0 0
      %3704 = vmatpush2.bf16.msra.mxu0 0
      %3705 = vmatprep.subr.bf16.mxu0 0
      %3706 = vmatpush2.bf16.msra.mxu0 0
      %3707 = vmatprep.subr.bf16.mxu0 0
      %3708 = vmatpush2.bf16.msra.mxu0 0
      %3709 = vmatprep.subr.bf16.mxu0 0
      %3710 = vmatpush2.bf16.msra.mxu0 0
      %3711 = vmatprep.subr.bf16.mxu0 0
      %3712 = vmatpush2.bf16.msra.mxu0 0
      %3713 = vmatprep.subr.bf16.mxu0 0
      %3714 = vmatpush2.bf16.msra.mxu0 0
      %3715 = vmatprep.mubr.bf16.mxu0 0
      %3716 = vmatmul.mubr.bf16.gmra.mxu0 %v3633
      %v3717 = vpop.f32.mrf.mxu0
      %v3718 = vadd.f32 0.0, %v3717
      %v3719 = vpop.f32.mrf.mxu0
      %v3720 = vpop.f32.mrf.mxu0
      %v3721 = vadd.f32 0.0, %v3720
      %v3722 = vpop.f32.mrf.mxu0
      %3723 = vmatprep.mubr.bf16.mxu0 0
      %3724 = vmatmul.mubr.bf16.gmra.mxu0 %v3636
      %v3725 = vpop.f32.mrf.mxu0
      %v3726 = vadd.f32 0.0, %v3725
      %v3727 = vpop.f32.mrf.mxu0
      %v3728 = vpop.f32.mrf.mxu0
      %v3729 = vadd.f32 0.0, %v3728
      %v3730 = vpop.f32.mrf.mxu0
      %3731 = vmatprep.mubr.bf16.mxu0 0
      %3732 = vmatmul.mubr.bf16.gmra.mxu0 %v3639
      %v3733 = vpop.f32.mrf.mxu0
      %v3734 = vadd.f32 0.0, %v3733
      %v3735 = vpop.f32.mrf.mxu0
      %v3736 = vpop.f32.mrf.mxu0
      %v3737 = vadd.f32 0.0, %v3736
      %v3738 = vpop.f32.mrf.mxu0
      %3739 = vmatprep.mubr.bf16.mxu0 0
      %3740 = vmatmul.mubr.bf16.gmra.mxu0 %v3642
      %v3741 = vpop.f32.mrf.mxu0
      %v3742 = vadd.f32 0.0, %v3741
      %v3743 = vpop.f32.mrf.mxu0
      %v3744 = vpop.f32.mrf.mxu0
      %v3745 = vadd.f32 0.0, %v3744
      %v3746 = vpop.f32.mrf.mxu0
      %3747 = vmatprep.mubr.bf16.mxu0 0
      %3748 = vmatmul.mubr.bf16.gmra.mxu0 %v3645
      %v3749 = vpop.f32.mrf.mxu0
      %v3750 = vadd.f32 0.0, %v3749
      %v3751 = vpop.f32.mrf.mxu0
      %v3752 = vpop.f32.mrf.mxu0
      %v3753 = vadd.f32 0.0, %v3752
      %v3754 = vpop.f32.mrf.mxu0
      %3755 = vmatprep.mubr.bf16.mxu0 0
      %3756 = vmatmul.mubr.bf16.gmra.mxu0 %v3648
      %v3757 = vpop.f32.mrf.mxu0
      %v3758 = vadd.f32 0.0, %v3757
      %v3759 = vpop.f32.mrf.mxu0
      %v3760 = vpop.f32.mrf.mxu0
      %v3761 = vadd.f32 0.0, %v3760
      %v3762 = vpop.f32.mrf.mxu0
      %3763 = vmatprep.mubr.bf16.mxu0 0
      %3764 = vmatmul.mubr.bf16.gmra.mxu0 %v3651
      %v3765 = vpop.f32.mrf.mxu0
      %v3766 = vadd.f32 0.0, %v3765
      %v3767 = vpop.f32.mrf.mxu0
      %v3768 = vpop.f32.mrf.mxu0
      %v3769 = vadd.f32 0.0, %v3768
      %v3770 = vpop.f32.mrf.mxu0
      %3771 = vmatprep.mubr.bf16.mxu0 0
      %3772 = vmatmul.mubr.bf16.gmra.mxu0 %v3654
      %v3773 = vpop.f32.mrf.mxu0
      %v3774 = vadd.f32 0.0, %v3773
      %v3775 = vpop.f32.mrf.mxu0
      %v3776 = vpop.f32.mrf.mxu0
      %v3777 = vadd.f32 0.0, %v3776
      %v3778 = vpop.f32.mrf.mxu0
      %3779 = vmatprep.mubr.bf16.mxu0 0
      %3780 = vmatmul.mubr.bf16.gmra.mxu0 %v3657
      %v3781 = vpop.f32.mrf.mxu0
      %v3782 = vadd.f32 0.0, %v3781
      %v3783 = vpop.f32.mrf.mxu0
      %v3784 = vpop.f32.mrf.mxu0
      %v3785 = vadd.f32 0.0, %v3784
      %v3786 = vpop.f32.mrf.mxu0
      %3787 = vmatprep.mubr.bf16.mxu0 0
      %3788 = vmatmul.mubr.bf16.gmra.mxu0 %v3660
      %v3789 = vpop.f32.mrf.mxu0
      %v3790 = vadd.f32 0.0, %v3789
      %v3791 = vpop.f32.mrf.mxu0
      %v3792 = vpop.f32.mrf.mxu0
      %v3793 = vadd.f32 0.0, %v3792
      %v3794 = vpop.f32.mrf.mxu0
      %3795 = vmatprep.mubr.bf16.mxu0 0
      %3796 = vmatmul.mubr.bf16.gmra.mxu0 %v3663
      %v3797 = vpop.f32.mrf.mxu0
      %v3798 = vadd.f32 0.0, %v3797
      %v3799 = vpop.f32.mrf.mxu0
      %v3800 = vpop.f32.mrf.mxu0
      %v3801 = vadd.f32 0.0, %v3800
      %v3802 = vpop.f32.mrf.mxu0
      %3803 = vmatprep.mubr.bf16.mxu0 0
      %3804 = vmatmul.mubr.bf16.gmra.mxu0 %v3666
      %v3805 = vpop.f32.mrf.mxu0
      %v3806 = vadd.f32 0.0, %v3805
      %v3807 = vpop.f32.mrf.mxu0
      %v3808 = vpop.f32.mrf.mxu0
      %v3809 = vadd.f32 0.0, %v3808
      %v3810 = vpop.f32.mrf.mxu0
      %3811 = vmatprep.mubr.bf16.mxu0 0
      %3812 = vmatmul.mubr.bf16.gmra.mxu0 %v3669
      %v3813 = vpop.f32.mrf.mxu0
      %v3814 = vadd.f32 0.0, %v3813
      %v3815 = vpop.f32.mrf.mxu0
      %v3816 = vpop.f32.mrf.mxu0
      %v3817 = vadd.f32 0.0, %v3816
      %v3818 = vpop.f32.mrf.mxu0
      %3819 = vmatprep.mubr.bf16.mxu0 0
      %3820 = vmatmul.mubr.bf16.gmra.mxu0 %v3672
      %v3821 = vpop.f32.mrf.mxu0
      %v3822 = vadd.f32 0.0, %v3821
      %v3823 = vpop.f32.mrf.mxu0
      %v3824 = vpop.f32.mrf.mxu0
      %v3825 = vadd.f32 0.0, %v3824
      %v3826 = vpop.f32.mrf.mxu0
      %3827 = vmatprep.mubr.bf16.mxu0 0
      %3828 = vmatmul.mubr.bf16.gmra.mxu0 %v3675
      %v3829 = vpop.f32.mrf.mxu0
      %v3830 = vadd.f32 0.0, %v3829
      %v3831 = vpop.f32.mrf.mxu0
      %v3832 = vpop.f32.mrf.mxu0
      %v3833 = vadd.f32 0.0, %v3832
      %v3834 = vpop.f32.mrf.mxu0
      %3835 = vmatprep.mubr.bf16.mxu0 0
      %3836 = vmatmul.mubr.bf16.gmra.mxu0 %v3678
      %v3837 = vpop.f32.mrf.mxu0
      %v3838 = vadd.f32 0.0, %v3837
      %v3839 = vpop.f32.mrf.mxu0
      %v3840 = vpop.f32.mrf.mxu0
      %v3841 = vadd.f32 0.0, %v3840
      %v3842 = vpop.f32.mrf.mxu0
      %3843 = vdwg.mxu0
      %v3844 = vadd.f32 %v3380, %v3718
      %v3845 = vadd.f32 %v3383, %v3721
      %v3846 = vadd.f32 %v3388, %v3726
      %v3847 = vadd.f32 %v3391, %v3729
      %v3848 = vadd.f32 %v3396, %v3734
      %v3849 = vadd.f32 %v3399, %v3737
      %v3850 = vadd.f32 %v3404, %v3742
      %v3851 = vadd.f32 %v3407, %v3745
      %v3852 = vadd.f32 %v3412, %v3750
      %v3853 = vadd.f32 %v3415, %v3753
      %v3854 = vadd.f32 %v3420, %v3758
      %v3855 = vadd.f32 %v3423, %v3761
      %v3856 = vadd.f32 %v3428, %v3766
      %v3857 = vadd.f32 %v3431, %v3769
      %v3858 = vadd.f32 %v3436, %v3774
      %v3859 = vadd.f32 %v3439, %v3777
      %v3860 = vadd.f32 %v3444, %v3782
      %v3861 = vadd.f32 %v3447, %v3785
      %v3862 = vadd.f32 %v3452, %v3790
      %v3863 = vadd.f32 %v3455, %v3793
      %v3864 = vadd.f32 %v3460, %v3798
      %v3865 = vadd.f32 %v3463, %v3801
      %v3866 = vadd.f32 %v3468, %v3806
      %v3867 = vadd.f32 %v3471, %v3809
      %v3868 = vadd.f32 %v3476, %v3814
      %v3869 = vadd.f32 %v3479, %v3817
      %v3870 = vadd.f32 %v3484, %v3822
      %v3871 = vadd.f32 %v3487, %v3825
      %v3872 = vadd.f32 %v3492, %v3830
      %v3873 = vadd.f32 %v3495, %v3833
      %v3874 = vadd.f32 %v3500, %v3838
      %v3875 = vadd.f32 %v3503, %v3841
      %v3876 = vld [vmem:[%s341] sm:$0x1]
      %v3877 = vxor.u32 %v3876, 2147483648
      %v3878 = vmul.f32 %v3877, 1.442695
      %v3879 = vpow.pop %v3878
      %v3880 = vadd.f32 %v3879, 1.0
      %v3881 = vrcp.pop %v3880
      %v3882 = vmul.f32 1.0, %v3881
      %v3883 = vmul.f32 %v3876, %v3882
      %v3884 = vpack.c.bf16 %v3883, %v3883
      %v3885 = vld [vmem:[%s7] sm:$0xf]
      %v3886 = vld [vmem:[%s7 + $0x4] sm:$0xf]
      %v3887 = vld [vmem:[%s7 + $0x8] sm:$0xf]
      %v3888 = vld [vmem:[%s7 + $0xc] sm:$0xf]
      %v3889 = vld [vmem:[%s8] sm:$0x1]
      %v3894 = vunpack.c.l.b16 %v3885
      %v3895 = vunpack.c.l.b16 %v3886
      %v3896 = vunpack.c.l.b16 %v3887
      %v3897 = vunpack.c.l.b16 %v3888
      %v3898 = vpack.c.b16 %v3895, %v3894
      %v3899 = vpack.c.b16 %v3897, %v3896
      %vm3902 = vcmask 261120
      %v3904 = vsel %vm3902, %v3884, 0
      %3906 = vmatprep.subr.bf16.mxu0 0
      %3907 = vmatpush1.bf16.msra.mxu0 0
      %3908 = vmatprep.subr.bf16.mxu0 0
      %3909 = vmatpush1.bf16.msra.mxu0 0
      %3910 = vmatprep.subr.bf16.mxu0 0
      %3911 = vmatpush1.bf16.msra.mxu0 0
      %3912 = vmatprep.subr.bf16.mxu0 0
      %3913 = vmatpush1.bf16.msra.mxu0 0
      %3914 = vmatprep.subr.bf16.mxu0 0
      %3915 = vmatpush1.bf16.msra.mxu0 0
      %3916 = vmatprep.subr.bf16.mxu0 0
      %3917 = vmatpush1.bf16.msra.mxu0 0
      %3918 = vmatprep.subr.bf16.mxu0 0
      %3919 = vmatpush1.bf16.msra.mxu0 %v3899
      %3920 = vmatprep.subr.bf16.mxu0 0
      %3921 = vmatpush1.bf16.msra.mxu0 %v3898
      %3922 = vmatprep.subr.bf16.mxu0 0
      %3923 = vmatpush2.bf16.msra.mxu0 0
      %3924 = vmatprep.subr.bf16.mxu0 0
      %3925 = vmatpush2.bf16.msra.mxu0 0
      %3926 = vmatprep.subr.bf16.mxu0 0
      %3927 = vmatpush2.bf16.msra.mxu0 0
      %3928 = vmatprep.subr.bf16.mxu0 0
      %3929 = vmatpush2.bf16.msra.mxu0 0
      %3930 = vmatprep.subr.bf16.mxu0 0
      %3931 = vmatpush2.bf16.msra.mxu0 0
      %3932 = vmatprep.subr.bf16.mxu0 0
      %3933 = vmatpush2.bf16.msra.mxu0 0
      %3934 = vmatprep.subr.bf16.mxu0 0
      %3935 = vmatpush2.bf16.msra.mxu0 0
      %3936 = vmatprep.subr.bf16.mxu0 0
      %3937 = vmatpush2.bf16.msra.mxu0 0
      %3938 = vmatprep.mubr.bf16.mxu0 0
      %3939 = vmatmul.mubr.bf16.gmra.mxu0 %v3904
      %v3940 = vpop.f32.mrf.mxu0
      %v3941 = vadd.f32 %v3889, %v3940
      %v3942 = vpop.f32.mrf.mxu0
      %v3943 = vpop.f32.mrf.mxu0
      %v3944 = vpop.f32.mrf.mxu0
      %3945 = vdwg.mxu0
      %v3946 = vld [vmem:[%s6] sm:$0x1]
      %v3948 = vlaneseq
      %v3949 = vshrl.u32 %v3948, 7
      %v3950 = vsub.s32 0, %v3949
      %v3951 = vrot.slane %v3946, %v3950
      %v3953 = vadd.f32 %v3844, %v3951
      %v3954 = vadd.f32 %v3845, %v3951
      %v3955 = vadd.f32 %v3846, %v3951
      %v3956 = vadd.f32 %v3847, %v3951
      %v3957 = vadd.f32 %v3848, %v3951
      %v3958 = vadd.f32 %v3849, %v3951
      %v3959 = vadd.f32 %v3850, %v3951
      %v3960 = vadd.f32 %v3851, %v3951
      %v3961 = vadd.f32 %v3852, %v3951
      %v3962 = vadd.f32 %v3853, %v3951
      %v3963 = vadd.f32 %v3854, %v3951
      %v3964 = vadd.f32 %v3855, %v3951
      %v3965 = vadd.f32 %v3856, %v3951
      %v3966 = vadd.f32 %v3857, %v3951
      %v3967 = vadd.f32 %v3858, %v3951
      %v3968 = vadd.f32 %v3859, %v3951
      %v3969 = vadd.f32 %v3860, %v3951
      %v3970 = vadd.f32 %v3861, %v3951
      %v3971 = vadd.f32 %v3862, %v3951
      %v3972 = vadd.f32 %v3863, %v3951
      %v3973 = vadd.f32 %v3864, %v3951
      %v3974 = vadd.f32 %v3865, %v3951
      %v3975 = vadd.f32 %v3866, %v3951
      %v3976 = vadd.f32 %v3867, %v3951
      %v3977 = vadd.f32 %v3868, %v3951
      %v3978 = vadd.f32 %v3869, %v3951
      %v3979 = vadd.f32 %v3870, %v3951
      %v3980 = vadd.f32 %v3871, %v3951
      %v3981 = vadd.f32 %v3872, %v3951
      %v3982 = vadd.f32 %v3873, %v3951
      %v3983 = vadd.f32 %v3874, %v3951
      %v3984 = vadd.f32 %v3875, %v3951
      %v3985 = vlaneseq
      %v3986 = vshrl.u32 %v3985, 7
      %v3987 = vsub.s32 0, %v3986
      %v3988 = vrot.slane %v3941, %v3987
      %v3989 = vadd.f32 %v3953, %v3988
      %v3990 = vadd.f32 %v3954, %v3988
      %v3991 = vadd.f32 %v3955, %v3988
      %v3992 = vadd.f32 %v3956, %v3988
      %v3993 = vadd.f32 %v3957, %v3988
      %v3994 = vadd.f32 %v3958, %v3988
      %v3995 = vadd.f32 %v3959, %v3988
      %v3996 = vadd.f32 %v3960, %v3988
      %v3997 = vadd.f32 %v3961, %v3988
      %v3998 = vadd.f32 %v3962, %v3988
      %v3999 = vadd.f32 %v3963, %v3988
      %v4000 = vadd.f32 %v3964, %v3988
      %v4001 = vadd.f32 %v3965, %v3988
      %v4002 = vadd.f32 %v3966, %v3988
      %v4003 = vadd.f32 %v3967, %v3988
      %v4004 = vadd.f32 %v3968, %v3988
      %v4005 = vadd.f32 %v3969, %v3988
      %v4006 = vadd.f32 %v3970, %v3988
      %v4007 = vadd.f32 %v3971, %v3988
      %v4008 = vadd.f32 %v3972, %v3988
      %v4009 = vadd.f32 %v3973, %v3988
      %v4010 = vadd.f32 %v3974, %v3988
      %v4011 = vadd.f32 %v3975, %v3988
      %v4012 = vadd.f32 %v3976, %v3988
      %v4013 = vadd.f32 %v3977, %v3988
      %v4014 = vadd.f32 %v3978, %v3988
      %v4015 = vadd.f32 %v3979, %v3988
      %v4016 = vadd.f32 %v3980, %v3988
      %v4017 = vadd.f32 %v3981, %v3988
      %v4018 = vadd.f32 %v3982, %v3988
      %v4019 = vadd.f32 %v3983, %v3988
      %v4020 = vadd.f32 %v3984, %v3988
      %v4021 = vpack.c.bf16 %v3990, %v3989
      %v4022 = vpack.c.bf16 %v3992, %v3991
      %v4023 = vpack.c.bf16 %v3994, %v3993
      %v4024 = vpack.c.bf16 %v3996, %v3995
      %v4025 = vpack.c.bf16 %v3998, %v3997
      %v4026 = vpack.c.bf16 %v4000, %v3999
      %v4027 = vpack.c.bf16 %v4002, %v4001
      %v4028 = vpack.c.bf16 %v4004, %v4003
      %v4029 = vpack.c.bf16 %v4006, %v4005
      %v4030 = vpack.c.bf16 %v4008, %v4007
      %v4031 = vpack.c.bf16 %v4010, %v4009
      %v4032 = vpack.c.bf16 %v4012, %v4011
      %v4033 = vpack.c.bf16 %v4014, %v4013
      %v4034 = vpack.c.bf16 %v4016, %v4015
      %v4035 = vpack.c.bf16 %v4018, %v4017
      %v4036 = vpack.c.bf16 %v4020, %v4019
      %v4053 = vunpack.c.l.b16 %v4021
      %v4054 = vunpack.c.h.b16 %v4021
      %v4055 = vunpack.c.l.b16 %v4022
      %v4056 = vunpack.c.h.b16 %v4022
      %v4057 = vunpack.c.l.b16 %v4023
      %v4058 = vunpack.c.h.b16 %v4023
      %v4059 = vunpack.c.l.b16 %v4024
      %v4060 = vunpack.c.h.b16 %v4024
      %v4061 = vunpack.c.l.b16 %v4025
      %v4062 = vunpack.c.h.b16 %v4025
      %v4063 = vunpack.c.l.b16 %v4026
      %v4064 = vunpack.c.h.b16 %v4026
      %v4065 = vunpack.c.l.b16 %v4027
      %v4066 = vunpack.c.h.b16 %v4027
      %v4067 = vunpack.c.l.b16 %v4028
      %v4068 = vunpack.c.h.b16 %v4028
      %v4069 = vunpack.c.l.b16 %v4029
      %v4070 = vunpack.c.h.b16 %v4029
      %v4071 = vunpack.c.l.b16 %v4030
      %v4072 = vunpack.c.h.b16 %v4030
      %v4073 = vunpack.c.l.b16 %v4031
      %v4074 = vunpack.c.h.b16 %v4031
      %v4075 = vunpack.c.l.b16 %v4032
      %v4076 = vunpack.c.h.b16 %v4032
      %v4077 = vunpack.c.l.b16 %v4033
      %v4078 = vunpack.c.h.b16 %v4033
      %v4079 = vunpack.c.l.b16 %v4034
      %v4080 = vunpack.c.h.b16 %v4034
      %v4081 = vunpack.c.l.b16 %v4035
      %v4082 = vunpack.c.h.b16 %v4035
      %v4083 = vunpack.c.l.b16 %v4036
      %v4084 = vunpack.c.h.b16 %v4036
      %v4085 = vpack.c.b16 %v4053, %v4053
      %v4086 = vpack.c.b16 %v4054, %v4054
      %v4087 = vpack.c.b16 %v4055, %v4055
      %v4088 = vpack.c.b16 %v4056, %v4056
      %v4089 = vpack.c.b16 %v4057, %v4057
      %v4090 = vpack.c.b16 %v4058, %v4058
      %v4091 = vpack.c.b16 %v4059, %v4059
      %v4092 = vpack.c.b16 %v4060, %v4060
      %v4093 = vpack.c.b16 %v4061, %v4061
      %v4094 = vpack.c.b16 %v4062, %v4062
      %v4095 = vpack.c.b16 %v4063, %v4063
      %v4096 = vpack.c.b16 %v4064, %v4064
      %v4097 = vpack.c.b16 %v4065, %v4065
      %v4098 = vpack.c.b16 %v4066, %v4066
      %v4099 = vpack.c.b16 %v4067, %v4067
      %v4100 = vpack.c.b16 %v4068, %v4068
      %v4101 = vpack.c.b16 %v4069, %v4069
      %v4102 = vpack.c.b16 %v4070, %v4070
      %v4103 = vpack.c.b16 %v4071, %v4071
      %v4104 = vpack.c.b16 %v4072, %v4072
      %v4105 = vpack.c.b16 %v4073, %v4073
      %v4106 = vpack.c.b16 %v4074, %v4074
      %v4107 = vpack.c.b16 %v4075, %v4075
      %v4108 = vpack.c.b16 %v4076, %v4076
      %v4109 = vpack.c.b16 %v4077, %v4077
      %v4110 = vpack.c.b16 %v4078, %v4078
      %v4111 = vpack.c.b16 %v4079, %v4079
      %v4112 = vpack.c.b16 %v4080, %v4080
      %v4113 = vpack.c.b16 %v4081, %v4081
      %v4114 = vpack.c.b16 %v4082, %v4082
      %v4115 = vpack.c.b16 %v4083, %v4083
      %v4116 = vpack.c.b16 %v4084, %v4084
      %vm4149 = vcmask 125952
      %4150 = vst.msk [vmem:[%s346] sm:$0xf] %vm4149, %v4085
      %4151 = vst.msk [vmem:[%s346 + $0x4] sm:$0xf] %vm4149, %v4086
      %4152 = vst.msk [vmem:[%s346 + $0x8] sm:$0xf] %vm4149, %v4087
      %4153 = vst.msk [vmem:[%s346 + $0xc] sm:$0xf] %vm4149, %v4088
      %4154 = vst.msk [vmem:[%s346 + $0x10] sm:$0xf] %vm4149, %v4089
      %4155 = vst.msk [vmem:[%s346 + $0x14] sm:$0xf] %vm4149, %v4090
      %4156 = vst.msk [vmem:[%s346 + $0x18] sm:$0xf] %vm4149, %v4091
      %4157 = vst.msk [vmem:[%s346 + $0x1c] sm:$0xf] %vm4149, %v4092
      %4158 = vst.msk [vmem:[%s346 + $0x20] sm:$0xf] %vm4149, %v4093
      %4159 = vst.msk [vmem:[%s346 + $0x24] sm:$0xf] %vm4149, %v4094
      %4160 = vst.msk [vmem:[%s346 + $0x28] sm:$0xf] %vm4149, %v4095
      %4161 = vst.msk [vmem:[%s346 + $0x2c] sm:$0xf] %vm4149, %v4096
      %4162 = vst.msk [vmem:[%s346 + $0x30] sm:$0xf] %vm4149, %v4097
      %4163 = vst.msk [vmem:[%s346 + $0x34] sm:$0xf] %vm4149, %v4098
      %4164 = vst.msk [vmem:[%s346 + $0x38] sm:$0xf] %vm4149, %v4099
      %4165 = vst.msk [vmem:[%s346 + $0x3c] sm:$0xf] %vm4149, %v4100
      %4166 = vst.msk [vmem:[%s346 + $0x40] sm:$0xf] %vm4149, %v4101
      %4167 = vst.msk [vmem:[%s346 + $0x44] sm:$0xf] %vm4149, %v4102
      %4168 = vst.msk [vmem:[%s346 + $0x48] sm:$0xf] %vm4149, %v4103
      %4169 = vst.msk [vmem:[%s346 + $0x4c] sm:$0xf] %vm4149, %v4104
      %4170 = vst.msk [vmem:[%s346 + $0x50] sm:$0xf] %vm4149, %v4105
      %4171 = vst.msk [vmem:[%s346 + $0x54] sm:$0xf] %vm4149, %v4106
      %4172 = vst.msk [vmem:[%s346 + $0x58] sm:$0xf] %vm4149, %v4107
      %4173 = vst.msk [vmem:[%s346 + $0x5c] sm:$0xf] %vm4149, %v4108
      %4174 = vst.msk [vmem:[%s346 + $0x60] sm:$0xf] %vm4149, %v4109
      %4175 = vst.msk [vmem:[%s346 + $0x64] sm:$0xf] %vm4149, %v4110
      %4176 = vst.msk [vmem:[%s346 + $0x68] sm:$0xf] %vm4149, %v4111
      %4177 = vst.msk [vmem:[%s346 + $0x6c] sm:$0xf] %vm4149, %v4112
      %4178 = vst.msk [vmem:[%s346 + $0x70] sm:$0xf] %vm4149, %v4113
      %4179 = vst.msk [vmem:[%s346 + $0x74] sm:$0xf] %vm4149, %v4114
      %4180 = vst.msk [vmem:[%s346 + $0x78] sm:$0xf] %vm4149, %v4115
      %4181 = vst.msk [vmem:[%s346 + $0x7c] sm:$0xf] %vm4149, %v4116
      %p4182 = scmp.lt.s32.totalorder %s20, 1
      %s4183 = scalar_select %p4182, %s20, 1
      %s4184 = smul.addr %s4183, 32
      %s4185 = smul.addr %s4184, 4
      %s4186 = scalar_lea.vmem %s9, %s4185
      // Predicated region
      $region57: #{tpu_custom_call.1} parent=55 // pred_check
        %p4187 = pneg %p237
      $region58: #{tpu_custom_call.1} parent=55 // pred_check_branch
        %4189 = sbr.rel (%p4187) target = $region60
      $region59: #{tpu_custom_call.1} parent=55 // pred_region
        _
      $region60: #{tpu_custom_call.1} parent=55 // pred_fallthru
        _
    $region56: #{tpu_custom_call.1} parent=5 // pred_fallthru
      _
    %p4190 = scmp.le.s32.totalorder 2, %s15
    // Predicated region
    $region61: #{tpu_custom_call.1} parent=5 // pred_check
      %p4191 = pneg %p4190
    $region62: #{tpu_custom_call.1} parent=5 // pred_check_branch
      %4193 = sbr.rel (%p4191) target = $region64
    $region63: #{tpu_custom_call.1} parent=5 // pred_region
      %s4194 = ssub.s32 %s15, 2
      // Predicated region
      $region65: #{tpu_custom_call.1} parent=63 // pred_check
        %p4195 = pneg %p243
      $region66: #{tpu_custom_call.1} parent=63 // pred_check_branch
        %4197 = sbr.rel (%p4195) target = $region68
      $region67: #{tpu_custom_call.1} parent=63 // pred_region
        %p4198 = scmp.lt.s32.totalorder %s21, 1
        %s4199 = scalar_select %p4198, %s21, 1
        %s4200 = smul.addr %s4199, 32
        %s4201 = smul.addr %s4200, 4
        %s4202 = scalar_lea.vmem %s9, %s4201
      $region68: #{tpu_custom_call.1} parent=63 // pred_fallthru
        _
    $region64: #{tpu_custom_call.1} parent=5 // pred_fallthru
      _
  $region6: #{tpu_custom_call.1} parent=0 // loop_footer
    %s19 = sadd.s32 1, %s15
  $region7: #{tpu_custom_call.1} parent=0 // loop_footer_branch
    %14 = sbr.rel target = $region3
  $region8: #{tpu_custom_call.1} parent=0 // loop_exit
    _

</llo_original>
